<compile_context>
chip_gen: v7x
topology: tpu7x:2x2x1
jax: 0.10.0
libtpu: 0.0.40
codegen_flags: <defaults>
</compile_context>

<pallas_src>
import math

import jax
import jax.numpy as jnp
from jax import lax
from jax.experimental import pallas as pl
from jax.experimental.pallas import tpu as pltpu

_LANES = 128
_SUBLANES = 8


def _round_up(v, m):
    return ((v + m - 1) // m) * m


def _erf(x):
    # Abramowitz & Stegun 7.1.26 polynomial (max abs err ~1.5e-7): reproduces PyTorch's
    # exact (erf-based) F.gelu with only VPU math + one EUP exp.
    a1, a2, a3, a4, a5 = 0.254829592, -0.284496736, 1.421413741, -1.453152027, 1.061405429
    p = 0.3275911
    s = jnp.where(x >= 0.0, 1.0, -1.0)
    ax = jnp.abs(x)
    t = 1.0 / (1.0 + p * ax)
    poly = t * (a1 + t * (a2 + t * (a3 + t * (a4 + t * a5))))
    return s * (1.0 - poly * jnp.exp(-ax * ax))


def _gelu_exact(x):
    return 0.5 * x * (1.0 + _erf(x * (1.0 / math.sqrt(2.0))))


def _leaky_relu(x, slope):
    return jnp.where(x > 0.0, x, slope * x)


def _full_spec(arr):
    nd = arr.ndim
    return pl.BlockSpec(arr.shape, lambda i, nd=nd: (0,) * nd)


def fused_trace_gnn(x, adj, pool_mat, layer_ops, wfc, bfc, alpha_col):
    """Single fused forward.

    x         [Np, Cin]  f32, zero-padded node features (lane-dense)
    adj       [Np, Np]   bf16, adj[target, source] incl. self loops; stays in HBM
    pool_mat  [Bp, Np]   bf16 one-hot graph assignment
    layer_ops flat [w1, att_src1, bias1, w2, ..., bias3]; w is bf16 with W@att_dst folded
              into column `alpha_col` of the lane padding; att_src bf16; bias f32
    wfc/bfc   bf16 [Ch, Cout] / f32 [1, Cout]
    """
    n_pad = x.shape[0]
    b_pad = pool_mat.shape[0]
    ch_pad, cout_pad = wfc.shape
    tile_r = min(_LANES, n_pad)          # n_pad is a multiple of 128
    num_tiles = n_pad // tile_r

    def kernel(x_ref, adj_hbm, pool_ref,
               w1, a1, b1, w2, a2, b2, w3, a3, b3,
               wfc_ref, bfc_ref, out_ref,
               hbf_ref, adst_ref, hbuf_a, hbuf_b, adj_buf, adj_sem):

        def fetch(t, slot):
            r0 = pl.multiple_of(t * tile_r, tile_r)
            pltpu.make_async_copy(adj_hbm.at[pl.ds(r0, tile_r), :],
                                  adj_buf.at[slot], adj_sem.at[slot]).start()

        def wait(slot):
            pltpu.make_async_copy(adj_hbm.at[pl.ds(0, tile_r), :],
                                  adj_buf.at[slot], adj_sem.at[slot]).wait()

        def gat_gelu(xin_ref, w_ref, asrc_ref, bias_ref, out_buf):
            fetch(0, 0)  # overlap the first adj row-slab DMA with the projection matmul
            # h = x @ W_aug (bf16 MXU operands, f32 accumulation); column alpha_col of h is
            # alpha_dst (att_dst folded into W), columns [hidden:] of W are zero padding.
            h = jnp.dot(xin_ref[...].astype(jnp.bfloat16), w_ref[...],
                        preferred_element_type=jnp.float32)                      # [Np, Ch]
            h_bf = h.astype(jnp.bfloat16)
            hbf_ref[...] = h_bf                                                   # agg RHS
            adst_ref[...] = h[:, alpha_col:alpha_col + 1]                         # [Np, 1]
            # alpha_src as a row via one rank-1 MXU matvec ([1, Np] orientation directly).
            a_src = lax.dot_general(asrc_ref[...], h_bf, (((1,), (1,)), ((), ())),
                                    preferred_element_type=jnp.float32)           # [1, Np]
            bias = bias_ref[...]

            @pl.loop(0, num_tiles)
            def _(t):
                slot = t % 2
                wait(slot)

                @pl.when(t + 1 < num_tiles)
                def _():
                    fetch(t + 1, 1 - slot)

                r0 = pl.multiple_of(t * tile_r, tile_r)
                a_dst = adst_ref[pl.ds(r0, tile_r), :]                            # [TR, 1]
                # logits[i, j] = leaky_relu(alpha_dst[i] + alpha_src[j], 0.2)
                logits = _leaky_relu(a_dst + a_src, 0.2)                          # [TR, Np]
                # masked max (review fix): non-edges pinned to -1e30 before the max so the
                # self loop can never underflow; exp of masked entries is exactly 0.
                masked = jnp.where(adj_buf[slot] > 0, logits, -1e30)
                m = jnp.max(masked, axis=-1, keepdims=True)
                p = jnp.exp(masked - m)
                inv = pl.reciprocal(jnp.sum(p, axis=-1, keepdims=True), approx=True)
                attn = (p * inv).astype(jnp.bfloat16)
                agg = jnp.dot(attn, hbf_ref[...],
                              preferred_element_type=jnp.float32) + bias
                out_buf[pl.ds(r0, tile_r), :] = _gelu_exact(agg)

        gat_gelu(x_ref, w1, a1, b1, hbuf_a)
        gat_gelu(hbuf_a, w2, a2, b2, hbuf_b)
        gat_gelu(hbuf_b, w3, a3, b3, hbuf_a)

        # global_add_pool as a one-hot matmul, then Linear + leaky_relu(0.01).
        pooled = jnp.dot(pool_ref[...], hbuf_a[...].astype(jnp.bfloat16),
                         preferred_element_type=jnp.float32)                      # [Bp, Ch]
        y = jnp.dot(pooled.astype(jnp.bfloat16), wfc_ref[...],
                    preferred_element_type=jnp.float32) + bfc_ref[...]
        out_ref[...] = _leaky_relu(y, 0.01)                                       # lane-dense

    operands = [x, adj, pool_mat, *layer_ops, wfc, bfc]
    in_specs = []
    for o in operands:
        if o is adj:
            in_specs.append(pl.BlockSpec(memory_space=pl.ANY))   # streamed manually
        else:
            in_specs.append(_full_spec(o))

    # Explicit scoped-VMEM budget: resident operands (double-buffered) + scratch + per-tile
    # transients; capped at 64 MiB so the same value is legal on v5e / v6e / v7x.
    vmem_in = sum(2 * o.size * o.dtype.itemsize for o in operands if o is not adj)
    vmem_out = 2 * b_pad * cout_pad * 4
    vmem_scratch = (n_pad * ch_pad * (2 + 4 + 4)        # hbf (bf16) + 2 f32 ping-pong buffers
                    + n_pad * 512                       # alpha_dst column (lane-padded)
                    + 2 * tile_r * n_pad * 2)           # adj double buffer (bf16)
    vmem_transient = 8 * tile_r * n_pad * 4 + 4 * n_pad * ch_pad * 4
    vmem_limit = int(min(64 * 1024 * 1024,
                         max(32 * 1024 * 1024,
                             vmem_in + vmem_out + vmem_scratch + vmem_transient)))

    # TODO(synk): for many-graph batches add a second "parallel" grid axis over
    # block-diagonal graph groups so both v7x TensorCores are used.
    return pl.pallas_call(
        kernel,
        grid=(1,),
        in_specs=in_specs,
        out_specs=pl.BlockSpec((b_pad, cout_pad), lambda i: (0, 0)),
        out_shape=jax.ShapeDtypeStruct((b_pad, cout_pad), jnp.float32),
        scratch_shapes=[
            pltpu.VMEM((n_pad, ch_pad), jnp.bfloat16),    # projected features (agg RHS)
            pltpu.VMEM((n_pad, 1), jnp.float32),          # alpha_dst column
            pltpu.VMEM((n_pad, ch_pad), jnp.float32),     # layer output ping
            pltpu.VMEM((n_pad, ch_pad), jnp.float32),     # layer output pong
            pltpu.VMEM((2, tile_r, n_pad), jnp.bfloat16), # adj row-slab double buffer
            pltpu.SemaphoreType.DMA((2,)),
        ],
        compiler_params=pltpu.CompilerParams(
            dimension_semantics=("arbitrary",),
            vmem_limit_bytes=vmem_limit),
    )(*operands)


def init_params(key, input_dim, hidden_dim, output_dim):
    ks = jax.random.split(key, 16)

    def glorot(k, shape):
        lim = math.sqrt(6.0 / (shape[0] + shape[1]))
        return jax.random.uniform(k, shape, jnp.float32, -lim, lim)

    params = {}
    dims = [input_dim, hidden_dim, hidden_dim, hidden_dim]
    for li, name in enumerate(("conv1", "conv2", "conv3")):
        din, dout = dims[li], dims[li + 1]
        params[name] = {
            "w": glorot(ks[4 * li + 0], (din, dout)),
            "att_src": glorot(ks[4 * li + 1], (1, dout)),
            "att_dst": glorot(ks[4 * li + 2], (1, dout)),
            "bias": jnp.zeros((1, dout), jnp.float32),
        }
    params["fc"] = {
        "w": glorot(ks[12], (hidden_dim, output_dim)),
        "b": jnp.zeros((1, output_dim), jnp.float32),
    }
    return params


def trace_gnn_forward(params, node_ids, edge_index, batch, node_embeddings, num_graphs):
    """Mirrors TraceGNN.forward with predict_graph=True, pool='add'."""
    n = node_ids.shape[0]
    input_dim = node_embeddings.shape[1]
    hidden_dim = params["conv1"]["w"].shape[1]
    output_dim = params["fc"]["w"].shape[1]

    n_pad = _round_up(n, _LANES)                 # lanes: Np^2 softmax + attn@h stay lane-dense
    cin_pad = _round_up(input_dim, _LANES)
    ch_pad = _round_up(hidden_dim + 1, _LANES)   # +1 column holds the folded att_dst
    cout_pad = _round_up(output_dim, _LANES)
    b_pad = _round_up(num_graphs, _SUBLANES)

    def pad2(a, rows, cols):
        return jnp.pad(a, ((0, rows - a.shape[0]), (0, cols - a.shape[1])))

    # Embedding lookup (gather glue), zero-padded to a lane-dense [Np, Cin] slab.
    x = pad2(node_embeddings[node_ids].astype(jnp.float32), n_pad, cin_pad)

    # Dense adjacency adj[target, source] with self loops (GATConv add_self_loops=True),
    # built with a scatter (no O(Np^2*E) one-hot GEMM).  Padded nodes keep only a self loop
    # so their softmax rows stay defined; pool_mat zeroes them out.  bf16 halves the DMA.
    src, dst = edge_index[0], edge_index[1]
    diag = jnp.arange(n_pad)
    adj = jnp.zeros((n_pad, n_pad), jnp.float32)
    adj = adj.at[dst, src].set(1.0)
    adj = adj.at[diag, diag].set(1.0)
    adj = adj.astype(jnp.bfloat16)
    # TODO(synk): edge_attr is ignored — GATConv was built without edge_dim, so lin_edge=None.

    # One-hot graph assignment for global_add_pool; padded nodes get batch id -1 (no graph).
    batch_pad = jnp.pad(batch.astype(jnp.int32), (0, n_pad - n), constant_values=-1)
    pool_mat = (jnp.arange(b_pad, dtype=jnp.int32)[:, None] == batch_pad[None, :]
                ).astype(jnp.bfloat16)

    # Per-layer weights: W @ att_dst folded into column `hidden_dim` of the padded W (inside
    # the existing lane padding), MXU operands pre-cast to bf16, biases kept f32.
    dims_in = [cin_pad, ch_pad, ch_pad]
    layer_ops = []
    for li, name in enumerate(("conv1", "conv2", "conv3")):
        p = params[name]
        din = p["w"].shape[0]
        w_aug = pad2(p["w"], dims_in[li], ch_pad)
        w_d = p["w"] @ p["att_dst"].reshape(-1, 1)                    # [din, 1]
        w_aug = w_aug.at[:din, hidden_dim:hidden_dim + 1].set(w_d)
        layer_ops += [w_aug.astype(jnp.bfloat16),
                      pad2(p["att_src"], 1, ch_pad).astype(jnp.bfloat16),
                      pad2(p["bias"], 1, ch_pad)]
    wfc = pad2(params["fc"]["w"], ch_pad, cout_pad).astype(jnp.bfloat16)
    bfc = pad2(params["fc"]["b"], 1, cout_pad)

    out_padded = fused_trace_gnn(x, adj, pool_mat, layer_ops, wfc, bfc, hidden_dim)
    return out_padded[:num_graphs, :output_dim]


if __name__ == "__main__":
    key = jax.random.PRNGKey(0)
    k_emb, k_ids, k_params = jax.random.split(key, 3)

    num_nodes = 16
    num_graphs = 2
    vocab = 10
    input_dim = 32
    hidden_dim = 32
    output_dim = 8

    node_embeddings = jax.random.normal(k_emb, (vocab, input_dim), jnp.float32)
    node_ids = jax.random.randint(k_ids, (num_nodes,), 0, vocab)
    batch = jnp.repeat(jnp.arange(num_graphs, dtype=jnp.int32), num_nodes // num_graphs)

    # deterministic bidirectional chain edges within each graph
    src, dst = [], []
    per = num_nodes // num_graphs
    for g in range(num_graphs):
        base = g * per
        for i in range(per - 1):
            src += [base + i, base + i + 1]
            dst += [base + i + 1, base + i]
    edge_index = jnp.array([src, dst], dtype=jnp.int32)

    params = init_params(k_params, input_dim, hidden_dim, output_dim)

    out = trace_gnn_forward(params, node_ids, edge_index, batch, node_embeddings, num_graphs)
    jax.block_until_ready(out)
    assert out.shape == (num_graphs, output_dim)
    assert bool(jnp.all(jnp.isfinite(out)))
    print("KERNEL_OK")
</pallas_src>

<mosaic_0001>
module attributes {stable_mosaic.version = 11 : i64} {
  func.func @kernel(%arg0: i32, %arg1: memref<128x128xf32, #tpu.memory_space<vmem>>, %arg2: memref<128x128xbf16, #tpu.memory_space<any>>, %arg3: memref<8x128xbf16, #tpu.memory_space<vmem>>, %arg4: memref<128x128xbf16, #tpu.memory_space<vmem>>, %arg5: memref<1x128xbf16, #tpu.memory_space<vmem>>, %arg6: memref<1x128xf32, #tpu.memory_space<vmem>>, %arg7: memref<128x128xbf16, #tpu.memory_space<vmem>>, %arg8: memref<1x128xbf16, #tpu.memory_space<vmem>>, %arg9: memref<1x128xf32, #tpu.memory_space<vmem>>, %arg10: memref<128x128xbf16, #tpu.memory_space<vmem>>, %arg11: memref<1x128xbf16, #tpu.memory_space<vmem>>, %arg12: memref<1x128xf32, #tpu.memory_space<vmem>>, %arg13: memref<128x128xbf16, #tpu.memory_space<vmem>>, %arg14: memref<1x128xf32, #tpu.memory_space<vmem>>, %arg15: memref<8x128xf32, #tpu.memory_space<vmem>>, %arg16: memref<128x128xbf16, #tpu.memory_space<vmem>>, %arg17: memref<128x1xf32, #tpu.memory_space<vmem>>, %arg18: memref<128x128xf32, #tpu.memory_space<vmem>>, %arg19: memref<128x128xf32, #tpu.memory_space<vmem>>, %arg20: memref<2x128x128xbf16, #tpu.memory_space<vmem>>, %arg21: memref<2x!tpu.dma_semaphore, #tpu.memory_space<semaphore_mem>>) attributes {dimension_semantics = [#tpu.dimension_semantics<arbitrary>], iteration_bounds = array<i64: 1>, scalar_prefetch = 0 : i64, scratch_operands = 6 : i64, tpu.core_type = #tpu.core_type<tc>, window_params = [{pipeline_mode = #tpu.pipeline_mode<synchronous>, transform_indices = @transform_0, window_bounds = array<i64: 128, 128>}, {}, {pipeline_mode = #tpu.pipeline_mode<synchronous>, transform_indices = @transform_2, window_bounds = array<i64: 8, 128>}, {pipeline_mode = #tpu.pipeline_mode<synchronous>, transform_indices = @transform_3, window_bounds = array<i64: 128, 128>}, {pipeline_mode = #tpu.pipeline_mode<synchronous>, transform_indices = @transform_4, window_bounds = array<i64: 1, 128>}, {pipeline_mode = #tpu.pipeline_mode<synchronous>, transform_indices = @transform_5, window_bounds = array<i64: 1, 128>}, {pipeline_mode = #tpu.pipeline_mode<synchronous>, transform_indices = @transform_6, window_bounds = array<i64: 128, 128>}, {pipeline_mode = #tpu.pipeline_mode<synchronous>, transform_indices = @transform_7, window_bounds = array<i64: 1, 128>}, {pipeline_mode = #tpu.pipeline_mode<synchronous>, transform_indices = @transform_8, window_bounds = array<i64: 1, 128>}, {pipeline_mode = #tpu.pipeline_mode<synchronous>, transform_indices = @transform_9, window_bounds = array<i64: 128, 128>}, {pipeline_mode = #tpu.pipeline_mode<synchronous>, transform_indices = @transform_10, window_bounds = array<i64: 1, 128>}, {pipeline_mode = #tpu.pipeline_mode<synchronous>, transform_indices = @transform_11, window_bounds = array<i64: 1, 128>}, {pipeline_mode = #tpu.pipeline_mode<synchronous>, transform_indices = @transform_12, window_bounds = array<i64: 128, 128>}, {pipeline_mode = #tpu.pipeline_mode<synchronous>, transform_indices = @transform_13, window_bounds = array<i64: 1, 128>}, {pipeline_mode = #tpu.pipeline_mode<synchronous>, transform_indices = @transform_14, window_bounds = array<i64: 8, 128>}]} {
    %c0_i32 = arith.constant 0 : i32
    %0 = tpu.assume_multiple %c0_i32, 128 : i32
    %c0_i32_0 = arith.constant 0 : i32
    %c0_i32_1 = arith.constant 0 : i32
    %c0_i32_2 = arith.constant 0 : i32
    %1 = tpu.memref_slice %arg2[%0, %c0_i32_2] : memref<128x128xbf16, #tpu.memory_space<any>> -> memref<128x128xbf16, #tpu.memory_space<any>>
    %c0_i32_3 = arith.constant 0 : i32
    %c0_i32_4 = arith.constant 0 : i32
    %2 = tpu.memref_slice %arg20[%c0_i32_0, %c0_i32_3, %c0_i32_4] : memref<2x128x128xbf16, #tpu.memory_space<vmem>> -> memref<1x128x128xbf16, #tpu.memory_space<vmem>>
    %3 = tpu.memref_squeeze %2 : memref<1x128x128xbf16, #tpu.memory_space<vmem>> -> memref<128x128xbf16, #tpu.memory_space<vmem>>
    %4 = tpu.memref_slice %arg21[%c0_i32_1] : memref<2x!tpu.dma_semaphore, #tpu.memory_space<semaphore_mem>> -> memref<1x!tpu.dma_semaphore, #tpu.memory_space<semaphore_mem>>
    %5 = tpu.memref_squeeze %4 : memref<1x!tpu.dma_semaphore, #tpu.memory_space<semaphore_mem>> -> memref<!tpu.dma_semaphore, #tpu.memory_space<semaphore_mem>>
    tpu.enqueue_dma source(%1 : memref<128x128xbf16, #tpu.memory_space<any>>) target(%3 : memref<128x128xbf16, #tpu.memory_space<vmem>>) target_semaphore(%5 : memref<!tpu.dma_semaphore, #tpu.memory_space<semaphore_mem>>)
    %c0 = arith.constant 0 : index
    %c0_5 = arith.constant 0 : index
    %6 = vector.load %arg1[%c0, %c0_5] : memref<128x128xf32, #tpu.memory_space<vmem>>, vector<128x128xf32>
    %7 = arith.truncf %6 : vector<128x128xf32> to vector<128x128xbf16>
    %c0_6 = arith.constant 0 : index
    %c0_7 = arith.constant 0 : index
    %8 = vector.load %arg4[%c0_6, %c0_7] : memref<128x128xbf16, #tpu.memory_space<vmem>>, vector<128x128xbf16>
    %cst = arith.constant dense<0.000000e+00> : vector<128x128xf32>
    %9 = tpu.matmul %7, %8, %cst {dimension_numbers = #tpu.dot_dimension_numbers<[1], [0], [0], [1], [0, 0, 1, 1], [], []>} : vector<128x128xbf16>, vector<128x128xbf16>, vector<128x128xf32> -> vector<128x128xf32>
    %10 = arith.truncf %9 : vector<128x128xf32> to vector<128x128xbf16>
    %c0_8 = arith.constant 0 : index
    %c0_9 = arith.constant 0 : index
    %11 = vector.load %arg16[%c0_8, %c0_9] : memref<128x128xbf16, #tpu.memory_space<vmem>>, vector<128x128xbf16>
    tpu.vector_store %arg16[%c0_8, %c0_9], %10 {strides = array<i32>} : memref<128x128xbf16, #tpu.memory_space<vmem>>, vector<128x128xbf16>,
    %12 = vector.extract_strided_slice %9 {offsets = [0, 32], sizes = [128, 1], strides = [1, 1]} : vector<128x128xf32> to vector<128x1xf32>
    %c0_10 = arith.constant 0 : index
    %c0_11 = arith.constant 0 : index
    %13 = vector.load %arg17[%c0_10, %c0_11] : memref<128x1xf32, #tpu.memory_space<vmem>>, vector<128x1xf32>
    tpu.vector_store %arg17[%c0_10, %c0_11], %12 {strides = array<i32>} : memref<128x1xf32, #tpu.memory_space<vmem>>, vector<128x1xf32>,
    %c0_12 = arith.constant 0 : index
    %c0_13 = arith.constant 0 : index
    %14 = vector.load %arg5[%c0_12, %c0_13] : memref<1x128xbf16, #tpu.memory_space<vmem>>, vector<1x128xbf16>
    %cst_14 = arith.constant dense<0.000000e+00> : vector<1x128xf32>
    %15 = tpu.matmul %14, %10, %cst_14 {dimension_numbers = #tpu.dot_dimension_numbers<[1], [1], [0], [0], [0, 0, 1, 0], [], []>} : vector<1x128xbf16>, vector<128x128xbf16>, vector<1x128xf32> -> vector<1x128xf32>
    %c0_15 = arith.constant 0 : index
    %c0_16 = arith.constant 0 : index
    %16 = vector.load %arg6[%c0_15, %c0_16] : memref<1x128xf32, #tpu.memory_space<vmem>>, vector<1x128xf32>
    %c0_i32_17 = arith.constant 0 : i32
    %c1_i32 = arith.constant 1 : i32
    %17 = arith.muli %c0_i32_17, %c1_i32 : i32
    %c0_i32_18 = arith.constant 0 : i32
    %18 = arith.addi %c0_i32_18, %17 : i32
    %c2_i32 = arith.constant 2 : i32
    %c0_i32_19 = arith.constant 0 : i32
    %19 = arith.cmpi eq, %c2_i32, %c0_i32_19 : i32
    %c1_i32_20 = arith.constant 1 : i32
    %20 = arith.select %19, %c1_i32_20, %c2_i32 : i32
    %21 = arith.remsi %18, %20 : i32
    %c0_i32_21 = arith.constant 0 : i32
    %22 = arith.cmpi ne, %21, %c0_i32_21 : i32
    %c0_i32_22 = arith.constant 0 : i32
    %23 = arith.cmpi slt, %21, %c0_i32_22 : i32
    %c0_i32_23 = arith.constant 0 : i32
    %24 = arith.cmpi slt, %20, %c0_i32_23 : i32
    %25 = arith.xori %23, %24 : i1
    %26 = arith.andi %25, %22 : i1
    %27 = arith.addi %21, %20 : i32
    %28 = arith.select %26, %27, %21 : i32
    %c0_i32_24 = arith.constant 0 : i32
    %c0_i32_25 = arith.constant 0 : i32
    %29 = tpu.memref_slice %arg2[%c0_i32_24, %c0_i32_25] : memref<128x128xbf16, #tpu.memory_space<any>> -> memref<128x128xbf16, #tpu.memory_space<any>>
    %c0_i32_26 = arith.constant 0 : i32
    %c0_i32_27 = arith.constant 0 : i32
    %30 = tpu.memref_slice %arg20[%28, %c0_i32_26, %c0_i32_27] : memref<2x128x128xbf16, #tpu.memory_space<vmem>> -> memref<1x128x128xbf16, #tpu.memory_space<vmem>>
    %31 = tpu.memref_squeeze %30 : memref<1x128x128xbf16, #tpu.memory_space<vmem>> -> memref<128x128xbf16, #tpu.memory_space<vmem>>
    %32 = tpu.memref_slice %arg21[%28] : memref<2x!tpu.dma_semaphore, #tpu.memory_space<semaphore_mem>> -> memref<1x!tpu.dma_semaphore, #tpu.memory_space<semaphore_mem>>
    %33 = tpu.memref_squeeze %32 : memref<1x!tpu.dma_semaphore, #tpu.memory_space<semaphore_mem>> -> memref<!tpu.dma_semaphore, #tpu.memory_space<semaphore_mem>>
    tpu.wait_dma2 semaphore(%33 : memref<!tpu.dma_semaphore, #tpu.memory_space<semaphore_mem>>) src(%29 : memref<128x128xbf16, #tpu.memory_space<any>>) dst(%31 : memref<128x128xbf16, #tpu.memory_space<vmem>>)
    %c1_i32_28 = arith.constant 1 : i32
    %34 = arith.addi %18, %c1_i32_28 : i32
    %c1_i32_29 = arith.constant 1 : i32
    %35 = arith.cmpi slt, %34, %c1_i32_29 : i32
    %36 = arith.extui %35 : i1 to i32
    %c0_i32_30 = arith.constant 0 : i32
    %37 = arith.cmpi ne, %36, %c0_i32_30 : i32
    scf.if %37 {
      %c1_i32_209 = arith.constant 1 : i32
      %361 = arith.addi %18, %c1_i32_209 : i32
      %c1_i32_210 = arith.constant 1 : i32
      %362 = arith.subi %c1_i32_210, %28 : i32
      %c128_i32_211 = arith.constant 128 : i32
      %363 = arith.muli %361, %c128_i32_211 : i32
      %364 = tpu.assume_multiple %363, 128 : i32
      %c0_i32_212 = arith.constant 0 : i32
      %365 = tpu.memref_slice %arg2[%364, %c0_i32_212] : memref<128x128xbf16, #tpu.memory_space<any>> -> memref<128x128xbf16, #tpu.memory_space<any>>
      %c0_i32_213 = arith.constant 0 : i32
      %c0_i32_214 = arith.constant 0 : i32
      %366 = tpu.memref_slice %arg20[%362, %c0_i32_213, %c0_i32_214] : memref<2x128x128xbf16, #tpu.memory_space<vmem>> -> memref<1x128x128xbf16, #tpu.memory_space<vmem>>
      %367 = tpu.memref_squeeze %366 : memref<1x128x128xbf16, #tpu.memory_space<vmem>> -> memref<128x128xbf16, #tpu.memory_space<vmem>>
      %368 = tpu.memref_slice %arg21[%362] : memref<2x!tpu.dma_semaphore, #tpu.memory_space<semaphore_mem>> -> memref<1x!tpu.dma_semaphore, #tpu.memory_space<semaphore_mem>>
      %369 = tpu.memref_squeeze %368 : memref<1x!tpu.dma_semaphore, #tpu.memory_space<semaphore_mem>> -> memref<!tpu.dma_semaphore, #tpu.memory_space<semaphore_mem>>
      tpu.enqueue_dma source(%365 : memref<128x128xbf16, #tpu.memory_space<any>>) target(%367 : memref<128x128xbf16, #tpu.memory_space<vmem>>) target_semaphore(%369 : memref<!tpu.dma_semaphore, #tpu.memory_space<semaphore_mem>>)
    } else {
    }
    %c128_i32 = arith.constant 128 : i32
    %38 = arith.muli %18, %c128_i32 : i32
    %39 = tpu.assume_multiple %38, 128 : i32
    %40 = arith.index_cast %39 : i32 to index
    %c0_31 = arith.constant 0 : index
    %41 = vector.load %arg17[%40, %c0_31] : memref<128x1xf32, #tpu.memory_space<vmem>>, vector<128x1xf32>
    %42 = vector.broadcast %41 : vector<128x1xf32> to vector<128x128xf32>
    %43 = vector.broadcast %15 : vector<1x128xf32> to vector<128x128xf32>
    %44 = arith.addf %42, %43 : vector<128x128xf32>
    %cst_32 = arith.constant 0.000000e+00 : f32
    %45 = vector.broadcast %cst_32 : f32 to vector<128x128xf32>
    %46 = arith.cmpf ogt, %44, %45 : vector<128x128xf32>
    %cst_33 = arith.constant 2.000000e-01 : f32
    %47 = vector.broadcast %cst_33 : f32 to vector<128x128xf32>
    %48 = arith.mulf %47, %44 : vector<128x128xf32>
    %49 = arith.select %46, %44, %48 : vector<128x128xi1>, vector<128x128xf32>
    %50 = arith.index_cast %28 : i32 to index
    %c0_34 = arith.constant 0 : index
    %c0_35 = arith.constant 0 : index
    %51 = vector.load %arg20[%50, %c0_34, %c0_35] : memref<2x128x128xbf16, #tpu.memory_space<vmem>>, vector<1x128x128xbf16>
    %52 = vector.shape_cast %51 : vector<1x128x128xbf16> to vector<128x128xbf16>
    %cst_36 = arith.constant 0.000000e+00 : bf16
    %53 = vector.broadcast %cst_36 : bf16 to vector<128x128xbf16>
    %54 = arith.cmpf ogt, %52, %53 : vector<128x128xbf16>
    %cst_37 = arith.constant -1.000000e+30 : f32
    %55 = vector.broadcast %cst_37 : f32 to vector<128x128xf32>
    %56 = arith.select %54, %49, %55 : vector<128x128xi1>, vector<128x128xf32>
    %cst_38 = arith.constant dense<0xFF800000> : vector<128xf32>
    %57 = vector.multi_reduction <maximumf>, %56, %cst_38 [1] : vector<128x128xf32> to vector<128xf32>
    %58 = vector.shape_cast %57 : vector<128xf32> to vector<128x1xf32>
    %59 = vector.broadcast %58 : vector<128x1xf32> to vector<128x128xf32>
    %60 = arith.subf %56, %59 : vector<128x128xf32>
    %61 = math.exp %60 : vector<128x128xf32>
    %cst_39 = arith.constant dense<0.000000e+00> : vector<128xf32>
    %62 = vector.multi_reduction <add>, %61, %cst_39 [1] : vector<128x128xf32> to vector<128xf32>
    %63 = vector.shape_cast %62 : vector<128xf32> to vector<128x1xf32>
    %64 = tpu.reciprocal %63 {approx = true} : vector<128x1xf32> -> vector<128x1xf32>
    %65 = vector.broadcast %64 : vector<128x1xf32> to vector<128x128xf32>
    %66 = arith.mulf %61, %65 : vector<128x128xf32>
    %67 = arith.truncf %66 : vector<128x128xf32> to vector<128x128xbf16>
    %c0_40 = arith.constant 0 : index
    %c0_41 = arith.constant 0 : index
    %68 = vector.load %arg16[%c0_40, %c0_41] : memref<128x128xbf16, #tpu.memory_space<vmem>>, vector<128x128xbf16>
    %cst_42 = arith.constant dense<0.000000e+00> : vector<128x128xf32>
    %69 = tpu.matmul %67, %68, %cst_42 {dimension_numbers = #tpu.dot_dimension_numbers<[1], [0], [0], [1], [0, 0, 1, 1], [], []>} : vector<128x128xbf16>, vector<128x128xbf16>, vector<128x128xf32> -> vector<128x128xf32>
    %70 = vector.broadcast %16 : vector<1x128xf32> to vector<128x128xf32>
    %71 = arith.addf %69, %70 : vector<128x128xf32>
    %cst_43 = arith.constant 5.000000e-01 : f32
    %72 = vector.broadcast %cst_43 : f32 to vector<128x128xf32>
    %73 = arith.mulf %72, %71 : vector<128x128xf32>
    %cst_44 = arith.constant 0.707106769 : f32
    %74 = vector.broadcast %cst_44 : f32 to vector<128x128xf32>
    %75 = arith.mulf %71, %74 : vector<128x128xf32>
    %cst_45 = arith.constant 0.000000e+00 : f32
    %76 = vector.broadcast %cst_45 : f32 to vector<128x128xf32>
    %77 = arith.cmpf oge, %75, %76 : vector<128x128xf32>
    %cst_46 = arith.constant 1.000000e+00 : f32
    %cst_47 = arith.constant -1.000000e+00 : f32
    %78 = vector.broadcast %cst_46 : f32 to vector<128x128xf32>
    %79 = vector.broadcast %cst_47 : f32 to vector<128x128xf32>
    %80 = arith.select %77, %78, %79 : vector<128x128xi1>, vector<128x128xf32>
    %81 = math.absf %75 : vector<128x128xf32>
    %cst_48 = arith.constant 0.327591091 : f32
    %82 = vector.broadcast %cst_48 : f32 to vector<128x128xf32>
    %83 = arith.mulf %82, %81 : vector<128x128xf32>
    %cst_49 = arith.constant 1.000000e+00 : f32
    %84 = vector.broadcast %cst_49 : f32 to vector<128x128xf32>
    %85 = arith.addf %84, %83 : vector<128x128xf32>
    %cst_50 = arith.constant 1.000000e+00 : f32
    %86 = vector.broadcast %cst_50 : f32 to vector<128x128xf32>
    %87 = arith.divf %86, %85 : vector<128x128xf32>
    %cst_51 = arith.constant 1.06140542 : f32
    %88 = vector.broadcast %cst_51 : f32 to vector<128x128xf32>
    %89 = arith.mulf %87, %88 : vector<128x128xf32>
    %cst_52 = arith.constant -1.45315206 : f32
    %90 = vector.broadcast %cst_52 : f32 to vector<128x128xf32>
    %91 = arith.addf %90, %89 : vector<128x128xf32>
    %92 = arith.mulf %87, %91 : vector<128x128xf32>
    %cst_53 = arith.constant 1.42141378 : f32
    %93 = vector.broadcast %cst_53 : f32 to vector<128x128xf32>
    %94 = arith.addf %93, %92 : vector<128x128xf32>
    %95 = arith.mulf %87, %94 : vector<128x128xf32>
    %cst_54 = arith.constant -0.284496725 : f32
    %96 = vector.broadcast %cst_54 : f32 to vector<128x128xf32>
    %97 = arith.addf %96, %95 : vector<128x128xf32>
    %98 = arith.mulf %87, %97 : vector<128x128xf32>
    %cst_55 = arith.constant 0.254829586 : f32
    %99 = vector.broadcast %cst_55 : f32 to vector<128x128xf32>
    %100 = arith.addf %99, %98 : vector<128x128xf32>
    %101 = arith.mulf %87, %100 : vector<128x128xf32>
    %cst_56 = arith.constant 0.000000e+00 : f32
    %102 = vector.broadcast %cst_56 : f32 to vector<128x128xf32>
    %103 = arith.subf %102, %81 : vector<128x128xf32>
    %104 = arith.mulf %103, %81 : vector<128x128xf32>
    %105 = math.exp %104 : vector<128x128xf32>
    %106 = arith.mulf %101, %105 : vector<128x128xf32>
    %cst_57 = arith.constant 1.000000e+00 : f32
    %107 = vector.broadcast %cst_57 : f32 to vector<128x128xf32>
    %108 = arith.subf %107, %106 : vector<128x128xf32>
    %109 = arith.mulf %80, %108 : vector<128x128xf32>
    %cst_58 = arith.constant 1.000000e+00 : f32
    %110 = vector.broadcast %cst_58 : f32 to vector<128x128xf32>
    %111 = arith.addf %110, %109 : vector<128x128xf32>
    %112 = arith.mulf %73, %111 : vector<128x128xf32>
    %113 = arith.index_cast %39 : i32 to index
    %c0_59 = arith.constant 0 : index
    %114 = vector.load %arg18[%113, %c0_59] : memref<128x128xf32, #tpu.memory_space<vmem>>, vector<128x128xf32>
    tpu.vector_store %arg18[%113, %c0_59], %112 {strides = array<i32>} : memref<128x128xf32, #tpu.memory_space<vmem>>, vector<128x128xf32>,
    %c1_i32_60 = arith.constant 1 : i32
    %c0_i32_61 = arith.constant 0 : i32
    %115 = tpu.assume_multiple %c0_i32_61, 128 : i32
    %c0_i32_62 = arith.constant 0 : i32
    %c0_i32_63 = arith.constant 0 : i32
    %c0_i32_64 = arith.constant 0 : i32
    %116 = tpu.memref_slice %arg2[%115, %c0_i32_64] : memref<128x128xbf16, #tpu.memory_space<any>> -> memref<128x128xbf16, #tpu.memory_space<any>>
    %c0_i32_65 = arith.constant 0 : i32
    %c0_i32_66 = arith.constant 0 : i32
    %117 = tpu.memref_slice %arg20[%c0_i32_62, %c0_i32_65, %c0_i32_66] : memref<2x128x128xbf16, #tpu.memory_space<vmem>> -> memref<1x128x128xbf16, #tpu.memory_space<vmem>>
    %118 = tpu.memref_squeeze %117 : memref<1x128x128xbf16, #tpu.memory_space<vmem>> -> memref<128x128xbf16, #tpu.memory_space<vmem>>
    %119 = tpu.memref_slice %arg21[%c0_i32_63] : memref<2x!tpu.dma_semaphore, #tpu.memory_space<semaphore_mem>> -> memref<1x!tpu.dma_semaphore, #tpu.memory_space<semaphore_mem>>
    %120 = tpu.memref_squeeze %119 : memref<1x!tpu.dma_semaphore, #tpu.memory_space<semaphore_mem>> -> memref<!tpu.dma_semaphore, #tpu.memory_space<semaphore_mem>>
    tpu.enqueue_dma source(%116 : memref<128x128xbf16, #tpu.memory_space<any>>) target(%118 : memref<128x128xbf16, #tpu.memory_space<vmem>>) target_semaphore(%120 : memref<!tpu.dma_semaphore, #tpu.memory_space<semaphore_mem>>)
    %c0_67 = arith.constant 0 : index
    %c0_68 = arith.constant 0 : index
    %121 = vector.load %arg18[%c0_67, %c0_68] : memref<128x128xf32, #tpu.memory_space<vmem>>, vector<128x128xf32>
    %122 = arith.truncf %121 : vector<128x128xf32> to vector<128x128xbf16>
    %c0_69 = arith.constant 0 : index
    %c0_70 = arith.constant 0 : index
    %123 = vector.load %arg7[%c0_69, %c0_70] : memref<128x128xbf16, #tpu.memory_space<vmem>>, vector<128x128xbf16>
    %cst_71 = arith.constant dense<0.000000e+00> : vector<128x128xf32>
    %124 = tpu.matmul %122, %123, %cst_71 {dimension_numbers = #tpu.dot_dimension_numbers<[1], [0], [0], [1], [0, 0, 1, 1], [], []>} : vector<128x128xbf16>, vector<128x128xbf16>, vector<128x128xf32> -> vector<128x128xf32>
    %125 = arith.truncf %124 : vector<128x128xf32> to vector<128x128xbf16>
    %c0_72 = arith.constant 0 : index
    %c0_73 = arith.constant 0 : index
    %126 = vector.load %arg16[%c0_72, %c0_73] : memref<128x128xbf16, #tpu.memory_space<vmem>>, vector<128x128xbf16>
    tpu.vector_store %arg16[%c0_72, %c0_73], %125 {strides = array<i32>} : memref<128x128xbf16, #tpu.memory_space<vmem>>, vector<128x128xbf16>,
    %127 = vector.extract_strided_slice %124 {offsets = [0, 32], sizes = [128, 1], strides = [1, 1]} : vector<128x128xf32> to vector<128x1xf32>
    %c0_74 = arith.constant 0 : index
    %c0_75 = arith.constant 0 : index
    %128 = vector.load %arg17[%c0_74, %c0_75] : memref<128x1xf32, #tpu.memory_space<vmem>>, vector<128x1xf32>
    tpu.vector_store %arg17[%c0_74, %c0_75], %127 {strides = array<i32>} : memref<128x1xf32, #tpu.memory_space<vmem>>, vector<128x1xf32>,
    %c0_76 = arith.constant 0 : index
    %c0_77 = arith.constant 0 : index
    %129 = vector.load %arg8[%c0_76, %c0_77] : memref<1x128xbf16, #tpu.memory_space<vmem>>, vector<1x128xbf16>
    %cst_78 = arith.constant dense<0.000000e+00> : vector<1x128xf32>
    %130 = tpu.matmul %129, %125, %cst_78 {dimension_numbers = #tpu.dot_dimension_numbers<[1], [1], [0], [0], [0, 0, 1, 0], [], []>} : vector<1x128xbf16>, vector<128x128xbf16>, vector<1x128xf32> -> vector<1x128xf32>
    %c0_79 = arith.constant 0 : index
    %c0_80 = arith.constant 0 : index
    %131 = vector.load %arg9[%c0_79, %c0_80] : memref<1x128xf32, #tpu.memory_space<vmem>>, vector<1x128xf32>
    %c0_i32_81 = arith.constant 0 : i32
    %c1_i32_82 = arith.constant 1 : i32
    %132 = arith.muli %c0_i32_81, %c1_i32_82 : i32
    %c0_i32_83 = arith.constant 0 : i32
    %133 = arith.addi %c0_i32_83, %132 : i32
    %c2_i32_84 = arith.constant 2 : i32
    %c0_i32_85 = arith.constant 0 : i32
    %134 = arith.cmpi eq, %c2_i32_84, %c0_i32_85 : i32
    %c1_i32_86 = arith.constant 1 : i32
    %135 = arith.select %134, %c1_i32_86, %c2_i32_84 : i32
    %136 = arith.remsi %133, %135 : i32
    %c0_i32_87 = arith.constant 0 : i32
    %137 = arith.cmpi ne, %136, %c0_i32_87 : i32
    %c0_i32_88 = arith.constant 0 : i32
    %138 = arith.cmpi slt, %136, %c0_i32_88 : i32
    %c0_i32_89 = arith.constant 0 : i32
    %139 = arith.cmpi slt, %135, %c0_i32_89 : i32
    %140 = arith.xori %138, %139 : i1
    %141 = arith.andi %140, %137 : i1
    %142 = arith.addi %136, %135 : i32
    %143 = arith.select %141, %142, %136 : i32
    %c0_i32_90 = arith.constant 0 : i32
    %c0_i32_91 = arith.constant 0 : i32
    %144 = tpu.memref_slice %arg2[%c0_i32_90, %c0_i32_91] : memref<128x128xbf16, #tpu.memory_space<any>> -> memref<128x128xbf16, #tpu.memory_space<any>>
    %c0_i32_92 = arith.constant 0 : i32
    %c0_i32_93 = arith.constant 0 : i32
    %145 = tpu.memref_slice %arg20[%143, %c0_i32_92, %c0_i32_93] : memref<2x128x128xbf16, #tpu.memory_space<vmem>> -> memref<1x128x128xbf16, #tpu.memory_space<vmem>>
    %146 = tpu.memref_squeeze %145 : memref<1x128x128xbf16, #tpu.memory_space<vmem>> -> memref<128x128xbf16, #tpu.memory_space<vmem>>
    %147 = tpu.memref_slice %arg21[%143] : memref<2x!tpu.dma_semaphore, #tpu.memory_space<semaphore_mem>> -> memref<1x!tpu.dma_semaphore, #tpu.memory_space<semaphore_mem>>
    %148 = tpu.memref_squeeze %147 : memref<1x!tpu.dma_semaphore, #tpu.memory_space<semaphore_mem>> -> memref<!tpu.dma_semaphore, #tpu.memory_space<semaphore_mem>>
    tpu.wait_dma2 semaphore(%148 : memref<!tpu.dma_semaphore, #tpu.memory_space<semaphore_mem>>) src(%144 : memref<128x128xbf16, #tpu.memory_space<any>>) dst(%146 : memref<128x128xbf16, #tpu.memory_space<vmem>>)
    %c1_i32_94 = arith.constant 1 : i32
    %149 = arith.addi %133, %c1_i32_94 : i32
    %c1_i32_95 = arith.constant 1 : i32
    %150 = arith.cmpi slt, %149, %c1_i32_95 : i32
    %151 = arith.extui %150 : i1 to i32
    %c0_i32_96 = arith.constant 0 : i32
    %152 = arith.cmpi ne, %151, %c0_i32_96 : i32
    scf.if %152 {
      %c1_i32_209 = arith.constant 1 : i32
      %361 = arith.addi %133, %c1_i32_209 : i32
      %c1_i32_210 = arith.constant 1 : i32
      %362 = arith.subi %c1_i32_210, %143 : i32
      %c128_i32_211 = arith.constant 128 : i32
      %363 = arith.muli %361, %c128_i32_211 : i32
      %364 = tpu.assume_multiple %363, 128 : i32
      %c0_i32_212 = arith.constant 0 : i32
      %365 = tpu.memref_slice %arg2[%364, %c0_i32_212] : memref<128x128xbf16, #tpu.memory_space<any>> -> memref<128x128xbf16, #tpu.memory_space<any>>
      %c0_i32_213 = arith.constant 0 : i32
      %c0_i32_214 = arith.constant 0 : i32
      %366 = tpu.memref_slice %arg20[%362, %c0_i32_213, %c0_i32_214] : memref<2x128x128xbf16, #tpu.memory_space<vmem>> -> memref<1x128x128xbf16, #tpu.memory_space<vmem>>
      %367 = tpu.memref_squeeze %366 : memref<1x128x128xbf16, #tpu.memory_space<vmem>> -> memref<128x128xbf16, #tpu.memory_space<vmem>>
      %368 = tpu.memref_slice %arg21[%362] : memref<2x!tpu.dma_semaphore, #tpu.memory_space<semaphore_mem>> -> memref<1x!tpu.dma_semaphore, #tpu.memory_space<semaphore_mem>>
      %369 = tpu.memref_squeeze %368 : memref<1x!tpu.dma_semaphore, #tpu.memory_space<semaphore_mem>> -> memref<!tpu.dma_semaphore, #tpu.memory_space<semaphore_mem>>
      tpu.enqueue_dma source(%365 : memref<128x128xbf16, #tpu.memory_space<any>>) target(%367 : memref<128x128xbf16, #tpu.memory_space<vmem>>) target_semaphore(%369 : memref<!tpu.dma_semaphore, #tpu.memory_space<semaphore_mem>>)
    } else {
    }
    %c128_i32_97 = arith.constant 128 : i32
    %153 = arith.muli %133, %c128_i32_97 : i32
    %154 = tpu.assume_multiple %153, 128 : i32
    %155 = arith.index_cast %154 : i32 to index
    %c0_98 = arith.constant 0 : index
    %156 = vector.load %arg17[%155, %c0_98] : memref<128x1xf32, #tpu.memory_space<vmem>>, vector<128x1xf32>
    %157 = vector.broadcast %156 : vector<128x1xf32> to vector<128x128xf32>
    %158 = vector.broadcast %130 : vector<1x128xf32> to vector<128x128xf32>
    %159 = arith.addf %157, %158 : vector<128x128xf32>
    %cst_99 = arith.constant 0.000000e+00 : f32
    %160 = vector.broadcast %cst_99 : f32 to vector<128x128xf32>
    %161 = arith.cmpf ogt, %159, %160 : vector<128x128xf32>
    %cst_100 = arith.constant 2.000000e-01 : f32
    %162 = vector.broadcast %cst_100 : f32 to vector<128x128xf32>
    %163 = arith.mulf %162, %159 : vector<128x128xf32>
    %164 = arith.select %161, %159, %163 : vector<128x128xi1>, vector<128x128xf32>
    %165 = arith.index_cast %143 : i32 to index
    %c0_101 = arith.constant 0 : index
    %c0_102 = arith.constant 0 : index
    %166 = vector.load %arg20[%165, %c0_101, %c0_102] : memref<2x128x128xbf16, #tpu.memory_space<vmem>>, vector<1x128x128xbf16>
    %167 = vector.shape_cast %166 : vector<1x128x128xbf16> to vector<128x128xbf16>
    %cst_103 = arith.constant 0.000000e+00 : bf16
    %168 = vector.broadcast %cst_103 : bf16 to vector<128x128xbf16>
    %169 = arith.cmpf ogt, %167, %168 : vector<128x128xbf16>
    %cst_104 = arith.constant -1.000000e+30 : f32
    %170 = vector.broadcast %cst_104 : f32 to vector<128x128xf32>
    %171 = arith.select %169, %164, %170 : vector<128x128xi1>, vector<128x128xf32>
    %cst_105 = arith.constant dense<0xFF800000> : vector<128xf32>
    %172 = vector.multi_reduction <maximumf>, %171, %cst_105 [1] : vector<128x128xf32> to vector<128xf32>
    %173 = vector.shape_cast %172 : vector<128xf32> to vector<128x1xf32>
    %174 = vector.broadcast %173 : vector<128x1xf32> to vector<128x128xf32>
    %175 = arith.subf %171, %174 : vector<128x128xf32>
    %176 = math.exp %175 : vector<128x128xf32>
    %cst_106 = arith.constant dense<0.000000e+00> : vector<128xf32>
    %177 = vector.multi_reduction <add>, %176, %cst_106 [1] : vector<128x128xf32> to vector<128xf32>
    %178 = vector.shape_cast %177 : vector<128xf32> to vector<128x1xf32>
    %179 = tpu.reciprocal %178 {approx = true} : vector<128x1xf32> -> vector<128x1xf32>
    %180 = vector.broadcast %179 : vector<128x1xf32> to vector<128x128xf32>
    %181 = arith.mulf %176, %180 : vector<128x128xf32>
    %182 = arith.truncf %181 : vector<128x128xf32> to vector<128x128xbf16>
    %c0_107 = arith.constant 0 : index
    %c0_108 = arith.constant 0 : index
    %183 = vector.load %arg16[%c0_107, %c0_108] : memref<128x128xbf16, #tpu.memory_space<vmem>>, vector<128x128xbf16>
    %cst_109 = arith.constant dense<0.000000e+00> : vector<128x128xf32>
    %184 = tpu.matmul %182, %183, %cst_109 {dimension_numbers = #tpu.dot_dimension_numbers<[1], [0], [0], [1], [0, 0, 1, 1], [], []>} : vector<128x128xbf16>, vector<128x128xbf16>, vector<128x128xf32> -> vector<128x128xf32>
    %185 = vector.broadcast %131 : vector<1x128xf32> to vector<128x128xf32>
    %186 = arith.addf %184, %185 : vector<128x128xf32>
    %cst_110 = arith.constant 5.000000e-01 : f32
    %187 = vector.broadcast %cst_110 : f32 to vector<128x128xf32>
    %188 = arith.mulf %187, %186 : vector<128x128xf32>
    %cst_111 = arith.constant 0.707106769 : f32
    %189 = vector.broadcast %cst_111 : f32 to vector<128x128xf32>
    %190 = arith.mulf %186, %189 : vector<128x128xf32>
    %cst_112 = arith.constant 0.000000e+00 : f32
    %191 = vector.broadcast %cst_112 : f32 to vector<128x128xf32>
    %192 = arith.cmpf oge, %190, %191 : vector<128x128xf32>
    %cst_113 = arith.constant 1.000000e+00 : f32
    %cst_114 = arith.constant -1.000000e+00 : f32
    %193 = vector.broadcast %cst_113 : f32 to vector<128x128xf32>
    %194 = vector.broadcast %cst_114 : f32 to vector<128x128xf32>
    %195 = arith.select %192, %193, %194 : vector<128x128xi1>, vector<128x128xf32>
    %196 = math.absf %190 : vector<128x128xf32>
    %cst_115 = arith.constant 0.327591091 : f32
    %197 = vector.broadcast %cst_115 : f32 to vector<128x128xf32>
    %198 = arith.mulf %197, %196 : vector<128x128xf32>
    %cst_116 = arith.constant 1.000000e+00 : f32
    %199 = vector.broadcast %cst_116 : f32 to vector<128x128xf32>
    %200 = arith.addf %199, %198 : vector<128x128xf32>
    %cst_117 = arith.constant 1.000000e+00 : f32
    %201 = vector.broadcast %cst_117 : f32 to vector<128x128xf32>
    %202 = arith.divf %201, %200 : vector<128x128xf32>
    %cst_118 = arith.constant 1.06140542 : f32
    %203 = vector.broadcast %cst_118 : f32 to vector<128x128xf32>
    %204 = arith.mulf %202, %203 : vector<128x128xf32>
    %cst_119 = arith.constant -1.45315206 : f32
    %205 = vector.broadcast %cst_119 : f32 to vector<128x128xf32>
    %206 = arith.addf %205, %204 : vector<128x128xf32>
    %207 = arith.mulf %202, %206 : vector<128x128xf32>
    %cst_120 = arith.constant 1.42141378 : f32
    %208 = vector.broadcast %cst_120 : f32 to vector<128x128xf32>
    %209 = arith.addf %208, %207 : vector<128x128xf32>
    %210 = arith.mulf %202, %209 : vector<128x128xf32>
    %cst_121 = arith.constant -0.284496725 : f32
    %211 = vector.broadcast %cst_121 : f32 to vector<128x128xf32>
    %212 = arith.addf %211, %210 : vector<128x128xf32>
    %213 = arith.mulf %202, %212 : vector<128x128xf32>
    %cst_122 = arith.constant 0.254829586 : f32
    %214 = vector.broadcast %cst_122 : f32 to vector<128x128xf32>
    %215 = arith.addf %214, %213 : vector<128x128xf32>
    %216 = arith.mulf %202, %215 : vector<128x128xf32>
    %cst_123 = arith.constant 0.000000e+00 : f32
    %217 = vector.broadcast %cst_123 : f32 to vector<128x128xf32>
    %218 = arith.subf %217, %196 : vector<128x128xf32>
    %219 = arith.mulf %218, %196 : vector<128x128xf32>
    %220 = math.exp %219 : vector<128x128xf32>
    %221 = arith.mulf %216, %220 : vector<128x128xf32>
    %cst_124 = arith.constant 1.000000e+00 : f32
    %222 = vector.broadcast %cst_124 : f32 to vector<128x128xf32>
    %223 = arith.subf %222, %221 : vector<128x128xf32>
    %224 = arith.mulf %195, %223 : vector<128x128xf32>
    %cst_125 = arith.constant 1.000000e+00 : f32
    %225 = vector.broadcast %cst_125 : f32 to vector<128x128xf32>
    %226 = arith.addf %225, %224 : vector<128x128xf32>
    %227 = arith.mulf %188, %226 : vector<128x128xf32>
    %228 = arith.index_cast %154 : i32 to index
    %c0_126 = arith.constant 0 : index
    %229 = vector.load %arg19[%228, %c0_126] : memref<128x128xf32, #tpu.memory_space<vmem>>, vector<128x128xf32>
    tpu.vector_store %arg19[%228, %c0_126], %227 {strides = array<i32>} : memref<128x128xf32, #tpu.memory_space<vmem>>, vector<128x128xf32>,
    %c1_i32_127 = arith.constant 1 : i32
    %c0_i32_128 = arith.constant 0 : i32
    %230 = tpu.assume_multiple %c0_i32_128, 128 : i32
    %c0_i32_129 = arith.constant 0 : i32
    %c0_i32_130 = arith.constant 0 : i32
    %c0_i32_131 = arith.constant 0 : i32
    %231 = tpu.memref_slice %arg2[%230, %c0_i32_131] : memref<128x128xbf16, #tpu.memory_space<any>> -> memref<128x128xbf16, #tpu.memory_space<any>>
    %c0_i32_132 = arith.constant 0 : i32
    %c0_i32_133 = arith.constant 0 : i32
    %232 = tpu.memref_slice %arg20[%c0_i32_129, %c0_i32_132, %c0_i32_133] : memref<2x128x128xbf16, #tpu.memory_space<vmem>> -> memref<1x128x128xbf16, #tpu.memory_space<vmem>>
    %233 = tpu.memref_squeeze %232 : memref<1x128x128xbf16, #tpu.memory_space<vmem>> -> memref<128x128xbf16, #tpu.memory_space<vmem>>
    %234 = tpu.memref_slice %arg21[%c0_i32_130] : memref<2x!tpu.dma_semaphore, #tpu.memory_space<semaphore_mem>> -> memref<1x!tpu.dma_semaphore, #tpu.memory_space<semaphore_mem>>
    %235 = tpu.memref_squeeze %234 : memref<1x!tpu.dma_semaphore, #tpu.memory_space<semaphore_mem>> -> memref<!tpu.dma_semaphore, #tpu.memory_space<semaphore_mem>>
    tpu.enqueue_dma source(%231 : memref<128x128xbf16, #tpu.memory_space<any>>) target(%233 : memref<128x128xbf16, #tpu.memory_space<vmem>>) target_semaphore(%235 : memref<!tpu.dma_semaphore, #tpu.memory_space<semaphore_mem>>)
    %c0_134 = arith.constant 0 : index
    %c0_135 = arith.constant 0 : index
    %236 = vector.load %arg19[%c0_134, %c0_135] : memref<128x128xf32, #tpu.memory_space<vmem>>, vector<128x128xf32>
    %237 = arith.truncf %236 : vector<128x128xf32> to vector<128x128xbf16>
    %c0_136 = arith.constant 0 : index
    %c0_137 = arith.constant 0 : index
    %238 = vector.load %arg10[%c0_136, %c0_137] : memref<128x128xbf16, #tpu.memory_space<vmem>>, vector<128x128xbf16>
    %cst_138 = arith.constant dense<0.000000e+00> : vector<128x128xf32>
    %239 = tpu.matmul %237, %238, %cst_138 {dimension_numbers = #tpu.dot_dimension_numbers<[1], [0], [0], [1], [0, 0, 1, 1], [], []>} : vector<128x128xbf16>, vector<128x128xbf16>, vector<128x128xf32> -> vector<128x128xf32>
    %240 = arith.truncf %239 : vector<128x128xf32> to vector<128x128xbf16>
    %c0_139 = arith.constant 0 : index
    %c0_140 = arith.constant 0 : index
    %241 = vector.load %arg16[%c0_139, %c0_140] : memref<128x128xbf16, #tpu.memory_space<vmem>>, vector<128x128xbf16>
    tpu.vector_store %arg16[%c0_139, %c0_140], %240 {strides = array<i32>} : memref<128x128xbf16, #tpu.memory_space<vmem>>, vector<128x128xbf16>,
    %242 = vector.extract_strided_slice %239 {offsets = [0, 32], sizes = [128, 1], strides = [1, 1]} : vector<128x128xf32> to vector<128x1xf32>
    %c0_141 = arith.constant 0 : index
    %c0_142 = arith.constant 0 : index
    %243 = vector.load %arg17[%c0_141, %c0_142] : memref<128x1xf32, #tpu.memory_space<vmem>>, vector<128x1xf32>
    tpu.vector_store %arg17[%c0_141, %c0_142], %242 {strides = array<i32>} : memref<128x1xf32, #tpu.memory_space<vmem>>, vector<128x1xf32>,
    %c0_143 = arith.constant 0 : index
    %c0_144 = arith.constant 0 : index
    %244 = vector.load %arg11[%c0_143, %c0_144] : memref<1x128xbf16, #tpu.memory_space<vmem>>, vector<1x128xbf16>
    %cst_145 = arith.constant dense<0.000000e+00> : vector<1x128xf32>
    %245 = tpu.matmul %244, %240, %cst_145 {dimension_numbers = #tpu.dot_dimension_numbers<[1], [1], [0], [0], [0, 0, 1, 0], [], []>} : vector<1x128xbf16>, vector<128x128xbf16>, vector<1x128xf32> -> vector<1x128xf32>
    %c0_146 = arith.constant 0 : index
    %c0_147 = arith.constant 0 : index
    %246 = vector.load %arg12[%c0_146, %c0_147] : memref<1x128xf32, #tpu.memory_space<vmem>>, vector<1x128xf32>
    %c0_i32_148 = arith.constant 0 : i32
    %c1_i32_149 = arith.constant 1 : i32
    %247 = arith.muli %c0_i32_148, %c1_i32_149 : i32
    %c0_i32_150 = arith.constant 0 : i32
    %248 = arith.addi %c0_i32_150, %247 : i32
    %c2_i32_151 = arith.constant 2 : i32
    %c0_i32_152 = arith.constant 0 : i32
    %249 = arith.cmpi eq, %c2_i32_151, %c0_i32_152 : i32
    %c1_i32_153 = arith.constant 1 : i32
    %250 = arith.select %249, %c1_i32_153, %c2_i32_151 : i32
    %251 = arith.remsi %248, %250 : i32
    %c0_i32_154 = arith.constant 0 : i32
    %252 = arith.cmpi ne, %251, %c0_i32_154 : i32
    %c0_i32_155 = arith.constant 0 : i32
    %253 = arith.cmpi slt, %251, %c0_i32_155 : i32
    %c0_i32_156 = arith.constant 0 : i32
    %254 = arith.cmpi slt, %250, %c0_i32_156 : i32
    %255 = arith.xori %253, %254 : i1
    %256 = arith.andi %255, %252 : i1
    %257 = arith.addi %251, %250 : i32
    %258 = arith.select %256, %257, %251 : i32
    %c0_i32_157 = arith.constant 0 : i32
    %c0_i32_158 = arith.constant 0 : i32
    %259 = tpu.memref_slice %arg2[%c0_i32_157, %c0_i32_158] : memref<128x128xbf16, #tpu.memory_space<any>> -> memref<128x128xbf16, #tpu.memory_space<any>>
    %c0_i32_159 = arith.constant 0 : i32
    %c0_i32_160 = arith.constant 0 : i32
    %260 = tpu.memref_slice %arg20[%258, %c0_i32_159, %c0_i32_160] : memref<2x128x128xbf16, #tpu.memory_space<vmem>> -> memref<1x128x128xbf16, #tpu.memory_space<vmem>>
    %261 = tpu.memref_squeeze %260 : memref<1x128x128xbf16, #tpu.memory_space<vmem>> -> memref<128x128xbf16, #tpu.memory_space<vmem>>
    %262 = tpu.memref_slice %arg21[%258] : memref<2x!tpu.dma_semaphore, #tpu.memory_space<semaphore_mem>> -> memref<1x!tpu.dma_semaphore, #tpu.memory_space<semaphore_mem>>
    %263 = tpu.memref_squeeze %262 : memref<1x!tpu.dma_semaphore, #tpu.memory_space<semaphore_mem>> -> memref<!tpu.dma_semaphore, #tpu.memory_space<semaphore_mem>>
    tpu.wait_dma2 semaphore(%263 : memref<!tpu.dma_semaphore, #tpu.memory_space<semaphore_mem>>) src(%259 : memref<128x128xbf16, #tpu.memory_space<any>>) dst(%261 : memref<128x128xbf16, #tpu.memory_space<vmem>>)
    %c1_i32_161 = arith.constant 1 : i32
    %264 = arith.addi %248, %c1_i32_161 : i32
    %c1_i32_162 = arith.constant 1 : i32
    %265 = arith.cmpi slt, %264, %c1_i32_162 : i32
    %266 = arith.extui %265 : i1 to i32
    %c0_i32_163 = arith.constant 0 : i32
    %267 = arith.cmpi ne, %266, %c0_i32_163 : i32
    scf.if %267 {
      %c1_i32_209 = arith.constant 1 : i32
      %361 = arith.addi %248, %c1_i32_209 : i32
      %c1_i32_210 = arith.constant 1 : i32
      %362 = arith.subi %c1_i32_210, %258 : i32
      %c128_i32_211 = arith.constant 128 : i32
      %363 = arith.muli %361, %c128_i32_211 : i32
      %364 = tpu.assume_multiple %363, 128 : i32
      %c0_i32_212 = arith.constant 0 : i32
      %365 = tpu.memref_slice %arg2[%364, %c0_i32_212] : memref<128x128xbf16, #tpu.memory_space<any>> -> memref<128x128xbf16, #tpu.memory_space<any>>
      %c0_i32_213 = arith.constant 0 : i32
      %c0_i32_214 = arith.constant 0 : i32
      %366 = tpu.memref_slice %arg20[%362, %c0_i32_213, %c0_i32_214] : memref<2x128x128xbf16, #tpu.memory_space<vmem>> -> memref<1x128x128xbf16, #tpu.memory_space<vmem>>
      %367 = tpu.memref_squeeze %366 : memref<1x128x128xbf16, #tpu.memory_space<vmem>> -> memref<128x128xbf16, #tpu.memory_space<vmem>>
      %368 = tpu.memref_slice %arg21[%362] : memref<2x!tpu.dma_semaphore, #tpu.memory_space<semaphore_mem>> -> memref<1x!tpu.dma_semaphore, #tpu.memory_space<semaphore_mem>>
      %369 = tpu.memref_squeeze %368 : memref<1x!tpu.dma_semaphore, #tpu.memory_space<semaphore_mem>> -> memref<!tpu.dma_semaphore, #tpu.memory_space<semaphore_mem>>
      tpu.enqueue_dma source(%365 : memref<128x128xbf16, #tpu.memory_space<any>>) target(%367 : memref<128x128xbf16, #tpu.memory_space<vmem>>) target_semaphore(%369 : memref<!tpu.dma_semaphore, #tpu.memory_space<semaphore_mem>>)
    } else {
    }
    %c128_i32_164 = arith.constant 128 : i32
    %268 = arith.muli %248, %c128_i32_164 : i32
    %269 = tpu.assume_multiple %268, 128 : i32
    %270 = arith.index_cast %269 : i32 to index
    %c0_165 = arith.constant 0 : index
    %271 = vector.load %arg17[%270, %c0_165] : memref<128x1xf32, #tpu.memory_space<vmem>>, vector<128x1xf32>
    %272 = vector.broadcast %271 : vector<128x1xf32> to vector<128x128xf32>
    %273 = vector.broadcast %245 : vector<1x128xf32> to vector<128x128xf32>
    %274 = arith.addf %272, %273 : vector<128x128xf32>
    %cst_166 = arith.constant 0.000000e+00 : f32
    %275 = vector.broadcast %cst_166 : f32 to vector<128x128xf32>
    %276 = arith.cmpf ogt, %274, %275 : vector<128x128xf32>
    %cst_167 = arith.constant 2.000000e-01 : f32
    %277 = vector.broadcast %cst_167 : f32 to vector<128x128xf32>
    %278 = arith.mulf %277, %274 : vector<128x128xf32>
    %279 = arith.select %276, %274, %278 : vector<128x128xi1>, vector<128x128xf32>
    %280 = arith.index_cast %258 : i32 to index
    %c0_168 = arith.constant 0 : index
    %c0_169 = arith.constant 0 : index
    %281 = vector.load %arg20[%280, %c0_168, %c0_169] : memref<2x128x128xbf16, #tpu.memory_space<vmem>>, vector<1x128x128xbf16>
    %282 = vector.shape_cast %281 : vector<1x128x128xbf16> to vector<128x128xbf16>
    %cst_170 = arith.constant 0.000000e+00 : bf16
    %283 = vector.broadcast %cst_170 : bf16 to vector<128x128xbf16>
    %284 = arith.cmpf ogt, %282, %283 : vector<128x128xbf16>
    %cst_171 = arith.constant -1.000000e+30 : f32
    %285 = vector.broadcast %cst_171 : f32 to vector<128x128xf32>
    %286 = arith.select %284, %279, %285 : vector<128x128xi1>, vector<128x128xf32>
    %cst_172 = arith.constant dense<0xFF800000> : vector<128xf32>
    %287 = vector.multi_reduction <maximumf>, %286, %cst_172 [1] : vector<128x128xf32> to vector<128xf32>
    %288 = vector.shape_cast %287 : vector<128xf32> to vector<128x1xf32>
    %289 = vector.broadcast %288 : vector<128x1xf32> to vector<128x128xf32>
    %290 = arith.subf %286, %289 : vector<128x128xf32>
    %291 = math.exp %290 : vector<128x128xf32>
    %cst_173 = arith.constant dense<0.000000e+00> : vector<128xf32>
    %292 = vector.multi_reduction <add>, %291, %cst_173 [1] : vector<128x128xf32> to vector<128xf32>
    %293 = vector.shape_cast %292 : vector<128xf32> to vector<128x1xf32>
    %294 = tpu.reciprocal %293 {approx = true} : vector<128x1xf32> -> vector<128x1xf32>
    %295 = vector.broadcast %294 : vector<128x1xf32> to vector<128x128xf32>
    %296 = arith.mulf %291, %295 : vector<128x128xf32>
    %297 = arith.truncf %296 : vector<128x128xf32> to vector<128x128xbf16>
    %c0_174 = arith.constant 0 : index
    %c0_175 = arith.constant 0 : index
    %298 = vector.load %arg16[%c0_174, %c0_175] : memref<128x128xbf16, #tpu.memory_space<vmem>>, vector<128x128xbf16>
    %cst_176 = arith.constant dense<0.000000e+00> : vector<128x128xf32>
    %299 = tpu.matmul %297, %298, %cst_176 {dimension_numbers = #tpu.dot_dimension_numbers<[1], [0], [0], [1], [0, 0, 1, 1], [], []>} : vector<128x128xbf16>, vector<128x128xbf16>, vector<128x128xf32> -> vector<128x128xf32>
    %300 = vector.broadcast %246 : vector<1x128xf32> to vector<128x128xf32>
    %301 = arith.addf %299, %300 : vector<128x128xf32>
    %cst_177 = arith.constant 5.000000e-01 : f32
    %302 = vector.broadcast %cst_177 : f32 to vector<128x128xf32>
    %303 = arith.mulf %302, %301 : vector<128x128xf32>
    %cst_178 = arith.constant 0.707106769 : f32
    %304 = vector.broadcast %cst_178 : f32 to vector<128x128xf32>
    %305 = arith.mulf %301, %304 : vector<128x128xf32>
    %cst_179 = arith.constant 0.000000e+00 : f32
    %306 = vector.broadcast %cst_179 : f32 to vector<128x128xf32>
    %307 = arith.cmpf oge, %305, %306 : vector<128x128xf32>
    %cst_180 = arith.constant 1.000000e+00 : f32
    %cst_181 = arith.constant -1.000000e+00 : f32
    %308 = vector.broadcast %cst_180 : f32 to vector<128x128xf32>
    %309 = vector.broadcast %cst_181 : f32 to vector<128x128xf32>
    %310 = arith.select %307, %308, %309 : vector<128x128xi1>, vector<128x128xf32>
    %311 = math.absf %305 : vector<128x128xf32>
    %cst_182 = arith.constant 0.327591091 : f32
    %312 = vector.broadcast %cst_182 : f32 to vector<128x128xf32>
    %313 = arith.mulf %312, %311 : vector<128x128xf32>
    %cst_183 = arith.constant 1.000000e+00 : f32
    %314 = vector.broadcast %cst_183 : f32 to vector<128x128xf32>
    %315 = arith.addf %314, %313 : vector<128x128xf32>
    %cst_184 = arith.constant 1.000000e+00 : f32
    %316 = vector.broadcast %cst_184 : f32 to vector<128x128xf32>
    %317 = arith.divf %316, %315 : vector<128x128xf32>
    %cst_185 = arith.constant 1.06140542 : f32
    %318 = vector.broadcast %cst_185 : f32 to vector<128x128xf32>
    %319 = arith.mulf %317, %318 : vector<128x128xf32>
    %cst_186 = arith.constant -1.45315206 : f32
    %320 = vector.broadcast %cst_186 : f32 to vector<128x128xf32>
    %321 = arith.addf %320, %319 : vector<128x128xf32>
    %322 = arith.mulf %317, %321 : vector<128x128xf32>
    %cst_187 = arith.constant 1.42141378 : f32
    %323 = vector.broadcast %cst_187 : f32 to vector<128x128xf32>
    %324 = arith.addf %323, %322 : vector<128x128xf32>
    %325 = arith.mulf %317, %324 : vector<128x128xf32>
    %cst_188 = arith.constant -0.284496725 : f32
    %326 = vector.broadcast %cst_188 : f32 to vector<128x128xf32>
    %327 = arith.addf %326, %325 : vector<128x128xf32>
    %328 = arith.mulf %317, %327 : vector<128x128xf32>
    %cst_189 = arith.constant 0.254829586 : f32
    %329 = vector.broadcast %cst_189 : f32 to vector<128x128xf32>
    %330 = arith.addf %329, %328 : vector<128x128xf32>
    %331 = arith.mulf %317, %330 : vector<128x128xf32>
    %cst_190 = arith.constant 0.000000e+00 : f32
    %332 = vector.broadcast %cst_190 : f32 to vector<128x128xf32>
    %333 = arith.subf %332, %311 : vector<128x128xf32>
    %334 = arith.mulf %333, %311 : vector<128x128xf32>
    %335 = math.exp %334 : vector<128x128xf32>
    %336 = arith.mulf %331, %335 : vector<128x128xf32>
    %cst_191 = arith.constant 1.000000e+00 : f32
    %337 = vector.broadcast %cst_191 : f32 to vector<128x128xf32>
    %338 = arith.subf %337, %336 : vector<128x128xf32>
    %339 = arith.mulf %310, %338 : vector<128x128xf32>
    %cst_192 = arith.constant 1.000000e+00 : f32
    %340 = vector.broadcast %cst_192 : f32 to vector<128x128xf32>
    %341 = arith.addf %340, %339 : vector<128x128xf32>
    %342 = arith.mulf %303, %341 : vector<128x128xf32>
    %343 = arith.index_cast %269 : i32 to index
    %c0_193 = arith.constant 0 : index
    %344 = vector.load %arg18[%343, %c0_193] : memref<128x128xf32, #tpu.memory_space<vmem>>, vector<128x128xf32>
    tpu.vector_store %arg18[%343, %c0_193], %342 {strides = array<i32>} : memref<128x128xf32, #tpu.memory_space<vmem>>, vector<128x128xf32>,
    %c1_i32_194 = arith.constant 1 : i32
    %c0_195 = arith.constant 0 : index
    %c0_196 = arith.constant 0 : index
    %345 = vector.load %arg3[%c0_195, %c0_196] : memref<8x128xbf16, #tpu.memory_space<vmem>>, vector<8x128xbf16>
    %c0_197 = arith.constant 0 : index
    %c0_198 = arith.constant 0 : index
    %346 = vector.load %arg18[%c0_197, %c0_198] : memref<128x128xf32, #tpu.memory_space<vmem>>, vector<128x128xf32>
    %347 = arith.truncf %346 : vector<128x128xf32> to vector<128x128xbf16>
    %cst_199 = arith.constant dense<0.000000e+00> : vector<8x128xf32>
    %348 = tpu.matmul %345, %347, %cst_199 {dimension_numbers = #tpu.dot_dimension_numbers<[1], [0], [0], [1], [0, 0, 1, 1], [], []>} : vector<8x128xbf16>, vector<128x128xbf16>, vector<8x128xf32> -> vector<8x128xf32>
    %349 = arith.truncf %348 : vector<8x128xf32> to vector<8x128xbf16>
    %c0_200 = arith.constant 0 : index
    %c0_201 = arith.constant 0 : index
    %350 = vector.load %arg13[%c0_200, %c0_201] : memref<128x128xbf16, #tpu.memory_space<vmem>>, vector<128x128xbf16>
    %cst_202 = arith.constant dense<0.000000e+00> : vector<8x128xf32>
    %351 = tpu.matmul %349, %350, %cst_202 {dimension_numbers = #tpu.dot_dimension_numbers<[1], [0], [0], [1], [0, 0, 1, 1], [], []>} : vector<8x128xbf16>, vector<128x128xbf16>, vector<8x128xf32> -> vector<8x128xf32>
    %c0_203 = arith.constant 0 : index
    %c0_204 = arith.constant 0 : index
    %352 = vector.load %arg14[%c0_203, %c0_204] : memref<1x128xf32, #tpu.memory_space<vmem>>, vector<1x128xf32>
    %353 = vector.broadcast %352 : vector<1x128xf32> to vector<8x128xf32>
    %354 = arith.addf %351, %353 : vector<8x128xf32>
    %cst_205 = arith.constant 0.000000e+00 : f32
    %355 = vector.broadcast %cst_205 : f32 to vector<8x128xf32>
    %356 = arith.cmpf ogt, %354, %355 : vector<8x128xf32>
    %cst_206 = arith.constant 0.00999999977 : f32
    %357 = vector.broadcast %cst_206 : f32 to vector<8x128xf32>
    %358 = arith.mulf %357, %354 : vector<8x128xf32>
    %359 = arith.select %356, %354, %358 : vector<8x128xi1>, vector<8x128xf32>
    %c0_207 = arith.constant 0 : index
    %c0_208 = arith.constant 0 : index
    %360 = vector.load %arg15[%c0_207, %c0_208] : memref<8x128xf32, #tpu.memory_space<vmem>>, vector<8x128xf32>
    tpu.vector_store %arg15[%c0_207, %c0_208], %359 {strides = array<i32>} : memref<8x128xf32, #tpu.memory_space<vmem>>, vector<8x128xf32>,
    return
  }
  func.func @transform_0(%arg0: i32) -> (i32, i32) {
    %c0_i32 = arith.constant 0 : i32
    %c0_i32_0 = arith.constant 0 : i32
    %c0_i32_1 = arith.constant 0 : i32
    return %c0_i32, %c0_i32_0 : i32, i32
  }
  func.func @transform_2(%arg0: i32) -> (i32, i32) {
    %c0_i32 = arith.constant 0 : i32
    %c0_i32_0 = arith.constant 0 : i32
    %c0_i32_1 = arith.constant 0 : i32
    return %c0_i32, %c0_i32_0 : i32, i32
  }
  func.func @transform_3(%arg0: i32) -> (i32, i32) {
    %c0_i32 = arith.constant 0 : i32
    %c0_i32_0 = arith.constant 0 : i32
    %c0_i32_1 = arith.constant 0 : i32
    return %c0_i32, %c0_i32_0 : i32, i32
  }
  func.func @transform_4(%arg0: i32) -> (i32, i32) {
    %c0_i32 = arith.constant 0 : i32
    %c0_i32_0 = arith.constant 0 : i32
    %c0_i32_1 = arith.constant 0 : i32
    return %c0_i32, %c0_i32_0 : i32, i32
  }
  func.func @transform_5(%arg0: i32) -> (i32, i32) {
    %c0_i32 = arith.constant 0 : i32
    %c0_i32_0 = arith.constant 0 : i32
    %c0_i32_1 = arith.constant 0 : i32
    return %c0_i32, %c0_i32_0 : i32, i32
  }
  func.func @transform_6(%arg0: i32) -> (i32, i32) {
    %c0_i32 = arith.constant 0 : i32
    %c0_i32_0 = arith.constant 0 : i32
    %c0_i32_1 = arith.constant 0 : i32
    return %c0_i32, %c0_i32_0 : i32, i32
  }
  func.func @transform_7(%arg0: i32) -> (i32, i32) {
    %c0_i32 = arith.constant 0 : i32
    %c0_i32_0 = arith.constant 0 : i32
    %c0_i32_1 = arith.constant 0 : i32
    return %c0_i32, %c0_i32_0 : i32, i32
  }
  func.func @transform_8(%arg0: i32) -> (i32, i32) {
    %c0_i32 = arith.constant 0 : i32
    %c0_i32_0 = arith.constant 0 : i32
    %c0_i32_1 = arith.constant 0 : i32
    return %c0_i32, %c0_i32_0 : i32, i32
  }
  func.func @transform_9(%arg0: i32) -> (i32, i32) {
    %c0_i32 = arith.constant 0 : i32
    %c0_i32_0 = arith.constant 0 : i32
    %c0_i32_1 = arith.constant 0 : i32
    return %c0_i32, %c0_i32_0 : i32, i32
  }
  func.func @transform_10(%arg0: i32) -> (i32, i32) {
    %c0_i32 = arith.constant 0 : i32
    %c0_i32_0 = arith.constant 0 : i32
    %c0_i32_1 = arith.constant 0 : i32
    return %c0_i32, %c0_i32_0 : i32, i32
  }
  func.func @transform_11(%arg0: i32) -> (i32, i32) {
    %c0_i32 = arith.constant 0 : i32
    %c0_i32_0 = arith.constant 0 : i32
    %c0_i32_1 = arith.constant 0 : i32
    return %c0_i32, %c0_i32_0 : i32, i32
  }
  func.func @transform_12(%arg0: i32) -> (i32, i32) {
    %c0_i32 = arith.constant 0 : i32
    %c0_i32_0 = arith.constant 0 : i32
    %c0_i32_1 = arith.constant 0 : i32
    return %c0_i32, %c0_i32_0 : i32, i32
  }
  func.func @transform_13(%arg0: i32) -> (i32, i32) {
    %c0_i32 = arith.constant 0 : i32
    %c0_i32_0 = arith.constant 0 : i32
    %c0_i32_1 = arith.constant 0 : i32
    return %c0_i32, %c0_i32_0 : i32, i32
  }
  func.func @transform_14(%arg0: i32) -> (i32, i32) {
    %c0_i32 = arith.constant 0 : i32
    %c0_i32_0 = arith.constant 0 : i32
    %c0_i32_1 = arith.constant 0 : i32
    return %c0_i32, %c0_i32_0 : i32, i32
  }
}

</mosaic_0001>

<llo_original>
// kernel: tpu_custom_call.1
$region0: #{tpu_custom_call.1}
  #allocation0 [shape = 'u32[]', space=smem, size = 0x4, offset = 0x4, fixed_abs, tag = 'smem constant byte address 0x4 - core index']
  #allocation1 [shape = 'u32[144,128]{1,0:T(1,128)}', space=vmem, size = 0x12000, scoped, tag = 'internal scratch']
  #allocation2 [shape = 'bf16[128,128]{1,0:T(16,128)(2,1)}', space=vmem, size = 0x8000, scoped, tag = 'scratch operand']
  #allocation3 [shape = 'f32[128,1]{1,0:T(8,128)}', space=vmem, size = 0x10000, scoped, tag = 'scratch operand']
  #allocation4 [shape = 'f32[128,128]{1,0:T(8,128)}', space=vmem, size = 0x10000, scoped, tag = 'scratch operand']
  #allocation5 [shape = 'f32[128,128]{1,0:T(8,128)}', space=vmem, size = 0x10000, scoped, tag = 'scratch operand']
  #allocation6 [shape = 'bf16[2,128,128]{2,1,0:T(16,128)(2,1)}', space=vmem, size = 0x10000, scoped, tag = 'scratch operand']
  #allocation7 [shape = 's32[2]{0}', space=sflag, size = 0x8, scoped, tag = 'scratch operand']
  #allocation18 [shape = 's32[]', space=sflag, size = 0x4, offset = 0, fixed_abs, tag = 'sflag constant byte address 0x0 - dummy sync flag']
  #allocation19 [shape = 's32[]', space=sflag, size = 0x4, offset = 0, fixed_abs, tag = 'sflag constant byte address 0x0 - dummy sync flag']
  #allocation20 [shape = 'u32[]', space=smem, size = 0x4, offset = 0x44, fixed_abs, tag = 'smem constant byte address 0x44 - assertion arg 0']
  #allocation21 [shape = 'u32[]', space=smem, size = 0x4, offset = 0x48, fixed_abs, tag = 'smem constant byte address 0x48 - assertion arg 1']
  #allocation22 [shape = 's32[]', space=sflag, size = 0x4, offset = 0, fixed_abs, tag = 'sflag constant byte address 0x0 - dummy sync flag']
  #allocation23 [shape = 's32[]', space=sflag, size = 0x4, offset = 0, fixed_abs, tag = 'sflag constant byte address 0x0 - dummy sync flag']
  #allocation24 [shape = 's32[]', space=sflag, size = 0x4, offset = 0, fixed_abs, tag = 'sflag constant byte address 0x0 - dummy sync flag']
  #allocation25 [shape = 's32[]', space=sflag, size = 0x4, offset = 0, fixed_abs, tag = 'sflag constant byte address 0x0 - dummy sync flag']
  %s0 = inlined_call_operand.hbm [shape: f32[128,128], index: 0, kind: input, shape index: {}]
  %s1 = inlined_call_operand.hbm [shape: bf16[128,128], index: 1, kind: input, shape index: {}]
  %s2 = inlined_call_operand.vmem [shape: bf16[8,128], index: 2, kind: input, shape index: {}]
  %s3 = inlined_call_operand.hbm [shape: bf16[128,128], index: 3, kind: input, shape index: {}]
  %s4 = inlined_call_operand.vmem [shape: bf16[1,128], index: 4, kind: input, shape index: {}]
  %s5 = inlined_call_operand.vmem [shape: f32[1,128], index: 5, kind: input, shape index: {}]
  %s6 = inlined_call_operand.hbm [shape: bf16[128,128], index: 6, kind: input, shape index: {}]
  %s7 = inlined_call_operand.vmem [shape: bf16[1,128], index: 7, kind: input, shape index: {}]
  %s8 = inlined_call_operand.vmem [shape: f32[1,128], index: 8, kind: input, shape index: {}]
  %s9 = inlined_call_operand.hbm [shape: bf16[128,128], index: 9, kind: input, shape index: {}]
  %s10 = inlined_call_operand.vmem [shape: bf16[1,128], index: 10, kind: input, shape index: {}]
  %s11 = inlined_call_operand.vmem [shape: f32[1,128], index: 11, kind: input, shape index: {}]
  %s12 = inlined_call_operand.hbm [shape: bf16[128,128], index: 12, kind: input, shape index: {}]
  %s13 = inlined_call_operand.vmem [shape: f32[1,128], index: 13, kind: input, shape index: {}]
  %s14 = inlined_call_operand.hbm [shape: f32[8,128], index: 14, kind: output, shape index: {}]
  %s15 = sld [smem:[#allocation0]]
  $region94: #{tpu_custom_call.1} parent=0
    _
  %s17 = ssub.s32 1, %s15
  %s18 = scalar_select 0, %s17, %s15
  $region1: #{tpu_custom_call.1} parent=0
    #allocation8 [shape = 'u8[65536]{0}', space=vmem, size = 0x10000, scoped, tag = 'input window, operand 0, single buffered']
    #allocation9 [shape = 's32[1]{0}', space=sflag, size = 0x4, scoped, tag = 'scoped memory for tpu_custom_call.1']
    #allocation10 [shape = 's32[1]{0}', space=sflag, size = 0x4, scoped, tag = 'scoped memory for tpu_custom_call.1']
    #allocation11 [shape = 'u8[32768]{0}', space=vmem, size = 0x8000, scoped, tag = 'input window, operand 3, single buffered']
    #allocation12 [shape = 's32[1]{0}', space=sflag, size = 0x4, scoped, tag = 'scoped memory for tpu_custom_call.1']
    #allocation13 [shape = 'u8[32768]{0}', space=vmem, size = 0x8000, scoped, tag = 'input window, operand 6, single buffered']
    #allocation14 [shape = 'u8[32768]{0}', space=vmem, size = 0x8000, scoped, tag = 'input window, operand 9, single buffered']
    #allocation15 [shape = 's32[1]{0}', space=sflag, size = 0x4, scoped, tag = 'scoped memory for tpu_custom_call.1']
    #allocation16 [shape = 'u8[32768]{0}', space=vmem, size = 0x8000, scoped, tag = 'input window, operand 12, single buffered']
    #allocation17 [shape = 'u8[4096]{0}', space=vmem, size = 0x1000, scoped, tag = 'output window, operand 0, single buffered']
    %19 = vsyncpa [#allocation9], 0
    %20 = vsyncpa [#allocation12], 0
    %21 = vsyncpa [#allocation15], 0
    %22 = vsyncpa [#allocation10], 0
    // Predicated region
    $region2: #{tpu_custom_call.1} parent=1 // pred_check
      _
    $region3: #{tpu_custom_call.1} parent=1 // pred_check_branch
      %24 = sbr.rel (0) target = $region5
    $region4: #{tpu_custom_call.1} parent=1 // pred_region
      %s26 = ssub.s32 2048, 2048
      %27 = vsyncadd [#allocation9], %s26
      %s28 = sshll.u32 [#allocation8], 4
      %s29 = int_to_ptr.vmem [resolvable:$true] %s28
      %34 = dma.hbm_to_vmem [thread:$0]  %s0, 2048, %s29, [#allocation9], 128, 128, 8
    $region5: #{tpu_custom_call.1} parent=1 // pred_fallthru
      _
    // Predicated region
    $region6: #{tpu_custom_call.1} parent=1 // pred_check
      _
    $region7: #{tpu_custom_call.1} parent=1 // pred_check_branch
      %36 = sbr.rel (0) target = $region9
    $region8: #{tpu_custom_call.1} parent=1 // pred_region
      _
    $region9: #{tpu_custom_call.1} parent=1 // pred_fallthru
      _
    // Predicated region
    $region10: #{tpu_custom_call.1} parent=1 // pred_check
      _
    $region11: #{tpu_custom_call.1} parent=1 // pred_check_branch
      %38 = sbr.rel (0) target = $region13
    $region12: #{tpu_custom_call.1} parent=1 // pred_region
      %s40 = ssub.s32 1024, 1024
      %41 = vsyncadd [#allocation12], %s40
      %s42 = sshll.u32 [#allocation11], 4
      %s43 = int_to_ptr.vmem [resolvable:$true] %s42
      %48 = dma.hbm_to_vmem [thread:$0]  %s3, 1024, %s43, [#allocation12], 64, 64, 4
    $region13: #{tpu_custom_call.1} parent=1 // pred_fallthru
      _
    // Predicated region
    $region14: #{tpu_custom_call.1} parent=1 // pred_check
      _
    $region15: #{tpu_custom_call.1} parent=1 // pred_check_branch
      %50 = sbr.rel (0) target = $region17
    $region16: #{tpu_custom_call.1} parent=1 // pred_region
      _
    $region17: #{tpu_custom_call.1} parent=1 // pred_fallthru
      _
    // Predicated region
    $region18: #{tpu_custom_call.1} parent=1 // pred_check
      _
    $region19: #{tpu_custom_call.1} parent=1 // pred_check_branch
      %52 = sbr.rel (0) target = $region21
    $region20: #{tpu_custom_call.1} parent=1 // pred_region
      _
    $region21: #{tpu_custom_call.1} parent=1 // pred_fallthru
      _
    // Predicated region
    $region22: #{tpu_custom_call.1} parent=1 // pred_check
      _
    $region23: #{tpu_custom_call.1} parent=1 // pred_check_branch
      %54 = sbr.rel (0) target = $region25
    $region24: #{tpu_custom_call.1} parent=1 // pred_region
      %s56 = ssub.s32 1024, 1024
      %57 = vsyncadd [#allocation12], %s56
      %s58 = sshll.u32 [#allocation13], 4
      %s59 = int_to_ptr.vmem [resolvable:$true] %s58
      %64 = dma.hbm_to_vmem [thread:$0]  %s6, 1024, %s59, [#allocation12], 64, 64, 4
    $region25: #{tpu_custom_call.1} parent=1 // pred_fallthru
      _
    // Predicated region
    $region26: #{tpu_custom_call.1} parent=1 // pred_check
      _
    $region27: #{tpu_custom_call.1} parent=1 // pred_check_branch
      %66 = sbr.rel (0) target = $region29
    $region28: #{tpu_custom_call.1} parent=1 // pred_region
      _
    $region29: #{tpu_custom_call.1} parent=1 // pred_fallthru
      _
    // Predicated region
    $region30: #{tpu_custom_call.1} parent=1 // pred_check
      _
    $region31: #{tpu_custom_call.1} parent=1 // pred_check_branch
      %68 = sbr.rel (0) target = $region33
    $region32: #{tpu_custom_call.1} parent=1 // pred_region
      _
    $region33: #{tpu_custom_call.1} parent=1 // pred_fallthru
      _
    // Predicated region
    $region34: #{tpu_custom_call.1} parent=1 // pred_check
      _
    $region35: #{tpu_custom_call.1} parent=1 // pred_check_branch
      %70 = sbr.rel (0) target = $region37
    $region36: #{tpu_custom_call.1} parent=1 // pred_region
      %s72 = ssub.s32 1024, 1024
      %73 = vsyncadd [#allocation15], %s72
      %s74 = sshll.u32 [#allocation14], 4
      %s75 = int_to_ptr.vmem [resolvable:$true] %s74
      %80 = dma.hbm_to_vmem [thread:$0]  %s9, 1024, %s75, [#allocation15], 64, 64, 4
    $region37: #{tpu_custom_call.1} parent=1 // pred_fallthru
      _
    // Predicated region
    $region38: #{tpu_custom_call.1} parent=1 // pred_check
      _
    $region39: #{tpu_custom_call.1} parent=1 // pred_check_branch
      %82 = sbr.rel (0) target = $region41
    $region40: #{tpu_custom_call.1} parent=1 // pred_region
      _
    $region41: #{tpu_custom_call.1} parent=1 // pred_fallthru
      _
    // Predicated region
    $region42: #{tpu_custom_call.1} parent=1 // pred_check
      _
    $region43: #{tpu_custom_call.1} parent=1 // pred_check_branch
      %84 = sbr.rel (0) target = $region45
    $region44: #{tpu_custom_call.1} parent=1 // pred_region
      _
    $region45: #{tpu_custom_call.1} parent=1 // pred_fallthru
      _
    // Predicated region
    $region46: #{tpu_custom_call.1} parent=1 // pred_check
      _
    $region47: #{tpu_custom_call.1} parent=1 // pred_check_branch
      %86 = sbr.rel (0) target = $region49
    $region48: #{tpu_custom_call.1} parent=1 // pred_region
      %s88 = ssub.s32 1024, 1024
      %89 = vsyncadd [#allocation15], %s88
      %s90 = sshll.u32 [#allocation16], 4
      %s91 = int_to_ptr.vmem [resolvable:$true] %s90
      %96 = dma.hbm_to_vmem [thread:$0]  %s12, 1024, %s91, [#allocation15], 64, 64, 4
    $region49: #{tpu_custom_call.1} parent=1 // pred_fallthru
      _
    // Predicated region
    $region50: #{tpu_custom_call.1} parent=1 // pred_check
      _
    $region51: #{tpu_custom_call.1} parent=1 // pred_check_branch
      %98 = sbr.rel (0) target = $region53
    $region52: #{tpu_custom_call.1} parent=1 // pred_region
      _
    $region53: #{tpu_custom_call.1} parent=1 // pred_fallthru
      _
    // Predicated region
    $region54: #{tpu_custom_call.1} parent=1 // pred_check
      _
    $region55: #{tpu_custom_call.1} parent=1 // pred_check_branch
      %100 = sbr.rel (0) target = $region57
    $region56: #{tpu_custom_call.1} parent=1 // pred_region
      %101 = dma.done [#allocation9], 2048
    $region57: #{tpu_custom_call.1} parent=1 // pred_fallthru
      _
    // Predicated region
    $region58: #{tpu_custom_call.1} parent=1 // pred_check
      _
    $region59: #{tpu_custom_call.1} parent=1 // pred_check_branch
      %103 = sbr.rel (0) target = $region61
    $region60: #{tpu_custom_call.1} parent=1 // pred_region
      %104 = dma.done [#allocation12], 1024
    $region61: #{tpu_custom_call.1} parent=1 // pred_fallthru
      _
    // Predicated region
    $region62: #{tpu_custom_call.1} parent=1 // pred_check
      _
    $region63: #{tpu_custom_call.1} parent=1 // pred_check_branch
      %106 = sbr.rel (0) target = $region65
    $region64: #{tpu_custom_call.1} parent=1 // pred_region
      %107 = dma.done [#allocation12], 1024
    $region65: #{tpu_custom_call.1} parent=1 // pred_fallthru
      _
    // Predicated region
    $region66: #{tpu_custom_call.1} parent=1 // pred_check
      _
    $region67: #{tpu_custom_call.1} parent=1 // pred_check_branch
      %109 = sbr.rel (0) target = $region69
    $region68: #{tpu_custom_call.1} parent=1 // pred_region
      %110 = dma.done [#allocation15], 1024
    $region69: #{tpu_custom_call.1} parent=1 // pred_fallthru
      _
    // Predicated region
    $region70: #{tpu_custom_call.1} parent=1 // pred_check
      _
    $region71: #{tpu_custom_call.1} parent=1 // pred_check_branch
      %112 = sbr.rel (0) target = $region73
    $region72: #{tpu_custom_call.1} parent=1 // pred_region
      %113 = dma.done [#allocation15], 1024
    $region73: #{tpu_custom_call.1} parent=1 // pred_fallthru
      _
    // Predicated region
    $region74: #{tpu_custom_call.1} parent=1 // pred_check
      _
    $region75: #{tpu_custom_call.1} parent=1 // pred_check_branch
      %118 = sbr.rel target = $region77
    $region76: #{tpu_custom_call.1} parent=1 // pred_region
      %119 = sst [smem:[#allocation20]] [#allocation19]
      %120 = sst [smem:[#allocation21]] [#allocation18]
    $region77: #{tpu_custom_call.1} parent=1 // pred_fallthru
      _
    %122 = shalt.err (0)
    %s124 = sshll.u32 [#allocation6], 4
    %s125 = int_to_ptr.vmem [resolvable:$true] %s124
    %127 = dma.hbm_to_vmem [thread:$0]  %s1, 1024, %s125, [#allocation7]
    %v128 = vld [vmem:[#allocation8] sm:$0xff]
    %v129 = vld [vmem:[#allocation8 + $0x8] sm:$0xff]
    %v130 = vld [vmem:[#allocation8 + $0x10] sm:$0xff]
    %v131 = vld [vmem:[#allocation8 + $0x18] sm:$0xff]
    %v132 = vld [vmem:[#allocation8 + $0x20] sm:$0xff]
    %v133 = vld [vmem:[#allocation8 + $0x28] sm:$0xff]
    %v134 = vld [vmem:[#allocation8 + $0x30] sm:$0xff]
    %v135 = vld [vmem:[#allocation8 + $0x38] sm:$0xff]
    %v136 = vld [vmem:[#allocation8 + $0x40] sm:$0xff]
    %v137 = vld [vmem:[#allocation8 + $0x48] sm:$0xff]
    %v138 = vld [vmem:[#allocation8 + $0x50] sm:$0xff]
    %v139 = vld [vmem:[#allocation8 + $0x58] sm:$0xff]
    %v140 = vld [vmem:[#allocation8 + $0x60] sm:$0xff]
    %v141 = vld [vmem:[#allocation8 + $0x68] sm:$0xff]
    %v142 = vld [vmem:[#allocation8 + $0x70] sm:$0xff]
    %v143 = vld [vmem:[#allocation8 + $0x78] sm:$0xff]
    %v144 = vpack.c.bf16 %v129, %v128
    %v145 = vpack.c.bf16 %v131, %v130
    %v146 = vpack.c.bf16 %v133, %v132
    %v147 = vpack.c.bf16 %v135, %v134
    %v148 = vpack.c.bf16 %v137, %v136
    %v149 = vpack.c.bf16 %v139, %v138
    %v150 = vpack.c.bf16 %v141, %v140
    %v151 = vpack.c.bf16 %v143, %v142
    %v152 = vld [vmem:[#allocation11] sm:$0xf]
    %v153 = vld [vmem:[#allocation11 + $0x4] sm:$0xf]
    %v154 = vld [vmem:[#allocation11 + $0x8] sm:$0xf]
    %v155 = vld [vmem:[#allocation11 + $0xc] sm:$0xf]
    %v156 = vld [vmem:[#allocation11 + $0x10] sm:$0xf]
    %v157 = vld [vmem:[#allocation11 + $0x14] sm:$0xf]
    %v158 = vld [vmem:[#allocation11 + $0x18] sm:$0xf]
    %v159 = vld [vmem:[#allocation11 + $0x1c] sm:$0xf]
    %v160 = vld [vmem:[#allocation11 + $0x20] sm:$0xf]
    %v161 = vld [vmem:[#allocation11 + $0x24] sm:$0xf]
    %v162 = vld [vmem:[#allocation11 + $0x28] sm:$0xf]
    %v163 = vld [vmem:[#allocation11 + $0x2c] sm:$0xf]
    %v164 = vld [vmem:[#allocation11 + $0x30] sm:$0xf]
    %v165 = vld [vmem:[#allocation11 + $0x34] sm:$0xf]
    %v166 = vld [vmem:[#allocation11 + $0x38] sm:$0xf]
    %v167 = vld [vmem:[#allocation11 + $0x3c] sm:$0xf]
    %v184 = vunpack.c.l.b16 %v152
    %v185 = vunpack.c.l.b16 %v153
    %v186 = vunpack.c.l.b16 %v154
    %v187 = vunpack.c.l.b16 %v155
    %v188 = vunpack.c.l.b16 %v156
    %v189 = vunpack.c.l.b16 %v157
    %v190 = vunpack.c.l.b16 %v158
    %v191 = vunpack.c.l.b16 %v159
    %v192 = vunpack.c.l.b16 %v160
    %v193 = vunpack.c.l.b16 %v161
    %v194 = vunpack.c.l.b16 %v162
    %v195 = vunpack.c.l.b16 %v163
    %v196 = vunpack.c.l.b16 %v164
    %v197 = vunpack.c.l.b16 %v165
    %v198 = vunpack.c.l.b16 %v166
    %v199 = vunpack.c.l.b16 %v167
    %v200 = vpack.c.b16 %v185, %v184
    %v201 = vpack.c.b16 %v187, %v186
    %v202 = vpack.c.b16 %v189, %v188
    %v203 = vpack.c.b16 %v191, %v190
    %v204 = vpack.c.b16 %v193, %v192
    %v205 = vpack.c.b16 %v195, %v194
    %v206 = vpack.c.b16 %v197, %v196
    %v207 = vpack.c.b16 %v199, %v198
    %216 = vmatprep.subr.bf16.mxu0 0
    %217 = vmatpush1.bf16.msra.mxu0 %v200
    %218 = vmatprep.subr.bf16.mxu0 0
    %219 = vmatpush1.bf16.msra.mxu0 %v201
    %220 = vmatprep.subr.bf16.mxu0 0
    %221 = vmatpush1.bf16.msra.mxu0 %v202
    %222 = vmatprep.subr.bf16.mxu0 0
    %223 = vmatpush1.bf16.msra.mxu0 %v203
    %224 = vmatprep.subr.bf16.mxu0 0
    %225 = vmatpush1.bf16.msra.mxu0 %v204
    %226 = vmatprep.subr.bf16.mxu0 0
    %227 = vmatpush1.bf16.msra.mxu0 %v205
    %228 = vmatprep.subr.bf16.mxu0 0
    %229 = vmatpush1.bf16.msra.mxu0 %v206
    %230 = vmatprep.subr.bf16.mxu0 0
    %231 = vmatpush1.bf16.msra.mxu0 %v207
    %232 = vmatprep.subr.bf16.mxu0 0
    %233 = vmatpush1.bf16.msra.mxu0 0
    %234 = vmatprep.subr.bf16.mxu0 0
    %235 = vmatpush1.bf16.msra.mxu0 0
    %236 = vmatprep.subr.bf16.mxu0 0
    %237 = vmatpush1.bf16.msra.mxu0 0
    %238 = vmatprep.subr.bf16.mxu0 0
    %239 = vmatpush1.bf16.msra.mxu0 0
    %240 = vmatprep.subr.bf16.mxu0 0
    %241 = vmatpush1.bf16.msra.mxu0 0
    %242 = vmatprep.subr.bf16.mxu0 0
    %243 = vmatpush1.bf16.msra.mxu0 0
    %244 = vmatprep.subr.bf16.mxu0 0
    %245 = vmatpush1.bf16.msra.mxu0 0
    %246 = vmatprep.subr.bf16.mxu0 0
    %247 = vmatpush1.bf16.msra.mxu0 0
    %248 = vmatprep.mubr.bf16.mxu0 0
    %249 = vmatmul.mubr.bf16.gmra.mrb[0].mxu0 %v144
    %v250 = vpop.f32.mrb[0].mxu0
    %v251 = vadd.f32 0.0, %v250
    %v252 = vpop.f32.mrb[0].mxu0
    %v253 = vpop.f32.mrb[0].mxu0
    %v254 = vadd.f32 0.0, %v253
    %v255 = vpop.f32.mrb[0].mxu0
    %256 = vmatprep.mubr.bf16.mxu0 0
    %257 = vmatmul.mubr.bf16.gmra.mrb[0].mxu0 %v145
    %v258 = vpop.f32.mrb[0].mxu0
    %v259 = vadd.f32 0.0, %v258
    %v260 = vpop.f32.mrb[0].mxu0
    %v261 = vpop.f32.mrb[0].mxu0
    %v262 = vadd.f32 0.0, %v261
    %v263 = vpop.f32.mrb[0].mxu0
    %264 = vmatprep.mubr.bf16.mxu0 0
    %265 = vmatmul.mubr.bf16.gmra.mrb[0].mxu0 %v146
    %v266 = vpop.f32.mrb[0].mxu0
    %v267 = vadd.f32 0.0, %v266
    %v268 = vpop.f32.mrb[0].mxu0
    %v269 = vpop.f32.mrb[0].mxu0
    %v270 = vadd.f32 0.0, %v269
    %v271 = vpop.f32.mrb[0].mxu0
    %272 = vmatprep.mubr.bf16.mxu0 0
    %273 = vmatmul.mubr.bf16.gmra.mrb[0].mxu0 %v147
    %v274 = vpop.f32.mrb[0].mxu0
    %v275 = vadd.f32 0.0, %v274
    %v276 = vpop.f32.mrb[0].mxu0
    %v277 = vpop.f32.mrb[0].mxu0
    %v278 = vadd.f32 0.0, %v277
    %v279 = vpop.f32.mrb[0].mxu0
    %280 = vmatprep.mubr.bf16.mxu0 0
    %281 = vmatmul.mubr.bf16.gmra.mrb[0].mxu0 %v148
    %v282 = vpop.f32.mrb[0].mxu0
    %v283 = vadd.f32 0.0, %v282
    %v284 = vpop.f32.mrb[0].mxu0
    %v285 = vpop.f32.mrb[0].mxu0
    %v286 = vadd.f32 0.0, %v285
    %v287 = vpop.f32.mrb[0].mxu0
    %288 = vmatprep.mubr.bf16.mxu0 0
    %289 = vmatmul.mubr.bf16.gmra.mrb[0].mxu0 %v149
    %v290 = vpop.f32.mrb[0].mxu0
    %v291 = vadd.f32 0.0, %v290
    %v292 = vpop.f32.mrb[0].mxu0
    %v293 = vpop.f32.mrb[0].mxu0
    %v294 = vadd.f32 0.0, %v293
    %v295 = vpop.f32.mrb[0].mxu0
    %296 = vmatprep.mubr.bf16.mxu0 0
    %297 = vmatmul.mubr.bf16.gmra.mrb[0].mxu0 %v150
    %v298 = vpop.f32.mrb[0].mxu0
    %v299 = vadd.f32 0.0, %v298
    %v300 = vpop.f32.mrb[0].mxu0
    %v301 = vpop.f32.mrb[0].mxu0
    %v302 = vadd.f32 0.0, %v301
    %v303 = vpop.f32.mrb[0].mxu0
    %304 = vmatprep.mubr.bf16.mxu0 0
    %305 = vmatmul.mubr.bf16.gmra.mrb[0].mxu0 %v151
    %v306 = vpop.f32.mrb[0].mxu0
    %v307 = vadd.f32 0.0, %v306
    %v308 = vpop.f32.mrb[0].mxu0
    %v309 = vpop.f32.mrb[0].mxu0
    %v310 = vadd.f32 0.0, %v309
    %v311 = vpop.f32.mrb[0].mxu0
    %312 = vdwg.mxu0
    %v313 = vpack.c.bf16 %v254, %v251
    %v314 = vpack.c.bf16 %v262, %v259
    %v315 = vpack.c.bf16 %v270, %v267
    %v316 = vpack.c.bf16 %v278, %v275
    %v317 = vpack.c.bf16 %v286, %v283
    %v318 = vpack.c.bf16 %v294, %v291
    %v319 = vpack.c.bf16 %v302, %v299
    %v320 = vpack.c.bf16 %v310, %v307
    %321 = vst [vmem:[#allocation2] sm:$0xff] %v313
    %322 = vst [vmem:[#allocation2 + $0x8] sm:$0xff] %v314
    %323 = vst [vmem:[#allocation2 + $0x10] sm:$0xff] %v315
    %324 = vst [vmem:[#allocation2 + $0x18] sm:$0xff] %v316
    %325 = vst [vmem:[#allocation2 + $0x20] sm:$0xff] %v317
    %326 = vst [vmem:[#allocation2 + $0x28] sm:$0xff] %v318
    %327 = vst [vmem:[#allocation2 + $0x30] sm:$0xff] %v319
    %328 = vst [vmem:[#allocation2 + $0x38] sm:$0xff] %v320
    %345 = vrot.lane.b32.xlu0 %v251, 96
    %v346 = vpop.permute.xlu0 %345
    %347 = vrot.lane.b32.xlu0 %v254, 96
    %v348 = vpop.permute.xlu0 %347
    %349 = vrot.lane.b32.xlu0 %v259, 96
    %v350 = vpop.permute.xlu0 %349
    %351 = vrot.lane.b32.xlu0 %v262, 96
    %v352 = vpop.permute.xlu0 %351
    %353 = vrot.lane.b32.xlu0 %v267, 96
    %v354 = vpop.permute.xlu0 %353
    %355 = vrot.lane.b32.xlu0 %v270, 96
    %v356 = vpop.permute.xlu0 %355
    %357 = vrot.lane.b32.xlu0 %v275, 96
    %v358 = vpop.permute.xlu0 %357
    %359 = vrot.lane.b32.xlu0 %v278, 96
    %v360 = vpop.permute.xlu0 %359
    %361 = vrot.lane.b32.xlu0 %v283, 96
    %v362 = vpop.permute.xlu0 %361
    %363 = vrot.lane.b32.xlu0 %v286, 96
    %v364 = vpop.permute.xlu0 %363
    %365 = vrot.lane.b32.xlu0 %v291, 96
    %v366 = vpop.permute.xlu0 %365
    %367 = vrot.lane.b32.xlu0 %v294, 96
    %v368 = vpop.permute.xlu0 %367
    %369 = vrot.lane.b32.xlu0 %v299, 96
    %v370 = vpop.permute.xlu0 %369
    %371 = vrot.lane.b32.xlu0 %v302, 96
    %v372 = vpop.permute.xlu0 %371
    %373 = vrot.lane.b32.xlu0 %v307, 96
    %v374 = vpop.permute.xlu0 %373
    %375 = vrot.lane.b32.xlu0 %v310, 96
    %v376 = vpop.permute.xlu0 %375
    %vm393 = vcmask 7168
    %394 = vst.msk [vmem:[#allocation3] sm:$0xff] %vm393, %v346
    %395 = vst.msk [vmem:[#allocation3 + $0x8] sm:$0xff] %vm393, %v348
    %396 = vst.msk [vmem:[#allocation3 + $0x10] sm:$0xff] %vm393, %v350
    %397 = vst.msk [vmem:[#allocation3 + $0x18] sm:$0xff] %vm393, %v352
    %398 = vst.msk [vmem:[#allocation3 + $0x20] sm:$0xff] %vm393, %v354
    %399 = vst.msk [vmem:[#allocation3 + $0x28] sm:$0xff] %vm393, %v356
    %400 = vst.msk [vmem:[#allocation3 + $0x30] sm:$0xff] %vm393, %v358
    %401 = vst.msk [vmem:[#allocation3 + $0x38] sm:$0xff] %vm393, %v360
    %402 = vst.msk [vmem:[#allocation3 + $0x40] sm:$0xff] %vm393, %v362
    %403 = vst.msk [vmem:[#allocation3 + $0x48] sm:$0xff] %vm393, %v364
    %404 = vst.msk [vmem:[#allocation3 + $0x50] sm:$0xff] %vm393, %v366
    %405 = vst.msk [vmem:[#allocation3 + $0x58] sm:$0xff] %vm393, %v368
    %406 = vst.msk [vmem:[#allocation3 + $0x60] sm:$0xff] %vm393, %v370
    %407 = vst.msk [vmem:[#allocation3 + $0x68] sm:$0xff] %vm393, %v372
    %408 = vst.msk [vmem:[#allocation3 + $0x70] sm:$0xff] %vm393, %v374
    %409 = vst.msk [vmem:[#allocation3 + $0x78] sm:$0xff] %vm393, %v376
    %v410 = vld [vmem:[%s4] sm:$0x1]
    %411 = vmatprep.subr.bf16.mxu0 0
    %412 = vmatpush1.bf16.xpose.msra.mxu0 %v313
    %413 = vmatprep.subr.bf16.mxu0 0
    %414 = vmatpush1.bf16.xpose.msra.mxu0 %v314
    %415 = vmatprep.subr.bf16.mxu0 0
    %416 = vmatpush1.bf16.xpose.msra.mxu0 %v315
    %417 = vmatprep.subr.bf16.mxu0 0
    %418 = vmatpush1.bf16.xpose.msra.mxu0 %v316
    %419 = vmatprep.subr.bf16.mxu0 0
    %420 = vmatpush1.bf16.xpose.msra.mxu0 %v317
    %421 = vmatprep.subr.bf16.mxu0 0
    %422 = vmatpush1.bf16.xpose.msra.mxu0 %v318
    %423 = vmatprep.subr.bf16.mxu0 0
    %424 = vmatpush1.bf16.xpose.msra.mxu0 %v319
    %425 = vmatprep.subr.bf16.mxu0 0
    %426 = vmatpush1.bf16.xpose.msra.mxu0 %v320
    %427 = vmatprep.subr.bf16.mxu0 0
    %428 = vmatpush1.bf16.xpose.msra.mxu0 0
    %429 = vmatprep.subr.bf16.mxu0 0
    %430 = vmatpush1.bf16.xpose.msra.mxu0 0
    %431 = vmatprep.subr.bf16.mxu0 0
    %432 = vmatpush1.bf16.xpose.msra.mxu0 0
    %433 = vmatprep.subr.bf16.mxu0 0
    %434 = vmatpush1.bf16.xpose.msra.mxu0 0
    %435 = vmatprep.subr.bf16.mxu0 0
    %436 = vmatpush1.bf16.xpose.msra.mxu0 0
    %437 = vmatprep.subr.bf16.mxu0 0
    %438 = vmatpush1.bf16.xpose.msra.mxu0 0
    %439 = vmatprep.subr.bf16.mxu0 0
    %440 = vmatpush1.bf16.xpose.msra.mxu0 0
    %441 = vmatprep.subr.bf16.mxu0 0
    %442 = vmatpush1.bf16.xpose.msra.mxu0 0
    %443 = vmatprep.mubr.bf16.mxu0 0
    %444 = vmatmul.mubr.bf16.gmra.mrb[0].mxu0 %v410
    %v445 = vpop.f32.mrb[0].mxu0
    %v446 = vadd.f32 0.0, %v445
    %v447 = vpop.f32.mrb[0].mxu0
    %v448 = vpop.f32.mrb[0].mxu0
    %v449 = vpop.f32.mrb[0].mxu0
    %450 = vdwg.mxu0
    %v451 = vld [vmem:[%s5] sm:$0x1]
    %s452 = smul.u32 4, 16
    %s453 = smul.u32 %s452, 1
    %s454 = sshll.u32 %s453, 4
    %455 = dma.done [#allocation7], %s454
    %v456 = vld [vmem:[#allocation3] sm:$0xff]
    %v457 = vld [vmem:[#allocation3 + $0x8] sm:$0xff]
    %v458 = vld [vmem:[#allocation3 + $0x10] sm:$0xff]
    %v459 = vld [vmem:[#allocation3 + $0x18] sm:$0xff]
    %v460 = vld [vmem:[#allocation3 + $0x20] sm:$0xff]
    %v461 = vld [vmem:[#allocation3 + $0x28] sm:$0xff]
    %v462 = vld [vmem:[#allocation3 + $0x30] sm:$0xff]
    %v463 = vld [vmem:[#allocation3 + $0x38] sm:$0xff]
    %v464 = vld [vmem:[#allocation3 + $0x40] sm:$0xff]
    %v465 = vld [vmem:[#allocation3 + $0x48] sm:$0xff]
    %v466 = vld [vmem:[#allocation3 + $0x50] sm:$0xff]
    %v467 = vld [vmem:[#allocation3 + $0x58] sm:$0xff]
    %v468 = vld [vmem:[#allocation3 + $0x60] sm:$0xff]
    %v469 = vld [vmem:[#allocation3 + $0x68] sm:$0xff]
    %v470 = vld [vmem:[#allocation3 + $0x70] sm:$0xff]
    %v471 = vld [vmem:[#allocation3 + $0x78] sm:$0xff]
    %473 = vset.pattern.permute.xlu0 0
    %474 = vperm.xlu0 %473, %v456
    %v475 = vpop.permute.xlu0 %474
    %478 = vset.pattern.permute.xlu0 0
    %479 = vperm.xlu0 %478, %v457
    %v480 = vpop.permute.xlu0 %479
    %483 = vset.pattern.permute.xlu0 0
    %484 = vperm.xlu0 %483, %v458
    %v485 = vpop.permute.xlu0 %484
    %488 = vset.pattern.permute.xlu0 0
    %489 = vperm.xlu0 %488, %v459
    %v490 = vpop.permute.xlu0 %489
    %493 = vset.pattern.permute.xlu0 0
    %494 = vperm.xlu0 %493, %v460
    %v495 = vpop.permute.xlu0 %494
    %498 = vset.pattern.permute.xlu0 0
    %499 = vperm.xlu0 %498, %v461
    %v500 = vpop.permute.xlu0 %499
    %503 = vset.pattern.permute.xlu0 0
    %504 = vperm.xlu0 %503, %v462
    %v505 = vpop.permute.xlu0 %504
    %508 = vset.pattern.permute.xlu0 0
    %509 = vperm.xlu0 %508, %v463
    %v510 = vpop.permute.xlu0 %509
    %513 = vset.pattern.permute.xlu0 0
    %514 = vperm.xlu0 %513, %v464
    %v515 = vpop.permute.xlu0 %514
    %518 = vset.pattern.permute.xlu0 0
    %519 = vperm.xlu0 %518, %v465
    %v520 = vpop.permute.xlu0 %519
    %523 = vset.pattern.permute.xlu0 0
    %524 = vperm.xlu0 %523, %v466
    %v525 = vpop.permute.xlu0 %524
    %528 = vset.pattern.permute.xlu0 0
    %529 = vperm.xlu0 %528, %v467
    %v530 = vpop.permute.xlu0 %529
    %533 = vset.pattern.permute.xlu0 0
    %534 = vperm.xlu0 %533, %v468
    %v535 = vpop.permute.xlu0 %534
    %538 = vset.pattern.permute.xlu0 0
    %539 = vperm.xlu0 %538, %v469
    %v540 = vpop.permute.xlu0 %539
    %543 = vset.pattern.permute.xlu0 0
    %544 = vperm.xlu0 %543, %v470
    %v545 = vpop.permute.xlu0 %544
    %548 = vset.pattern.permute.xlu0 0
    %549 = vperm.xlu0 %548, %v471
    %v550 = vpop.permute.xlu0 %549
    %v552 = vlaneseq
    %v553 = vshrl.u32 %v552, 7
    %v554 = vsub.s32 0, %v553
    %v555 = vrot.slane %v446, %v554
    %v556 = vadd.f32 %v475, %v555
    %v557 = vadd.f32 %v480, %v555
    %v558 = vadd.f32 %v485, %v555
    %v559 = vadd.f32 %v490, %v555
    %v560 = vadd.f32 %v495, %v555
    %v561 = vadd.f32 %v500, %v555
    %v562 = vadd.f32 %v505, %v555
    %v563 = vadd.f32 %v510, %v555
    %v564 = vadd.f32 %v515, %v555
    %v565 = vadd.f32 %v520, %v555
    %v566 = vadd.f32 %v525, %v555
    %v567 = vadd.f32 %v530, %v555
    %v568 = vadd.f32 %v535, %v555
    %v569 = vadd.f32 %v540, %v555
    %v570 = vadd.f32 %v545, %v555
    %v571 = vadd.f32 %v550, %v555
    %vm572 = vcmp.gt.f32.partialorder %v556, 0.0
    %vm573 = vcmp.gt.f32.partialorder %v557, 0.0
    %vm574 = vcmp.gt.f32.partialorder %v558, 0.0
    %vm575 = vcmp.gt.f32.partialorder %v559, 0.0
    %vm576 = vcmp.gt.f32.partialorder %v560, 0.0
    %vm577 = vcmp.gt.f32.partialorder %v561, 0.0
    %vm578 = vcmp.gt.f32.partialorder %v562, 0.0
    %vm579 = vcmp.gt.f32.partialorder %v563, 0.0
    %vm580 = vcmp.gt.f32.partialorder %v564, 0.0
    %vm581 = vcmp.gt.f32.partialorder %v565, 0.0
    %vm582 = vcmp.gt.f32.partialorder %v566, 0.0
    %vm583 = vcmp.gt.f32.partialorder %v567, 0.0
    %vm584 = vcmp.gt.f32.partialorder %v568, 0.0
    %vm585 = vcmp.gt.f32.partialorder %v569, 0.0
    %vm586 = vcmp.gt.f32.partialorder %v570, 0.0
    %vm587 = vcmp.gt.f32.partialorder %v571, 0.0
    %v588 = vmul.f32 %v556, 0.2
    %v589 = vmul.f32 %v557, 0.2
    %v590 = vmul.f32 %v558, 0.2
    %v591 = vmul.f32 %v559, 0.2
    %v592 = vmul.f32 %v560, 0.2
    %v593 = vmul.f32 %v561, 0.2
    %v594 = vmul.f32 %v562, 0.2
    %v595 = vmul.f32 %v563, 0.2
    %v596 = vmul.f32 %v564, 0.2
    %v597 = vmul.f32 %v565, 0.2
    %v598 = vmul.f32 %v566, 0.2
    %v599 = vmul.f32 %v567, 0.2
    %v600 = vmul.f32 %v568, 0.2
    %v601 = vmul.f32 %v569, 0.2
    %v602 = vmul.f32 %v570, 0.2
    %v603 = vmul.f32 %v571, 0.2
    %v604 = vsel %vm572, %v556, %v588
    %v605 = vsel %vm573, %v557, %v589
    %v606 = vsel %vm574, %v558, %v590
    %v607 = vsel %vm575, %v559, %v591
    %v608 = vsel %vm576, %v560, %v592
    %v609 = vsel %vm577, %v561, %v593
    %v610 = vsel %vm578, %v562, %v594
    %v611 = vsel %vm579, %v563, %v595
    %v612 = vsel %vm580, %v564, %v596
    %v613 = vsel %vm581, %v565, %v597
    %v614 = vsel %vm582, %v566, %v598
    %v615 = vsel %vm583, %v567, %v599
    %v616 = vsel %vm584, %v568, %v600
    %v617 = vsel %vm585, %v569, %v601
    %v618 = vsel %vm586, %v570, %v602
    %v619 = vsel %vm587, %v571, %v603
    %v620 = vld [vmem:[#allocation6] sm:$0xff]
    %v621 = vld [vmem:[#allocation6 + $0x8] sm:$0xff]
    %v622 = vld [vmem:[#allocation6 + $0x10] sm:$0xff]
    %v623 = vld [vmem:[#allocation6 + $0x18] sm:$0xff]
    %v624 = vld [vmem:[#allocation6 + $0x20] sm:$0xff]
    %v625 = vld [vmem:[#allocation6 + $0x28] sm:$0xff]
    %v626 = vld [vmem:[#allocation6 + $0x30] sm:$0xff]
    %v627 = vld [vmem:[#allocation6 + $0x38] sm:$0xff]
    %vm628 = vcmp.gt.bf16.partialorder %v620, 0
    %vm629 = vcmp.gt.bf16.partialorder %v621, 0
    %vm630 = vcmp.gt.bf16.partialorder %v622, 0
    %vm631 = vcmp.gt.bf16.partialorder %v623, 0
    %vm632 = vcmp.gt.bf16.partialorder %v624, 0
    %vm633 = vcmp.gt.bf16.partialorder %v625, 0
    %vm634 = vcmp.gt.bf16.partialorder %v626, 0
    %vm635 = vcmp.gt.bf16.partialorder %v627, 0
    %v636 = vsel %vm628, 65537, 0
    %v637 = vsel %vm629, 65537, 0
    %v638 = vsel %vm630, 65537, 0
    %v639 = vsel %vm631, 65537, 0
    %v640 = vsel %vm632, 65537, 0
    %v641 = vsel %vm633, 65537, 0
    %v642 = vsel %vm634, 65537, 0
    %v643 = vsel %vm635, 65537, 0
    %v644 = vunpack.c.l.b16 %v636
    %v645 = vunpack.c.h.b16 %v636
    %v646 = vunpack.c.l.b16 %v637
    %v647 = vunpack.c.h.b16 %v637
    %v648 = vunpack.c.l.b16 %v638
    %v649 = vunpack.c.h.b16 %v638
    %v650 = vunpack.c.l.b16 %v639
    %v651 = vunpack.c.h.b16 %v639
    %v652 = vunpack.c.l.b16 %v640
    %v653 = vunpack.c.h.b16 %v640
    %v654 = vunpack.c.l.b16 %v641
    %v655 = vunpack.c.h.b16 %v641
    %v656 = vunpack.c.l.b16 %v642
    %v657 = vunpack.c.h.b16 %v642
    %v658 = vunpack.c.l.b16 %v643
    %v659 = vunpack.c.h.b16 %v643
    %v660 = vpack.c.b16 %v644, %v644
    %v661 = vpack.c.b16 %v645, %v645
    %v662 = vpack.c.b16 %v646, %v646
    %v663 = vpack.c.b16 %v647, %v647
    %v664 = vpack.c.b16 %v648, %v648
    %v665 = vpack.c.b16 %v649, %v649
    %v666 = vpack.c.b16 %v650, %v650
    %v667 = vpack.c.b16 %v651, %v651
    %v668 = vpack.c.b16 %v652, %v652
    %v669 = vpack.c.b16 %v653, %v653
    %v670 = vpack.c.b16 %v654, %v654
    %v671 = vpack.c.b16 %v655, %v655
    %v672 = vpack.c.b16 %v656, %v656
    %v673 = vpack.c.b16 %v657, %v657
    %v674 = vpack.c.b16 %v658, %v658
    %v675 = vpack.c.b16 %v659, %v659
    %vm676 = vcmp.ne.s16.totalorder %v660, 0
    %vm677 = vcmp.ne.s16.totalorder %v661, 0
    %vm678 = vcmp.ne.s16.totalorder %v662, 0
    %vm679 = vcmp.ne.s16.totalorder %v663, 0
    %vm680 = vcmp.ne.s16.totalorder %v664, 0
    %vm681 = vcmp.ne.s16.totalorder %v665, 0
    %vm682 = vcmp.ne.s16.totalorder %v666, 0
    %vm683 = vcmp.ne.s16.totalorder %v667, 0
    %vm684 = vcmp.ne.s16.totalorder %v668, 0
    %vm685 = vcmp.ne.s16.totalorder %v669, 0
    %vm686 = vcmp.ne.s16.totalorder %v670, 0
    %vm687 = vcmp.ne.s16.totalorder %v671, 0
    %vm688 = vcmp.ne.s16.totalorder %v672, 0
    %vm689 = vcmp.ne.s16.totalorder %v673, 0
    %vm690 = vcmp.ne.s16.totalorder %v674, 0
    %vm691 = vcmp.ne.s16.totalorder %v675, 0
    %v692 = vsel %vm676, 65537, 0
    %v693 = vsel %vm677, 65537, 0
    %v694 = vsel %vm678, 65537, 0
    %v695 = vsel %vm679, 65537, 0
    %v696 = vsel %vm680, 65537, 0
    %v697 = vsel %vm681, 65537, 0
    %v698 = vsel %vm682, 65537, 0
    %v699 = vsel %vm683, 65537, 0
    %v700 = vsel %vm684, 65537, 0
    %v701 = vsel %vm685, 65537, 0
    %v702 = vsel %vm686, 65537, 0
    %v703 = vsel %vm687, 65537, 0
    %v704 = vsel %vm688, 65537, 0
    %v705 = vsel %vm689, 65537, 0
    %v706 = vsel %vm690, 65537, 0
    %v707 = vsel %vm691, 65537, 0
    %v708 = vunpack.c.l.b16 %v692
    %v709 = vunpack.c.l.b16 %v693
    %v710 = vunpack.c.l.b16 %v694
    %v711 = vunpack.c.l.b16 %v695
    %v712 = vunpack.c.l.b16 %v696
    %v713 = vunpack.c.l.b16 %v697
    %v714 = vunpack.c.l.b16 %v698
    %v715 = vunpack.c.l.b16 %v699
    %v716 = vunpack.c.l.b16 %v700
    %v717 = vunpack.c.l.b16 %v701
    %v718 = vunpack.c.l.b16 %v702
    %v719 = vunpack.c.l.b16 %v703
    %v720 = vunpack.c.l.b16 %v704
    %v721 = vunpack.c.l.b16 %v705
    %v722 = vunpack.c.l.b16 %v706
    %v723 = vunpack.c.l.b16 %v707
    %vm724 = vcmp.ne.s32.totalorder %v708, 0
    %vm725 = vcmp.ne.s32.totalorder %v709, 0
    %vm726 = vcmp.ne.s32.totalorder %v710, 0
    %vm727 = vcmp.ne.s32.totalorder %v711, 0
    %vm728 = vcmp.ne.s32.totalorder %v712, 0
    %vm729 = vcmp.ne.s32.totalorder %v713, 0
    %vm730 = vcmp.ne.s32.totalorder %v714, 0
    %vm731 = vcmp.ne.s32.totalorder %v715, 0
    %vm732 = vcmp.ne.s32.totalorder %v716, 0
    %vm733 = vcmp.ne.s32.totalorder %v717, 0
    %vm734 = vcmp.ne.s32.totalorder %v718, 0
    %vm735 = vcmp.ne.s32.totalorder %v719, 0
    %vm736 = vcmp.ne.s32.totalorder %v720, 0
    %vm737 = vcmp.ne.s32.totalorder %v721, 0
    %vm738 = vcmp.ne.s32.totalorder %v722, 0
    %vm739 = vcmp.ne.s32.totalorder %v723, 0
    %v740 = vsel %vm724, %v604, -1e+30
    %v741 = vsel %vm725, %v605, -1e+30
    %v742 = vsel %vm726, %v606, -1e+30
    %v743 = vsel %vm727, %v607, -1e+30
    %v744 = vsel %vm728, %v608, -1e+30
    %v745 = vsel %vm729, %v609, -1e+30
    %v746 = vsel %vm730, %v610, -1e+30
    %v747 = vsel %vm731, %v611, -1e+30
    %v748 = vsel %vm732, %v612, -1e+30
    %v749 = vsel %vm733, %v613, -1e+30
    %v750 = vsel %vm734, %v614, -1e+30
    %v751 = vsel %vm735, %v615, -1e+30
    %v752 = vsel %vm736, %v616, -1e+30
    %v753 = vsel %vm737, %v617, -1e+30
    %v754 = vsel %vm738, %v618, -1e+30
    %v755 = vsel %vm739, %v619, -1e+30
    %756 = vmax.xlane.f32.xlu0 %v740
    %v757 = vpop.xlane.xlu0 %756
    %758 = vmax.xlane.f32.xlu0 %v741
    %v759 = vpop.xlane.xlu0 %758
    %760 = vmax.xlane.f32.xlu0 %v742
    %v761 = vpop.xlane.xlu0 %760
    %762 = vmax.xlane.f32.xlu0 %v743
    %v763 = vpop.xlane.xlu0 %762
    %764 = vmax.xlane.f32.xlu0 %v744
    %v765 = vpop.xlane.xlu0 %764
    %766 = vmax.xlane.f32.xlu0 %v745
    %v767 = vpop.xlane.xlu0 %766
    %768 = vmax.xlane.f32.xlu0 %v746
    %v769 = vpop.xlane.xlu0 %768
    %770 = vmax.xlane.f32.xlu0 %v747
    %v771 = vpop.xlane.xlu0 %770
    %772 = vmax.xlane.f32.xlu0 %v748
    %v773 = vpop.xlane.xlu0 %772
    %774 = vmax.xlane.f32.xlu0 %v749
    %v775 = vpop.xlane.xlu0 %774
    %776 = vmax.xlane.f32.xlu0 %v750
    %v777 = vpop.xlane.xlu0 %776
    %778 = vmax.xlane.f32.xlu0 %v751
    %v779 = vpop.xlane.xlu0 %778
    %780 = vmax.xlane.f32.xlu0 %v752
    %v781 = vpop.xlane.xlu0 %780
    %782 = vmax.xlane.f32.xlu0 %v753
    %v783 = vpop.xlane.xlu0 %782
    %784 = vmax.xlane.f32.xlu0 %v754
    %v785 = vpop.xlane.xlu0 %784
    %786 = vmax.xlane.f32.xlu0 %v755
    %v787 = vpop.xlane.xlu0 %786
    %v788 = vsub.f32 %v740, %v757
    %v789 = vsub.f32 %v741, %v759
    %v790 = vsub.f32 %v742, %v761
    %v791 = vsub.f32 %v743, %v763
    %v792 = vsub.f32 %v744, %v765
    %v793 = vsub.f32 %v745, %v767
    %v794 = vsub.f32 %v746, %v769
    %v795 = vsub.f32 %v747, %v771
    %v796 = vsub.f32 %v748, %v773
    %v797 = vsub.f32 %v749, %v775
    %v798 = vsub.f32 %v750, %v777
    %v799 = vsub.f32 %v751, %v779
    %v800 = vsub.f32 %v752, %v781
    %v801 = vsub.f32 %v753, %v783
    %v802 = vsub.f32 %v754, %v785
    %v803 = vsub.f32 %v755, %v787
    %v804 = vmul.f32 %v788, 1.442695
    %v805 = vpow.pop %v804
    %v806 = vmul.f32 %v789, 1.442695
    %v807 = vpow.pop %v806
    %v808 = vmul.f32 %v790, 1.442695
    %v809 = vpow.pop %v808
    %v810 = vmul.f32 %v791, 1.442695
    %v811 = vpow.pop %v810
    %v812 = vmul.f32 %v792, 1.442695
    %v813 = vpow.pop %v812
    %v814 = vmul.f32 %v793, 1.442695
    %v815 = vpow.pop %v814
    %v816 = vmul.f32 %v794, 1.442695
    %v817 = vpow.pop %v816
    %v818 = vmul.f32 %v795, 1.442695
    %v819 = vpow.pop %v818
    %v820 = vmul.f32 %v796, 1.442695
    %v821 = vpow.pop %v820
    %v822 = vmul.f32 %v797, 1.442695
    %v823 = vpow.pop %v822
    %v824 = vmul.f32 %v798, 1.442695
    %v825 = vpow.pop %v824
    %v826 = vmul.f32 %v799, 1.442695
    %v827 = vpow.pop %v826
    %v828 = vmul.f32 %v800, 1.442695
    %v829 = vpow.pop %v828
    %v830 = vmul.f32 %v801, 1.442695
    %v831 = vpow.pop %v830
    %v832 = vmul.f32 %v802, 1.442695
    %v833 = vpow.pop %v832
    %v834 = vmul.f32 %v803, 1.442695
    %v835 = vpow.pop %v834
    %836 = vadd.xlane.f32.xlu0 %v805
    %v837 = vpop.xlane.xlu0 %836
    %838 = vadd.xlane.f32.xlu0 %v807
    %v839 = vpop.xlane.xlu0 %838
    %840 = vadd.xlane.f32.xlu0 %v809
    %v841 = vpop.xlane.xlu0 %840
    %842 = vadd.xlane.f32.xlu0 %v811
    %v843 = vpop.xlane.xlu0 %842
    %844 = vadd.xlane.f32.xlu0 %v813
    %v845 = vpop.xlane.xlu0 %844
    %846 = vadd.xlane.f32.xlu0 %v815
    %v847 = vpop.xlane.xlu0 %846
    %848 = vadd.xlane.f32.xlu0 %v817
    %v849 = vpop.xlane.xlu0 %848
    %850 = vadd.xlane.f32.xlu0 %v819
    %v851 = vpop.xlane.xlu0 %850
    %852 = vadd.xlane.f32.xlu0 %v821
    %v853 = vpop.xlane.xlu0 %852
    %854 = vadd.xlane.f32.xlu0 %v823
    %v855 = vpop.xlane.xlu0 %854
    %856 = vadd.xlane.f32.xlu0 %v825
    %v857 = vpop.xlane.xlu0 %856
    %858 = vadd.xlane.f32.xlu0 %v827
    %v859 = vpop.xlane.xlu0 %858
    %860 = vadd.xlane.f32.xlu0 %v829
    %v861 = vpop.xlane.xlu0 %860
    %862 = vadd.xlane.f32.xlu0 %v831
    %v863 = vpop.xlane.xlu0 %862
    %864 = vadd.xlane.f32.xlu0 %v833
    %v865 = vpop.xlane.xlu0 %864
    %866 = vadd.xlane.f32.xlu0 %v835
    %v867 = vpop.xlane.xlu0 %866
    %v868 = vrcp.pop %v837
    %v869 = vrcp.pop %v839
    %v870 = vrcp.pop %v841
    %v871 = vrcp.pop %v843
    %v872 = vrcp.pop %v845
    %v873 = vrcp.pop %v847
    %v874 = vrcp.pop %v849
    %v875 = vrcp.pop %v851
    %v876 = vrcp.pop %v853
    %v877 = vrcp.pop %v855
    %v878 = vrcp.pop %v857
    %v879 = vrcp.pop %v859
    %v880 = vrcp.pop %v861
    %v881 = vrcp.pop %v863
    %v882 = vrcp.pop %v865
    %v883 = vrcp.pop %v867
    %v884 = vmul.f32 %v805, %v868
    %v885 = vmul.f32 %v807, %v869
    %v886 = vmul.f32 %v809, %v870
    %v887 = vmul.f32 %v811, %v871
    %v888 = vmul.f32 %v813, %v872
    %v889 = vmul.f32 %v815, %v873
    %v890 = vmul.f32 %v817, %v874
    %v891 = vmul.f32 %v819, %v875
    %v892 = vmul.f32 %v821, %v876
    %v893 = vmul.f32 %v823, %v877
    %v894 = vmul.f32 %v825, %v878
    %v895 = vmul.f32 %v827, %v879
    %v896 = vmul.f32 %v829, %v880
    %v897 = vmul.f32 %v831, %v881
    %v898 = vmul.f32 %v833, %v882
    %v899 = vmul.f32 %v835, %v883
    %v900 = vpack.c.bf16 %v885, %v884
    %v901 = vpack.c.bf16 %v887, %v886
    %v902 = vpack.c.bf16 %v889, %v888
    %v903 = vpack.c.bf16 %v891, %v890
    %v904 = vpack.c.bf16 %v893, %v892
    %v905 = vpack.c.bf16 %v895, %v894
    %v906 = vpack.c.bf16 %v897, %v896
    %v907 = vpack.c.bf16 %v899, %v898
    %v908 = vld [vmem:[#allocation2] sm:$0xff]
    %v909 = vld [vmem:[#allocation2 + $0x8] sm:$0xff]
    %v910 = vld [vmem:[#allocation2 + $0x10] sm:$0xff]
    %v911 = vld [vmem:[#allocation2 + $0x18] sm:$0xff]
    %v912 = vld [vmem:[#allocation2 + $0x20] sm:$0xff]
    %v913 = vld [vmem:[#allocation2 + $0x28] sm:$0xff]
    %v914 = vld [vmem:[#allocation2 + $0x30] sm:$0xff]
    %v915 = vld [vmem:[#allocation2 + $0x38] sm:$0xff]
    %v917 = vlaneseq
    %v918 = vshrl.u32 %v917, 7
    %v919 = vsub.s32 0, %v918
    %v920 = vrot.slane %v451, %v919
    %922 = vmatprep.subr.bf16.mxu0 0
    %923 = vmatpush1.bf16.msra.mxu0 %v908
    %924 = vmatprep.subr.bf16.mxu0 0
    %925 = vmatpush1.bf16.msra.mxu0 %v909
    %926 = vmatprep.subr.bf16.mxu0 0
    %927 = vmatpush1.bf16.msra.mxu0 %v910
    %928 = vmatprep.subr.bf16.mxu0 0
    %929 = vmatpush1.bf16.msra.mxu0 %v911
    %930 = vmatprep.subr.bf16.mxu0 0
    %931 = vmatpush1.bf16.msra.mxu0 %v912
    %932 = vmatprep.subr.bf16.mxu0 0
    %933 = vmatpush1.bf16.msra.mxu0 %v913
    %934 = vmatprep.subr.bf16.mxu0 0
    %935 = vmatpush1.bf16.msra.mxu0 %v914
    %936 = vmatprep.subr.bf16.mxu0 0
    %937 = vmatpush1.bf16.msra.mxu0 %v915
    %938 = vmatprep.subr.bf16.mxu0 0
    %939 = vmatpush1.bf16.msra.mxu0 0
    %940 = vmatprep.subr.bf16.mxu0 0
    %941 = vmatpush1.bf16.msra.mxu0 0
    %942 = vmatprep.subr.bf16.mxu0 0
    %943 = vmatpush1.bf16.msra.mxu0 0
    %944 = vmatprep.subr.bf16.mxu0 0
    %945 = vmatpush1.bf16.msra.mxu0 0
    %946 = vmatprep.subr.bf16.mxu0 0
    %947 = vmatpush1.bf16.msra.mxu0 0
    %948 = vmatprep.subr.bf16.mxu0 0
    %949 = vmatpush1.bf16.msra.mxu0 0
    %950 = vmatprep.subr.bf16.mxu0 0
    %951 = vmatpush1.bf16.msra.mxu0 0
    %952 = vmatprep.subr.bf16.mxu0 0
    %953 = vmatpush1.bf16.msra.mxu0 0
    %954 = vmatprep.mubr.bf16.mxu0 0
    %955 = vmatmul.mubr.bf16.gmra.mrb[0].mxu0 %v900
    %v956 = vpop.f32.mrb[0].mxu0
    %v957 = vadd.f32 %v920, %v956
    %v958 = vpop.f32.mrb[0].mxu0
    %v959 = vpop.f32.mrb[0].mxu0
    %v960 = vadd.f32 %v920, %v959
    %v961 = vpop.f32.mrb[0].mxu0
    %962 = vmatprep.mubr.bf16.mxu0 0
    %963 = vmatmul.mubr.bf16.gmra.mrb[0].mxu0 %v901
    %v964 = vpop.f32.mrb[0].mxu0
    %v965 = vadd.f32 %v920, %v964
    %v966 = vpop.f32.mrb[0].mxu0
    %v967 = vpop.f32.mrb[0].mxu0
    %v968 = vadd.f32 %v920, %v967
    %v969 = vpop.f32.mrb[0].mxu0
    %970 = vmatprep.mubr.bf16.mxu0 0
    %971 = vmatmul.mubr.bf16.gmra.mrb[0].mxu0 %v902
    %v972 = vpop.f32.mrb[0].mxu0
    %v973 = vadd.f32 %v920, %v972
    %v974 = vpop.f32.mrb[0].mxu0
    %v975 = vpop.f32.mrb[0].mxu0
    %v976 = vadd.f32 %v920, %v975
    %v977 = vpop.f32.mrb[0].mxu0
    %978 = vmatprep.mubr.bf16.mxu0 0
    %979 = vmatmul.mubr.bf16.gmra.mrb[0].mxu0 %v903
    %v980 = vpop.f32.mrb[0].mxu0
    %v981 = vadd.f32 %v920, %v980
    %v982 = vpop.f32.mrb[0].mxu0
    %v983 = vpop.f32.mrb[0].mxu0
    %v984 = vadd.f32 %v920, %v983
    %v985 = vpop.f32.mrb[0].mxu0
    %986 = vmatprep.mubr.bf16.mxu0 0
    %987 = vmatmul.mubr.bf16.gmra.mrb[0].mxu0 %v904
    %v988 = vpop.f32.mrb[0].mxu0
    %v989 = vadd.f32 %v920, %v988
    %v990 = vpop.f32.mrb[0].mxu0
    %v991 = vpop.f32.mrb[0].mxu0
    %v992 = vadd.f32 %v920, %v991
    %v993 = vpop.f32.mrb[0].mxu0
    %994 = vmatprep.mubr.bf16.mxu0 0
    %995 = vmatmul.mubr.bf16.gmra.mrb[0].mxu0 %v905
    %v996 = vpop.f32.mrb[0].mxu0
    %v997 = vadd.f32 %v920, %v996
    %v998 = vpop.f32.mrb[0].mxu0
    %v999 = vpop.f32.mrb[0].mxu0
    %v1000 = vadd.f32 %v920, %v999
    %v1001 = vpop.f32.mrb[0].mxu0
    %1002 = vmatprep.mubr.bf16.mxu0 0
    %1003 = vmatmul.mubr.bf16.gmra.mrb[0].mxu0 %v906
    %v1004 = vpop.f32.mrb[0].mxu0
    %v1005 = vadd.f32 %v920, %v1004
    %v1006 = vpop.f32.mrb[0].mxu0
    %v1007 = vpop.f32.mrb[0].mxu0
    %v1008 = vadd.f32 %v920, %v1007
    %v1009 = vpop.f32.mrb[0].mxu0
    %1010 = vmatprep.mubr.bf16.mxu0 0
    %1011 = vmatmul.mubr.bf16.gmra.mrb[0].mxu0 %v907
    %v1012 = vpop.f32.mrb[0].mxu0
    %v1013 = vadd.f32 %v920, %v1012
    %v1014 = vpop.f32.mrb[0].mxu0
    %v1015 = vpop.f32.mrb[0].mxu0
    %v1016 = vadd.f32 %v920, %v1015
    %v1017 = vpop.f32.mrb[0].mxu0
    %1018 = vdwg.mxu0
    %v1019 = vmul.f32 %v957, 0.5
    %v1020 = vmul.f32 %v960, 0.5
    %v1021 = vmul.f32 %v965, 0.5
    %v1022 = vmul.f32 %v968, 0.5
    %v1023 = vmul.f32 %v973, 0.5
    %v1024 = vmul.f32 %v976, 0.5
    %v1025 = vmul.f32 %v981, 0.5
    %v1026 = vmul.f32 %v984, 0.5
    %v1027 = vmul.f32 %v989, 0.5
    %v1028 = vmul.f32 %v992, 0.5
    %v1029 = vmul.f32 %v997, 0.5
    %v1030 = vmul.f32 %v1000, 0.5
    %v1031 = vmul.f32 %v1005, 0.5
    %v1032 = vmul.f32 %v1008, 0.5
    %v1033 = vmul.f32 %v1013, 0.5
    %v1034 = vmul.f32 %v1016, 0.5
    %v1035 = vmul.f32 %v957, 0.70710677
    %v1036 = vmul.f32 %v960, 0.70710677
    %v1037 = vmul.f32 %v965, 0.70710677
    %v1038 = vmul.f32 %v968, 0.70710677
    %v1039 = vmul.f32 %v973, 0.70710677
    %v1040 = vmul.f32 %v976, 0.70710677
    %v1041 = vmul.f32 %v981, 0.70710677
    %v1042 = vmul.f32 %v984, 0.70710677
    %v1043 = vmul.f32 %v989, 0.70710677
    %v1044 = vmul.f32 %v992, 0.70710677
    %v1045 = vmul.f32 %v997, 0.70710677
    %v1046 = vmul.f32 %v1000, 0.70710677
    %v1047 = vmul.f32 %v1005, 0.70710677
    %v1048 = vmul.f32 %v1008, 0.70710677
    %v1049 = vmul.f32 %v1013, 0.70710677
    %v1050 = vmul.f32 %v1016, 0.70710677
    %vm1051 = vcmp.ge.f32.partialorder %v1035, 0.0
    %vm1052 = vcmp.ge.f32.partialorder %v1036, 0.0
    %vm1053 = vcmp.ge.f32.partialorder %v1037, 0.0
    %vm1054 = vcmp.ge.f32.partialorder %v1038, 0.0
    %vm1055 = vcmp.ge.f32.partialorder %v1039, 0.0
    %vm1056 = vcmp.ge.f32.partialorder %v1040, 0.0
    %vm1057 = vcmp.ge.f32.partialorder %v1041, 0.0
    %vm1058 = vcmp.ge.f32.partialorder %v1042, 0.0
    %vm1059 = vcmp.ge.f32.partialorder %v1043, 0.0
    %vm1060 = vcmp.ge.f32.partialorder %v1044, 0.0
    %vm1061 = vcmp.ge.f32.partialorder %v1045, 0.0
    %vm1062 = vcmp.ge.f32.partialorder %v1046, 0.0
    %vm1063 = vcmp.ge.f32.partialorder %v1047, 0.0
    %vm1064 = vcmp.ge.f32.partialorder %v1048, 0.0
    %vm1065 = vcmp.ge.f32.partialorder %v1049, 0.0
    %vm1066 = vcmp.ge.f32.partialorder %v1050, 0.0
    %v1067 = vsel %vm1051, 1.0, -1.0
    %v1068 = vsel %vm1052, 1.0, -1.0
    %v1069 = vsel %vm1053, 1.0, -1.0
    %v1070 = vsel %vm1054, 1.0, -1.0
    %v1071 = vsel %vm1055, 1.0, -1.0
    %v1072 = vsel %vm1056, 1.0, -1.0
    %v1073 = vsel %vm1057, 1.0, -1.0
    %v1074 = vsel %vm1058, 1.0, -1.0
    %v1075 = vsel %vm1059, 1.0, -1.0
    %v1076 = vsel %vm1060, 1.0, -1.0
    %v1077 = vsel %vm1061, 1.0, -1.0
    %v1078 = vsel %vm1062, 1.0, -1.0
    %v1079 = vsel %vm1063, 1.0, -1.0
    %v1080 = vsel %vm1064, 1.0, -1.0
    %v1081 = vsel %vm1065, 1.0, -1.0
    %v1082 = vsel %vm1066, 1.0, -1.0
    %v1083 = vand.u32 2147483647, %v1035
    %v1084 = vand.u32 2147483647, %v1036
    %v1085 = vand.u32 2147483647, %v1037
    %v1086 = vand.u32 2147483647, %v1038
    %v1087 = vand.u32 2147483647, %v1039
    %v1088 = vand.u32 2147483647, %v1040
    %v1089 = vand.u32 2147483647, %v1041
    %v1090 = vand.u32 2147483647, %v1042
    %v1091 = vand.u32 2147483647, %v1043
    %v1092 = vand.u32 2147483647, %v1044
    %v1093 = vand.u32 2147483647, %v1045
    %v1094 = vand.u32 2147483647, %v1046
    %v1095 = vand.u32 2147483647, %v1047
    %v1096 = vand.u32 2147483647, %v1048
    %v1097 = vand.u32 2147483647, %v1049
    %v1098 = vand.u32 2147483647, %v1050
    %v1099 = vmul.f32 %v1083, 0.3275911
    %v1100 = vmul.f32 %v1084, 0.3275911
    %v1101 = vmul.f32 %v1085, 0.3275911
    %v1102 = vmul.f32 %v1086, 0.3275911
    %v1103 = vmul.f32 %v1087, 0.3275911
    %v1104 = vmul.f32 %v1088, 0.3275911
    %v1105 = vmul.f32 %v1089, 0.3275911
    %v1106 = vmul.f32 %v1090, 0.3275911
    %v1107 = vmul.f32 %v1091, 0.3275911
    %v1108 = vmul.f32 %v1092, 0.3275911
    %v1109 = vmul.f32 %v1093, 0.3275911
    %v1110 = vmul.f32 %v1094, 0.3275911
    %v1111 = vmul.f32 %v1095, 0.3275911
    %v1112 = vmul.f32 %v1096, 0.3275911
    %v1113 = vmul.f32 %v1097, 0.3275911
    %v1114 = vmul.f32 %v1098, 0.3275911
    %v1115 = vadd.f32 %v1099, 1.0
    %v1116 = vadd.f32 %v1100, 1.0
    %v1117 = vadd.f32 %v1101, 1.0
    %v1118 = vadd.f32 %v1102, 1.0
    %v1119 = vadd.f32 %v1103, 1.0
    %v1120 = vadd.f32 %v1104, 1.0
    %v1121 = vadd.f32 %v1105, 1.0
    %v1122 = vadd.f32 %v1106, 1.0
    %v1123 = vadd.f32 %v1107, 1.0
    %v1124 = vadd.f32 %v1108, 1.0
    %v1125 = vadd.f32 %v1109, 1.0
    %v1126 = vadd.f32 %v1110, 1.0
    %v1127 = vadd.f32 %v1111, 1.0
    %v1128 = vadd.f32 %v1112, 1.0
    %v1129 = vadd.f32 %v1113, 1.0
    %v1130 = vadd.f32 %v1114, 1.0
    %v1131 = vrcp.pop %v1115
    %v1132 = vmul.f32 1.0, %v1131
    %v1133 = vrcp.pop %v1116
    %v1134 = vmul.f32 1.0, %v1133
    %v1135 = vrcp.pop %v1117
    %v1136 = vmul.f32 1.0, %v1135
    %v1137 = vrcp.pop %v1118
    %v1138 = vmul.f32 1.0, %v1137
    %v1139 = vrcp.pop %v1119
    %v1140 = vmul.f32 1.0, %v1139
    %v1141 = vrcp.pop %v1120
    %v1142 = vmul.f32 1.0, %v1141
    %v1143 = vrcp.pop %v1121
    %v1144 = vmul.f32 1.0, %v1143
    %v1145 = vrcp.pop %v1122
    %v1146 = vmul.f32 1.0, %v1145
    %v1147 = vrcp.pop %v1123
    %v1148 = vmul.f32 1.0, %v1147
    %v1149 = vrcp.pop %v1124
    %v1150 = vmul.f32 1.0, %v1149
    %v1151 = vrcp.pop %v1125
    %v1152 = vmul.f32 1.0, %v1151
    %v1153 = vrcp.pop %v1126
    %v1154 = vmul.f32 1.0, %v1153
    %v1155 = vrcp.pop %v1127
    %v1156 = vmul.f32 1.0, %v1155
    %v1157 = vrcp.pop %v1128
    %v1158 = vmul.f32 1.0, %v1157
    %v1159 = vrcp.pop %v1129
    %v1160 = vmul.f32 1.0, %v1159
    %v1161 = vrcp.pop %v1130
    %v1162 = vmul.f32 1.0, %v1161
    %v1163 = vmul.f32 %v1132, 1.0614054
    %v1164 = vmul.f32 %v1134, 1.0614054
    %v1165 = vmul.f32 %v1136, 1.0614054
    %v1166 = vmul.f32 %v1138, 1.0614054
    %v1167 = vmul.f32 %v1140, 1.0614054
    %v1168 = vmul.f32 %v1142, 1.0614054
    %v1169 = vmul.f32 %v1144, 1.0614054
    %v1170 = vmul.f32 %v1146, 1.0614054
    %v1171 = vmul.f32 %v1148, 1.0614054
    %v1172 = vmul.f32 %v1150, 1.0614054
    %v1173 = vmul.f32 %v1152, 1.0614054
    %v1174 = vmul.f32 %v1154, 1.0614054
    %v1175 = vmul.f32 %v1156, 1.0614054
    %v1176 = vmul.f32 %v1158, 1.0614054
    %v1177 = vmul.f32 %v1160, 1.0614054
    %v1178 = vmul.f32 %v1162, 1.0614054
    %v1179 = vadd.f32 %v1163, -1.4531521
    %v1180 = vadd.f32 %v1164, -1.4531521
    %v1181 = vadd.f32 %v1165, -1.4531521
    %v1182 = vadd.f32 %v1166, -1.4531521
    %v1183 = vadd.f32 %v1167, -1.4531521
    %v1184 = vadd.f32 %v1168, -1.4531521
    %v1185 = vadd.f32 %v1169, -1.4531521
    %v1186 = vadd.f32 %v1170, -1.4531521
    %v1187 = vadd.f32 %v1171, -1.4531521
    %v1188 = vadd.f32 %v1172, -1.4531521
    %v1189 = vadd.f32 %v1173, -1.4531521
    %v1190 = vadd.f32 %v1174, -1.4531521
    %v1191 = vadd.f32 %v1175, -1.4531521
    %v1192 = vadd.f32 %v1176, -1.4531521
    %v1193 = vadd.f32 %v1177, -1.4531521
    %v1194 = vadd.f32 %v1178, -1.4531521
    %v1195 = vmul.f32 %v1132, %v1179
    %v1196 = vmul.f32 %v1134, %v1180
    %v1197 = vmul.f32 %v1136, %v1181
    %v1198 = vmul.f32 %v1138, %v1182
    %v1199 = vmul.f32 %v1140, %v1183
    %v1200 = vmul.f32 %v1142, %v1184
    %v1201 = vmul.f32 %v1144, %v1185
    %v1202 = vmul.f32 %v1146, %v1186
    %v1203 = vmul.f32 %v1148, %v1187
    %v1204 = vmul.f32 %v1150, %v1188
    %v1205 = vmul.f32 %v1152, %v1189
    %v1206 = vmul.f32 %v1154, %v1190
    %v1207 = vmul.f32 %v1156, %v1191
    %v1208 = vmul.f32 %v1158, %v1192
    %v1209 = vmul.f32 %v1160, %v1193
    %v1210 = vmul.f32 %v1162, %v1194
    %v1211 = vadd.f32 %v1195, 1.4214138
    %v1212 = vadd.f32 %v1196, 1.4214138
    %v1213 = vadd.f32 %v1197, 1.4214138
    %v1214 = vadd.f32 %v1198, 1.4214138
    %v1215 = vadd.f32 %v1199, 1.4214138
    %v1216 = vadd.f32 %v1200, 1.4214138
    %v1217 = vadd.f32 %v1201, 1.4214138
    %v1218 = vadd.f32 %v1202, 1.4214138
    %v1219 = vadd.f32 %v1203, 1.4214138
    %v1220 = vadd.f32 %v1204, 1.4214138
    %v1221 = vadd.f32 %v1205, 1.4214138
    %v1222 = vadd.f32 %v1206, 1.4214138
    %v1223 = vadd.f32 %v1207, 1.4214138
    %v1224 = vadd.f32 %v1208, 1.4214138
    %v1225 = vadd.f32 %v1209, 1.4214138
    %v1226 = vadd.f32 %v1210, 1.4214138
    %v1227 = vmul.f32 %v1132, %v1211
    %v1228 = vmul.f32 %v1134, %v1212
    %v1229 = vmul.f32 %v1136, %v1213
    %v1230 = vmul.f32 %v1138, %v1214
    %v1231 = vmul.f32 %v1140, %v1215
    %v1232 = vmul.f32 %v1142, %v1216
    %v1233 = vmul.f32 %v1144, %v1217
    %v1234 = vmul.f32 %v1146, %v1218
    %v1235 = vmul.f32 %v1148, %v1219
    %v1236 = vmul.f32 %v1150, %v1220
    %v1237 = vmul.f32 %v1152, %v1221
    %v1238 = vmul.f32 %v1154, %v1222
    %v1239 = vmul.f32 %v1156, %v1223
    %v1240 = vmul.f32 %v1158, %v1224
    %v1241 = vmul.f32 %v1160, %v1225
    %v1242 = vmul.f32 %v1162, %v1226
    %v1243 = vadd.f32 %v1227, -0.28449672
    %v1244 = vadd.f32 %v1228, -0.28449672
    %v1245 = vadd.f32 %v1229, -0.28449672
    %v1246 = vadd.f32 %v1230, -0.28449672
    %v1247 = vadd.f32 %v1231, -0.28449672
    %v1248 = vadd.f32 %v1232, -0.28449672
    %v1249 = vadd.f32 %v1233, -0.28449672
    %v1250 = vadd.f32 %v1234, -0.28449672
    %v1251 = vadd.f32 %v1235, -0.28449672
    %v1252 = vadd.f32 %v1236, -0.28449672
    %v1253 = vadd.f32 %v1237, -0.28449672
    %v1254 = vadd.f32 %v1238, -0.28449672
    %v1255 = vadd.f32 %v1239, -0.28449672
    %v1256 = vadd.f32 %v1240, -0.28449672
    %v1257 = vadd.f32 %v1241, -0.28449672
    %v1258 = vadd.f32 %v1242, -0.28449672
    %v1259 = vmul.f32 %v1132, %v1243
    %v1260 = vmul.f32 %v1134, %v1244
    %v1261 = vmul.f32 %v1136, %v1245
    %v1262 = vmul.f32 %v1138, %v1246
    %v1263 = vmul.f32 %v1140, %v1247
    %v1264 = vmul.f32 %v1142, %v1248
    %v1265 = vmul.f32 %v1144, %v1249
    %v1266 = vmul.f32 %v1146, %v1250
    %v1267 = vmul.f32 %v1148, %v1251
    %v1268 = vmul.f32 %v1150, %v1252
    %v1269 = vmul.f32 %v1152, %v1253
    %v1270 = vmul.f32 %v1154, %v1254
    %v1271 = vmul.f32 %v1156, %v1255
    %v1272 = vmul.f32 %v1158, %v1256
    %v1273 = vmul.f32 %v1160, %v1257
    %v1274 = vmul.f32 %v1162, %v1258
    %v1275 = vadd.f32 %v1259, 0.2548296
    %v1276 = vadd.f32 %v1260, 0.2548296
    %v1277 = vadd.f32 %v1261, 0.2548296
    %v1278 = vadd.f32 %v1262, 0.2548296
    %v1279 = vadd.f32 %v1263, 0.2548296
    %v1280 = vadd.f32 %v1264, 0.2548296
    %v1281 = vadd.f32 %v1265, 0.2548296
    %v1282 = vadd.f32 %v1266, 0.2548296
    %v1283 = vadd.f32 %v1267, 0.2548296
    %v1284 = vadd.f32 %v1268, 0.2548296
    %v1285 = vadd.f32 %v1269, 0.2548296
    %v1286 = vadd.f32 %v1270, 0.2548296
    %v1287 = vadd.f32 %v1271, 0.2548296
    %v1288 = vadd.f32 %v1272, 0.2548296
    %v1289 = vadd.f32 %v1273, 0.2548296
    %v1290 = vadd.f32 %v1274, 0.2548296
    %v1291 = vmul.f32 %v1132, %v1275
    %v1292 = vmul.f32 %v1134, %v1276
    %v1293 = vmul.f32 %v1136, %v1277
    %v1294 = vmul.f32 %v1138, %v1278
    %v1295 = vmul.f32 %v1140, %v1279
    %v1296 = vmul.f32 %v1142, %v1280
    %v1297 = vmul.f32 %v1144, %v1281
    %v1298 = vmul.f32 %v1146, %v1282
    %v1299 = vmul.f32 %v1148, %v1283
    %v1300 = vmul.f32 %v1150, %v1284
    %v1301 = vmul.f32 %v1152, %v1285
    %v1302 = vmul.f32 %v1154, %v1286
    %v1303 = vmul.f32 %v1156, %v1287
    %v1304 = vmul.f32 %v1158, %v1288
    %v1305 = vmul.f32 %v1160, %v1289
    %v1306 = vmul.f32 %v1162, %v1290
    %v1307 = vsub.f32 0.0, %v1083
    %v1308 = vsub.f32 0.0, %v1084
    %v1309 = vsub.f32 0.0, %v1085
    %v1310 = vsub.f32 0.0, %v1086
    %v1311 = vsub.f32 0.0, %v1087
    %v1312 = vsub.f32 0.0, %v1088
    %v1313 = vsub.f32 0.0, %v1089
    %v1314 = vsub.f32 0.0, %v1090
    %v1315 = vsub.f32 0.0, %v1091
    %v1316 = vsub.f32 0.0, %v1092
    %v1317 = vsub.f32 0.0, %v1093
    %v1318 = vsub.f32 0.0, %v1094
    %v1319 = vsub.f32 0.0, %v1095
    %v1320 = vsub.f32 0.0, %v1096
    %v1321 = vsub.f32 0.0, %v1097
    %v1322 = vsub.f32 0.0, %v1098
    %v1323 = vmul.f32 %v1307, %v1083
    %v1324 = vmul.f32 %v1308, %v1084
    %v1325 = vmul.f32 %v1309, %v1085
    %v1326 = vmul.f32 %v1310, %v1086
    %v1327 = vmul.f32 %v1311, %v1087
    %v1328 = vmul.f32 %v1312, %v1088
    %v1329 = vmul.f32 %v1313, %v1089
    %v1330 = vmul.f32 %v1314, %v1090
    %v1331 = vmul.f32 %v1315, %v1091
    %v1332 = vmul.f32 %v1316, %v1092
    %v1333 = vmul.f32 %v1317, %v1093
    %v1334 = vmul.f32 %v1318, %v1094
    %v1335 = vmul.f32 %v1319, %v1095
    %v1336 = vmul.f32 %v1320, %v1096
    %v1337 = vmul.f32 %v1321, %v1097
    %v1338 = vmul.f32 %v1322, %v1098
    %v1339 = vmul.f32 %v1323, 1.442695
    %v1340 = vpow.pop %v1339
    %v1341 = vmul.f32 %v1324, 1.442695
    %v1342 = vpow.pop %v1341
    %v1343 = vmul.f32 %v1325, 1.442695
    %v1344 = vpow.pop %v1343
    %v1345 = vmul.f32 %v1326, 1.442695
    %v1346 = vpow.pop %v1345
    %v1347 = vmul.f32 %v1327, 1.442695
    %v1348 = vpow.pop %v1347
    %v1349 = vmul.f32 %v1328, 1.442695
    %v1350 = vpow.pop %v1349
    %v1351 = vmul.f32 %v1329, 1.442695
    %v1352 = vpow.pop %v1351
    %v1353 = vmul.f32 %v1330, 1.442695
    %v1354 = vpow.pop %v1353
    %v1355 = vmul.f32 %v1331, 1.442695
    %v1356 = vpow.pop %v1355
    %v1357 = vmul.f32 %v1332, 1.442695
    %v1358 = vpow.pop %v1357
    %v1359 = vmul.f32 %v1333, 1.442695
    %v1360 = vpow.pop %v1359
    %v1361 = vmul.f32 %v1334, 1.442695
    %v1362 = vpow.pop %v1361
    %v1363 = vmul.f32 %v1335, 1.442695
    %v1364 = vpow.pop %v1363
    %v1365 = vmul.f32 %v1336, 1.442695
    %v1366 = vpow.pop %v1365
    %v1367 = vmul.f32 %v1337, 1.442695
    %v1368 = vpow.pop %v1367
    %v1369 = vmul.f32 %v1338, 1.442695
    %v1370 = vpow.pop %v1369
    %v1371 = vmul.f32 %v1291, %v1340
    %v1372 = vmul.f32 %v1292, %v1342
    %v1373 = vmul.f32 %v1293, %v1344
    %v1374 = vmul.f32 %v1294, %v1346
    %v1375 = vmul.f32 %v1295, %v1348
    %v1376 = vmul.f32 %v1296, %v1350
    %v1377 = vmul.f32 %v1297, %v1352
    %v1378 = vmul.f32 %v1298, %v1354
    %v1379 = vmul.f32 %v1299, %v1356
    %v1380 = vmul.f32 %v1300, %v1358
    %v1381 = vmul.f32 %v1301, %v1360
    %v1382 = vmul.f32 %v1302, %v1362
    %v1383 = vmul.f32 %v1303, %v1364
    %v1384 = vmul.f32 %v1304, %v1366
    %v1385 = vmul.f32 %v1305, %v1368
    %v1386 = vmul.f32 %v1306, %v1370
    %v1387 = vsub.f32 1.0, %v1371
    %v1388 = vsub.f32 1.0, %v1372
    %v1389 = vsub.f32 1.0, %v1373
    %v1390 = vsub.f32 1.0, %v1374
    %v1391 = vsub.f32 1.0, %v1375
    %v1392 = vsub.f32 1.0, %v1376
    %v1393 = vsub.f32 1.0, %v1377
    %v1394 = vsub.f32 1.0, %v1378
    %v1395 = vsub.f32 1.0, %v1379
    %v1396 = vsub.f32 1.0, %v1380
    %v1397 = vsub.f32 1.0, %v1381
    %v1398 = vsub.f32 1.0, %v1382
    %v1399 = vsub.f32 1.0, %v1383
    %v1400 = vsub.f32 1.0, %v1384
    %v1401 = vsub.f32 1.0, %v1385
    %v1402 = vsub.f32 1.0, %v1386
    %v1403 = vmul.f32 %v1067, %v1387
    %v1404 = vmul.f32 %v1068, %v1388
    %v1405 = vmul.f32 %v1069, %v1389
    %v1406 = vmul.f32 %v1070, %v1390
    %v1407 = vmul.f32 %v1071, %v1391
    %v1408 = vmul.f32 %v1072, %v1392
    %v1409 = vmul.f32 %v1073, %v1393
    %v1410 = vmul.f32 %v1074, %v1394
    %v1411 = vmul.f32 %v1075, %v1395
    %v1412 = vmul.f32 %v1076, %v1396
    %v1413 = vmul.f32 %v1077, %v1397
    %v1414 = vmul.f32 %v1078, %v1398
    %v1415 = vmul.f32 %v1079, %v1399
    %v1416 = vmul.f32 %v1080, %v1400
    %v1417 = vmul.f32 %v1081, %v1401
    %v1418 = vmul.f32 %v1082, %v1402
    %v1419 = vadd.f32 %v1403, 1.0
    %v1420 = vadd.f32 %v1404, 1.0
    %v1421 = vadd.f32 %v1405, 1.0
    %v1422 = vadd.f32 %v1406, 1.0
    %v1423 = vadd.f32 %v1407, 1.0
    %v1424 = vadd.f32 %v1408, 1.0
    %v1425 = vadd.f32 %v1409, 1.0
    %v1426 = vadd.f32 %v1410, 1.0
    %v1427 = vadd.f32 %v1411, 1.0
    %v1428 = vadd.f32 %v1412, 1.0
    %v1429 = vadd.f32 %v1413, 1.0
    %v1430 = vadd.f32 %v1414, 1.0
    %v1431 = vadd.f32 %v1415, 1.0
    %v1432 = vadd.f32 %v1416, 1.0
    %v1433 = vadd.f32 %v1417, 1.0
    %v1434 = vadd.f32 %v1418, 1.0
    %v1435 = vmul.f32 %v1019, %v1419
    %v1436 = vmul.f32 %v1020, %v1420
    %v1437 = vmul.f32 %v1021, %v1421
    %v1438 = vmul.f32 %v1022, %v1422
    %v1439 = vmul.f32 %v1023, %v1423
    %v1440 = vmul.f32 %v1024, %v1424
    %v1441 = vmul.f32 %v1025, %v1425
    %v1442 = vmul.f32 %v1026, %v1426
    %v1443 = vmul.f32 %v1027, %v1427
    %v1444 = vmul.f32 %v1028, %v1428
    %v1445 = vmul.f32 %v1029, %v1429
    %v1446 = vmul.f32 %v1030, %v1430
    %v1447 = vmul.f32 %v1031, %v1431
    %v1448 = vmul.f32 %v1032, %v1432
    %v1449 = vmul.f32 %v1033, %v1433
    %v1450 = vmul.f32 %v1034, %v1434
    %1451 = vst [vmem:[#allocation4] sm:$0xff] %v1435
    %1452 = vst [vmem:[#allocation4 + $0x8] sm:$0xff] %v1436
    %1453 = vst [vmem:[#allocation4 + $0x10] sm:$0xff] %v1437
    %1454 = vst [vmem:[#allocation4 + $0x18] sm:$0xff] %v1438
    %1455 = vst [vmem:[#allocation4 + $0x20] sm:$0xff] %v1439
    %1456 = vst [vmem:[#allocation4 + $0x28] sm:$0xff] %v1440
    %1457 = vst [vmem:[#allocation4 + $0x30] sm:$0xff] %v1441
    %1458 = vst [vmem:[#allocation4 + $0x38] sm:$0xff] %v1442
    %1459 = vst [vmem:[#allocation4 + $0x40] sm:$0xff] %v1443
    %1460 = vst [vmem:[#allocation4 + $0x48] sm:$0xff] %v1444
    %1461 = vst [vmem:[#allocation4 + $0x50] sm:$0xff] %v1445
    %1462 = vst [vmem:[#allocation4 + $0x58] sm:$0xff] %v1446
    %1463 = vst [vmem:[#allocation4 + $0x60] sm:$0xff] %v1447
    %1464 = vst [vmem:[#allocation4 + $0x68] sm:$0xff] %v1448
    %1465 = vst [vmem:[#allocation4 + $0x70] sm:$0xff] %v1449
    %1466 = vst [vmem:[#allocation4 + $0x78] sm:$0xff] %v1450
    // Predicated region
    $region78: #{tpu_custom_call.1} parent=1 // pred_check
      _
    $region79: #{tpu_custom_call.1} parent=1 // pred_check_branch
      %1468 = sbr.rel target = $region81
    $region80: #{tpu_custom_call.1} parent=1 // pred_region
      %1469 = sst [smem:[#allocation20]] [#allocation23]
      %1470 = sst [smem:[#allocation21]] [#allocation22]
    $region81: #{tpu_custom_call.1} parent=1 // pred_fallthru
      _
    %1472 = shalt.err (0)
    %s1474 = sshll.u32 [#allocation6], 4
    %s1475 = int_to_ptr.vmem [resolvable:$true] %s1474
    %1477 = dma.hbm_to_vmem [thread:$0]  %s1, 1024, %s1475, [#allocation7]
    %v1478 = vld [vmem:[#allocation4] sm:$0xff]
    %v1479 = vld [vmem:[#allocation4 + $0x8] sm:$0xff]
    %v1480 = vld [vmem:[#allocation4 + $0x10] sm:$0xff]
    %v1481 = vld [vmem:[#allocation4 + $0x18] sm:$0xff]
    %v1482 = vld [vmem:[#allocation4 + $0x20] sm:$0xff]
    %v1483 = vld [vmem:[#allocation4 + $0x28] sm:$0xff]
    %v1484 = vld [vmem:[#allocation4 + $0x30] sm:$0xff]
    %v1485 = vld [vmem:[#allocation4 + $0x38] sm:$0xff]
    %v1486 = vld [vmem:[#allocation4 + $0x40] sm:$0xff]
    %v1487 = vld [vmem:[#allocation4 + $0x48] sm:$0xff]
    %v1488 = vld [vmem:[#allocation4 + $0x50] sm:$0xff]
    %v1489 = vld [vmem:[#allocation4 + $0x58] sm:$0xff]
    %v1490 = vld [vmem:[#allocation4 + $0x60] sm:$0xff]
    %v1491 = vld [vmem:[#allocation4 + $0x68] sm:$0xff]
    %v1492 = vld [vmem:[#allocation4 + $0x70] sm:$0xff]
    %v1493 = vld [vmem:[#allocation4 + $0x78] sm:$0xff]
    %v1494 = vpack.c.bf16 %v1479, %v1478
    %v1495 = vpack.c.bf16 %v1481, %v1480
    %v1496 = vpack.c.bf16 %v1483, %v1482
    %v1497 = vpack.c.bf16 %v1485, %v1484
    %v1498 = vpack.c.bf16 %v1487, %v1486
    %v1499 = vpack.c.bf16 %v1489, %v1488
    %v1500 = vpack.c.bf16 %v1491, %v1490
    %v1501 = vpack.c.bf16 %v1493, %v1492
    %v1502 = vld [vmem:[#allocation13] sm:$0xf]
    %v1503 = vld [vmem:[#allocation13 + $0x4] sm:$0xf]
    %v1504 = vld [vmem:[#allocation13 + $0x8] sm:$0xf]
    %v1505 = vld [vmem:[#allocation13 + $0xc] sm:$0xf]
    %v1506 = vld [vmem:[#allocation13 + $0x10] sm:$0xf]
    %v1507 = vld [vmem:[#allocation13 + $0x14] sm:$0xf]
    %v1508 = vld [vmem:[#allocation13 + $0x18] sm:$0xf]
    %v1509 = vld [vmem:[#allocation13 + $0x1c] sm:$0xf]
    %v1510 = vld [vmem:[#allocation13 + $0x20] sm:$0xf]
    %v1511 = vld [vmem:[#allocation13 + $0x24] sm:$0xf]
    %v1512 = vld [vmem:[#allocation13 + $0x28] sm:$0xf]
    %v1513 = vld [vmem:[#allocation13 + $0x2c] sm:$0xf]
    %v1514 = vld [vmem:[#allocation13 + $0x30] sm:$0xf]
    %v1515 = vld [vmem:[#allocation13 + $0x34] sm:$0xf]
    %v1516 = vld [vmem:[#allocation13 + $0x38] sm:$0xf]
    %v1517 = vld [vmem:[#allocation13 + $0x3c] sm:$0xf]
    %v1534 = vunpack.c.l.b16 %v1502
    %v1535 = vunpack.c.l.b16 %v1503
    %v1536 = vunpack.c.l.b16 %v1504
    %v1537 = vunpack.c.l.b16 %v1505
    %v1538 = vunpack.c.l.b16 %v1506
    %v1539 = vunpack.c.l.b16 %v1507
    %v1540 = vunpack.c.l.b16 %v1508
    %v1541 = vunpack.c.l.b16 %v1509
    %v1542 = vunpack.c.l.b16 %v1510
    %v1543 = vunpack.c.l.b16 %v1511
    %v1544 = vunpack.c.l.b16 %v1512
    %v1545 = vunpack.c.l.b16 %v1513
    %v1546 = vunpack.c.l.b16 %v1514
    %v1547 = vunpack.c.l.b16 %v1515
    %v1548 = vunpack.c.l.b16 %v1516
    %v1549 = vunpack.c.l.b16 %v1517
    %v1550 = vpack.c.b16 %v1535, %v1534
    %v1551 = vpack.c.b16 %v1537, %v1536
    %v1552 = vpack.c.b16 %v1539, %v1538
    %v1553 = vpack.c.b16 %v1541, %v1540
    %v1554 = vpack.c.b16 %v1543, %v1542
    %v1555 = vpack.c.b16 %v1545, %v1544
    %v1556 = vpack.c.b16 %v1547, %v1546
    %v1557 = vpack.c.b16 %v1549, %v1548
    %1566 = vmatprep.subr.bf16.mxu0 0
    %1567 = vmatpush1.bf16.msra.mxu0 %v1550
    %1568 = vmatprep.subr.bf16.mxu0 0
    %1569 = vmatpush1.bf16.msra.mxu0 %v1551
    %1570 = vmatprep.subr.bf16.mxu0 0
    %1571 = vmatpush1.bf16.msra.mxu0 %v1552
    %1572 = vmatprep.subr.bf16.mxu0 0
    %1573 = vmatpush1.bf16.msra.mxu0 %v1553
    %1574 = vmatprep.subr.bf16.mxu0 0
    %1575 = vmatpush1.bf16.msra.mxu0 %v1554
    %1576 = vmatprep.subr.bf16.mxu0 0
    %1577 = vmatpush1.bf16.msra.mxu0 %v1555
    %1578 = vmatprep.subr.bf16.mxu0 0
    %1579 = vmatpush1.bf16.msra.mxu0 %v1556
    %1580 = vmatprep.subr.bf16.mxu0 0
    %1581 = vmatpush1.bf16.msra.mxu0 %v1557
    %1582 = vmatprep.subr.bf16.mxu0 0
    %1583 = vmatpush1.bf16.msra.mxu0 0
    %1584 = vmatprep.subr.bf16.mxu0 0
    %1585 = vmatpush1.bf16.msra.mxu0 0
    %1586 = vmatprep.subr.bf16.mxu0 0
    %1587 = vmatpush1.bf16.msra.mxu0 0
    %1588 = vmatprep.subr.bf16.mxu0 0
    %1589 = vmatpush1.bf16.msra.mxu0 0
    %1590 = vmatprep.subr.bf16.mxu0 0
    %1591 = vmatpush1.bf16.msra.mxu0 0
    %1592 = vmatprep.subr.bf16.mxu0 0
    %1593 = vmatpush1.bf16.msra.mxu0 0
    %1594 = vmatprep.subr.bf16.mxu0 0
    %1595 = vmatpush1.bf16.msra.mxu0 0
    %1596 = vmatprep.subr.bf16.mxu0 0
    %1597 = vmatpush1.bf16.msra.mxu0 0
    %1598 = vmatprep.mubr.bf16.mxu0 0
    %1599 = vmatmul.mubr.bf16.gmra.mrb[0].mxu0 %v1494
    %v1600 = vpop.f32.mrb[0].mxu0
    %v1601 = vadd.f32 0.0, %v1600
    %v1602 = vpop.f32.mrb[0].mxu0
    %v1603 = vpop.f32.mrb[0].mxu0
    %v1604 = vadd.f32 0.0, %v1603
    %v1605 = vpop.f32.mrb[0].mxu0
    %1606 = vmatprep.mubr.bf16.mxu0 0
    %1607 = vmatmul.mubr.bf16.gmra.mrb[0].mxu0 %v1495
    %v1608 = vpop.f32.mrb[0].mxu0
    %v1609 = vadd.f32 0.0, %v1608
    %v1610 = vpop.f32.mrb[0].mxu0
    %v1611 = vpop.f32.mrb[0].mxu0
    %v1612 = vadd.f32 0.0, %v1611
    %v1613 = vpop.f32.mrb[0].mxu0
    %1614 = vmatprep.mubr.bf16.mxu0 0
    %1615 = vmatmul.mubr.bf16.gmra.mrb[0].mxu0 %v1496
    %v1616 = vpop.f32.mrb[0].mxu0
    %v1617 = vadd.f32 0.0, %v1616
    %v1618 = vpop.f32.mrb[0].mxu0
    %v1619 = vpop.f32.mrb[0].mxu0
    %v1620 = vadd.f32 0.0, %v1619
    %v1621 = vpop.f32.mrb[0].mxu0
    %1622 = vmatprep.mubr.bf16.mxu0 0
    %1623 = vmatmul.mubr.bf16.gmra.mrb[0].mxu0 %v1497
    %v1624 = vpop.f32.mrb[0].mxu0
    %v1625 = vadd.f32 0.0, %v1624
    %v1626 = vpop.f32.mrb[0].mxu0
    %v1627 = vpop.f32.mrb[0].mxu0
    %v1628 = vadd.f32 0.0, %v1627
    %v1629 = vpop.f32.mrb[0].mxu0
    %1630 = vmatprep.mubr.bf16.mxu0 0
    %1631 = vmatmul.mubr.bf16.gmra.mrb[0].mxu0 %v1498
    %v1632 = vpop.f32.mrb[0].mxu0
    %v1633 = vadd.f32 0.0, %v1632
    %v1634 = vpop.f32.mrb[0].mxu0
    %v1635 = vpop.f32.mrb[0].mxu0
    %v1636 = vadd.f32 0.0, %v1635
    %v1637 = vpop.f32.mrb[0].mxu0
    %1638 = vmatprep.mubr.bf16.mxu0 0
    %1639 = vmatmul.mubr.bf16.gmra.mrb[0].mxu0 %v1499
    %v1640 = vpop.f32.mrb[0].mxu0
    %v1641 = vadd.f32 0.0, %v1640
    %v1642 = vpop.f32.mrb[0].mxu0
    %v1643 = vpop.f32.mrb[0].mxu0
    %v1644 = vadd.f32 0.0, %v1643
    %v1645 = vpop.f32.mrb[0].mxu0
    %1646 = vmatprep.mubr.bf16.mxu0 0
    %1647 = vmatmul.mubr.bf16.gmra.mrb[0].mxu0 %v1500
    %v1648 = vpop.f32.mrb[0].mxu0
    %v1649 = vadd.f32 0.0, %v1648
    %v1650 = vpop.f32.mrb[0].mxu0
    %v1651 = vpop.f32.mrb[0].mxu0
    %v1652 = vadd.f32 0.0, %v1651
    %v1653 = vpop.f32.mrb[0].mxu0
    %1654 = vmatprep.mubr.bf16.mxu0 0
    %1655 = vmatmul.mubr.bf16.gmra.mrb[0].mxu0 %v1501
    %v1656 = vpop.f32.mrb[0].mxu0
    %v1657 = vadd.f32 0.0, %v1656
    %v1658 = vpop.f32.mrb[0].mxu0
    %v1659 = vpop.f32.mrb[0].mxu0
    %v1660 = vadd.f32 0.0, %v1659
    %v1661 = vpop.f32.mrb[0].mxu0
    %1662 = vdwg.mxu0
    %v1663 = vpack.c.bf16 %v1604, %v1601
    %v1664 = vpack.c.bf16 %v1612, %v1609
    %v1665 = vpack.c.bf16 %v1620, %v1617
    %v1666 = vpack.c.bf16 %v1628, %v1625
    %v1667 = vpack.c.bf16 %v1636, %v1633
    %v1668 = vpack.c.bf16 %v1644, %v1641
    %v1669 = vpack.c.bf16 %v1652, %v1649
    %v1670 = vpack.c.bf16 %v1660, %v1657
    %1671 = vst [vmem:[#allocation2] sm:$0xff] %v1663
    %1672 = vst [vmem:[#allocation2 + $0x8] sm:$0xff] %v1664
    %1673 = vst [vmem:[#allocation2 + $0x10] sm:$0xff] %v1665
    %1674 = vst [vmem:[#allocation2 + $0x18] sm:$0xff] %v1666
    %1675 = vst [vmem:[#allocation2 + $0x20] sm:$0xff] %v1667
    %1676 = vst [vmem:[#allocation2 + $0x28] sm:$0xff] %v1668
    %1677 = vst [vmem:[#allocation2 + $0x30] sm:$0xff] %v1669
    %1678 = vst [vmem:[#allocation2 + $0x38] sm:$0xff] %v1670
    %1695 = vrot.lane.b32.xlu0 %v1601, 96
    %v1696 = vpop.permute.xlu0 %1695
    %1697 = vrot.lane.b32.xlu0 %v1604, 96
    %v1698 = vpop.permute.xlu0 %1697
    %1699 = vrot.lane.b32.xlu0 %v1609, 96
    %v1700 = vpop.permute.xlu0 %1699
    %1701 = vrot.lane.b32.xlu0 %v1612, 96
    %v1702 = vpop.permute.xlu0 %1701
    %1703 = vrot.lane.b32.xlu0 %v1617, 96
    %v1704 = vpop.permute.xlu0 %1703
    %1705 = vrot.lane.b32.xlu0 %v1620, 96
    %v1706 = vpop.permute.xlu0 %1705
    %1707 = vrot.lane.b32.xlu0 %v1625, 96
    %v1708 = vpop.permute.xlu0 %1707
    %1709 = vrot.lane.b32.xlu0 %v1628, 96
    %v1710 = vpop.permute.xlu0 %1709
    %1711 = vrot.lane.b32.xlu0 %v1633, 96
    %v1712 = vpop.permute.xlu0 %1711
    %1713 = vrot.lane.b32.xlu0 %v1636, 96
    %v1714 = vpop.permute.xlu0 %1713
    %1715 = vrot.lane.b32.xlu0 %v1641, 96
    %v1716 = vpop.permute.xlu0 %1715
    %1717 = vrot.lane.b32.xlu0 %v1644, 96
    %v1718 = vpop.permute.xlu0 %1717
    %1719 = vrot.lane.b32.xlu0 %v1649, 96
    %v1720 = vpop.permute.xlu0 %1719
    %1721 = vrot.lane.b32.xlu0 %v1652, 96
    %v1722 = vpop.permute.xlu0 %1721
    %1723 = vrot.lane.b32.xlu0 %v1657, 96
    %v1724 = vpop.permute.xlu0 %1723
    %1725 = vrot.lane.b32.xlu0 %v1660, 96
    %v1726 = vpop.permute.xlu0 %1725
    %1743 = vst.msk [vmem:[#allocation3] sm:$0xff] %vm393, %v1696
    %1744 = vst.msk [vmem:[#allocation3 + $0x8] sm:$0xff] %vm393, %v1698
    %1745 = vst.msk [vmem:[#allocation3 + $0x10] sm:$0xff] %vm393, %v1700
    %1746 = vst.msk [vmem:[#allocation3 + $0x18] sm:$0xff] %vm393, %v1702
    %1747 = vst.msk [vmem:[#allocation3 + $0x20] sm:$0xff] %vm393, %v1704
    %1748 = vst.msk [vmem:[#allocation3 + $0x28] sm:$0xff] %vm393, %v1706
    %1749 = vst.msk [vmem:[#allocation3 + $0x30] sm:$0xff] %vm393, %v1708
    %1750 = vst.msk [vmem:[#allocation3 + $0x38] sm:$0xff] %vm393, %v1710
    %1751 = vst.msk [vmem:[#allocation3 + $0x40] sm:$0xff] %vm393, %v1712
    %1752 = vst.msk [vmem:[#allocation3 + $0x48] sm:$0xff] %vm393, %v1714
    %1753 = vst.msk [vmem:[#allocation3 + $0x50] sm:$0xff] %vm393, %v1716
    %1754 = vst.msk [vmem:[#allocation3 + $0x58] sm:$0xff] %vm393, %v1718
    %1755 = vst.msk [vmem:[#allocation3 + $0x60] sm:$0xff] %vm393, %v1720
    %1756 = vst.msk [vmem:[#allocation3 + $0x68] sm:$0xff] %vm393, %v1722
    %1757 = vst.msk [vmem:[#allocation3 + $0x70] sm:$0xff] %vm393, %v1724
    %1758 = vst.msk [vmem:[#allocation3 + $0x78] sm:$0xff] %vm393, %v1726
    %v1759 = vld [vmem:[%s7] sm:$0x1]
    %1760 = vmatprep.subr.bf16.mxu0 0
    %1761 = vmatpush1.bf16.xpose.msra.mxu0 %v1663
    %1762 = vmatprep.subr.bf16.mxu0 0
    %1763 = vmatpush1.bf16.xpose.msra.mxu0 %v1664
    %1764 = vmatprep.subr.bf16.mxu0 0
    %1765 = vmatpush1.bf16.xpose.msra.mxu0 %v1665
    %1766 = vmatprep.subr.bf16.mxu0 0
    %1767 = vmatpush1.bf16.xpose.msra.mxu0 %v1666
    %1768 = vmatprep.subr.bf16.mxu0 0
    %1769 = vmatpush1.bf16.xpose.msra.mxu0 %v1667
    %1770 = vmatprep.subr.bf16.mxu0 0
    %1771 = vmatpush1.bf16.xpose.msra.mxu0 %v1668
    %1772 = vmatprep.subr.bf16.mxu0 0
    %1773 = vmatpush1.bf16.xpose.msra.mxu0 %v1669
    %1774 = vmatprep.subr.bf16.mxu0 0
    %1775 = vmatpush1.bf16.xpose.msra.mxu0 %v1670
    %1776 = vmatprep.subr.bf16.mxu0 0
    %1777 = vmatpush1.bf16.xpose.msra.mxu0 0
    %1778 = vmatprep.subr.bf16.mxu0 0
    %1779 = vmatpush1.bf16.xpose.msra.mxu0 0
    %1780 = vmatprep.subr.bf16.mxu0 0
    %1781 = vmatpush1.bf16.xpose.msra.mxu0 0
    %1782 = vmatprep.subr.bf16.mxu0 0
    %1783 = vmatpush1.bf16.xpose.msra.mxu0 0
    %1784 = vmatprep.subr.bf16.mxu0 0
    %1785 = vmatpush1.bf16.xpose.msra.mxu0 0
    %1786 = vmatprep.subr.bf16.mxu0 0
    %1787 = vmatpush1.bf16.xpose.msra.mxu0 0
    %1788 = vmatprep.subr.bf16.mxu0 0
    %1789 = vmatpush1.bf16.xpose.msra.mxu0 0
    %1790 = vmatprep.subr.bf16.mxu0 0
    %1791 = vmatpush1.bf16.xpose.msra.mxu0 0
    %1792 = vmatprep.mubr.bf16.mxu0 0
    %1793 = vmatmul.mubr.bf16.gmra.mrb[0].mxu0 %v1759
    %v1794 = vpop.f32.mrb[0].mxu0
    %v1795 = vadd.f32 0.0, %v1794
    %v1796 = vpop.f32.mrb[0].mxu0
    %v1797 = vpop.f32.mrb[0].mxu0
    %v1798 = vpop.f32.mrb[0].mxu0
    %1799 = vdwg.mxu0
    %v1800 = vld [vmem:[%s8] sm:$0x1]
    %s1801 = sshll.u32 %s453, 4
    %1802 = dma.done [#allocation7], %s1801
    %v1803 = vld [vmem:[#allocation3] sm:$0xff]
    %v1804 = vld [vmem:[#allocation3 + $0x8] sm:$0xff]
    %v1805 = vld [vmem:[#allocation3 + $0x10] sm:$0xff]
    %v1806 = vld [vmem:[#allocation3 + $0x18] sm:$0xff]
    %v1807 = vld [vmem:[#allocation3 + $0x20] sm:$0xff]
    %v1808 = vld [vmem:[#allocation3 + $0x28] sm:$0xff]
    %v1809 = vld [vmem:[#allocation3 + $0x30] sm:$0xff]
    %v1810 = vld [vmem:[#allocation3 + $0x38] sm:$0xff]
    %v1811 = vld [vmem:[#allocation3 + $0x40] sm:$0xff]
    %v1812 = vld [vmem:[#allocation3 + $0x48] sm:$0xff]
    %v1813 = vld [vmem:[#allocation3 + $0x50] sm:$0xff]
    %v1814 = vld [vmem:[#allocation3 + $0x58] sm:$0xff]
    %v1815 = vld [vmem:[#allocation3 + $0x60] sm:$0xff]
    %v1816 = vld [vmem:[#allocation3 + $0x68] sm:$0xff]
    %v1817 = vld [vmem:[#allocation3 + $0x70] sm:$0xff]
    %v1818 = vld [vmem:[#allocation3 + $0x78] sm:$0xff]
    %1820 = vset.pattern.permute.xlu0 0
    %1821 = vperm.xlu0 %1820, %v1803
    %v1822 = vpop.permute.xlu0 %1821
    %1825 = vset.pattern.permute.xlu0 0
    %1826 = vperm.xlu0 %1825, %v1804
    %v1827 = vpop.permute.xlu0 %1826
    %1830 = vset.pattern.permute.xlu0 0
    %1831 = vperm.xlu0 %1830, %v1805
    %v1832 = vpop.permute.xlu0 %1831
    %1835 = vset.pattern.permute.xlu0 0
    %1836 = vperm.xlu0 %1835, %v1806
    %v1837 = vpop.permute.xlu0 %1836
    %1840 = vset.pattern.permute.xlu0 0
    %1841 = vperm.xlu0 %1840, %v1807
    %v1842 = vpop.permute.xlu0 %1841
    %1845 = vset.pattern.permute.xlu0 0
    %1846 = vperm.xlu0 %1845, %v1808
    %v1847 = vpop.permute.xlu0 %1846
    %1850 = vset.pattern.permute.xlu0 0
    %1851 = vperm.xlu0 %1850, %v1809
    %v1852 = vpop.permute.xlu0 %1851
    %1855 = vset.pattern.permute.xlu0 0
    %1856 = vperm.xlu0 %1855, %v1810
    %v1857 = vpop.permute.xlu0 %1856
    %1860 = vset.pattern.permute.xlu0 0
    %1861 = vperm.xlu0 %1860, %v1811
    %v1862 = vpop.permute.xlu0 %1861
    %1865 = vset.pattern.permute.xlu0 0
    %1866 = vperm.xlu0 %1865, %v1812
    %v1867 = vpop.permute.xlu0 %1866
    %1870 = vset.pattern.permute.xlu0 0
    %1871 = vperm.xlu0 %1870, %v1813
    %v1872 = vpop.permute.xlu0 %1871
    %1875 = vset.pattern.permute.xlu0 0
    %1876 = vperm.xlu0 %1875, %v1814
    %v1877 = vpop.permute.xlu0 %1876
    %1880 = vset.pattern.permute.xlu0 0
    %1881 = vperm.xlu0 %1880, %v1815
    %v1882 = vpop.permute.xlu0 %1881
    %1885 = vset.pattern.permute.xlu0 0
    %1886 = vperm.xlu0 %1885, %v1816
    %v1887 = vpop.permute.xlu0 %1886
    %1890 = vset.pattern.permute.xlu0 0
    %1891 = vperm.xlu0 %1890, %v1817
    %v1892 = vpop.permute.xlu0 %1891
    %1895 = vset.pattern.permute.xlu0 0
    %1896 = vperm.xlu0 %1895, %v1818
    %v1897 = vpop.permute.xlu0 %1896
    %v1899 = vlaneseq
    %v1900 = vshrl.u32 %v1899, 7
    %v1901 = vsub.s32 0, %v1900
    %v1902 = vrot.slane %v1795, %v1901
    %v1903 = vadd.f32 %v1822, %v1902
    %v1904 = vadd.f32 %v1827, %v1902
    %v1905 = vadd.f32 %v1832, %v1902
    %v1906 = vadd.f32 %v1837, %v1902
    %v1907 = vadd.f32 %v1842, %v1902
    %v1908 = vadd.f32 %v1847, %v1902
    %v1909 = vadd.f32 %v1852, %v1902
    %v1910 = vadd.f32 %v1857, %v1902
    %v1911 = vadd.f32 %v1862, %v1902
    %v1912 = vadd.f32 %v1867, %v1902
    %v1913 = vadd.f32 %v1872, %v1902
    %v1914 = vadd.f32 %v1877, %v1902
    %v1915 = vadd.f32 %v1882, %v1902
    %v1916 = vadd.f32 %v1887, %v1902
    %v1917 = vadd.f32 %v1892, %v1902
    %v1918 = vadd.f32 %v1897, %v1902
    %vm1919 = vcmp.gt.f32.partialorder %v1903, 0.0
    %vm1920 = vcmp.gt.f32.partialorder %v1904, 0.0
    %vm1921 = vcmp.gt.f32.partialorder %v1905, 0.0
    %vm1922 = vcmp.gt.f32.partialorder %v1906, 0.0
    %vm1923 = vcmp.gt.f32.partialorder %v1907, 0.0
    %vm1924 = vcmp.gt.f32.partialorder %v1908, 0.0
    %vm1925 = vcmp.gt.f32.partialorder %v1909, 0.0
    %vm1926 = vcmp.gt.f32.partialorder %v1910, 0.0
    %vm1927 = vcmp.gt.f32.partialorder %v1911, 0.0
    %vm1928 = vcmp.gt.f32.partialorder %v1912, 0.0
    %vm1929 = vcmp.gt.f32.partialorder %v1913, 0.0
    %vm1930 = vcmp.gt.f32.partialorder %v1914, 0.0
    %vm1931 = vcmp.gt.f32.partialorder %v1915, 0.0
    %vm1932 = vcmp.gt.f32.partialorder %v1916, 0.0
    %vm1933 = vcmp.gt.f32.partialorder %v1917, 0.0
    %vm1934 = vcmp.gt.f32.partialorder %v1918, 0.0
    %v1935 = vmul.f32 %v1903, 0.2
    %v1936 = vmul.f32 %v1904, 0.2
    %v1937 = vmul.f32 %v1905, 0.2
    %v1938 = vmul.f32 %v1906, 0.2
    %v1939 = vmul.f32 %v1907, 0.2
    %v1940 = vmul.f32 %v1908, 0.2
    %v1941 = vmul.f32 %v1909, 0.2
    %v1942 = vmul.f32 %v1910, 0.2
    %v1943 = vmul.f32 %v1911, 0.2
    %v1944 = vmul.f32 %v1912, 0.2
    %v1945 = vmul.f32 %v1913, 0.2
    %v1946 = vmul.f32 %v1914, 0.2
    %v1947 = vmul.f32 %v1915, 0.2
    %v1948 = vmul.f32 %v1916, 0.2
    %v1949 = vmul.f32 %v1917, 0.2
    %v1950 = vmul.f32 %v1918, 0.2
    %v1951 = vsel %vm1919, %v1903, %v1935
    %v1952 = vsel %vm1920, %v1904, %v1936
    %v1953 = vsel %vm1921, %v1905, %v1937
    %v1954 = vsel %vm1922, %v1906, %v1938
    %v1955 = vsel %vm1923, %v1907, %v1939
    %v1956 = vsel %vm1924, %v1908, %v1940
    %v1957 = vsel %vm1925, %v1909, %v1941
    %v1958 = vsel %vm1926, %v1910, %v1942
    %v1959 = vsel %vm1927, %v1911, %v1943
    %v1960 = vsel %vm1928, %v1912, %v1944
    %v1961 = vsel %vm1929, %v1913, %v1945
    %v1962 = vsel %vm1930, %v1914, %v1946
    %v1963 = vsel %vm1931, %v1915, %v1947
    %v1964 = vsel %vm1932, %v1916, %v1948
    %v1965 = vsel %vm1933, %v1917, %v1949
    %v1966 = vsel %vm1934, %v1918, %v1950
    %v1967 = vld [vmem:[#allocation6] sm:$0xff]
    %v1968 = vld [vmem:[#allocation6 + $0x8] sm:$0xff]
    %v1969 = vld [vmem:[#allocation6 + $0x10] sm:$0xff]
    %v1970 = vld [vmem:[#allocation6 + $0x18] sm:$0xff]
    %v1971 = vld [vmem:[#allocation6 + $0x20] sm:$0xff]
    %v1972 = vld [vmem:[#allocation6 + $0x28] sm:$0xff]
    %v1973 = vld [vmem:[#allocation6 + $0x30] sm:$0xff]
    %v1974 = vld [vmem:[#allocation6 + $0x38] sm:$0xff]
    %vm1975 = vcmp.gt.bf16.partialorder %v1967, 0
    %vm1976 = vcmp.gt.bf16.partialorder %v1968, 0
    %vm1977 = vcmp.gt.bf16.partialorder %v1969, 0
    %vm1978 = vcmp.gt.bf16.partialorder %v1970, 0
    %vm1979 = vcmp.gt.bf16.partialorder %v1971, 0
    %vm1980 = vcmp.gt.bf16.partialorder %v1972, 0
    %vm1981 = vcmp.gt.bf16.partialorder %v1973, 0
    %vm1982 = vcmp.gt.bf16.partialorder %v1974, 0
    %v1983 = vsel %vm1975, 65537, 0
    %v1984 = vsel %vm1976, 65537, 0
    %v1985 = vsel %vm1977, 65537, 0
    %v1986 = vsel %vm1978, 65537, 0
    %v1987 = vsel %vm1979, 65537, 0
    %v1988 = vsel %vm1980, 65537, 0
    %v1989 = vsel %vm1981, 65537, 0
    %v1990 = vsel %vm1982, 65537, 0
    %v1991 = vunpack.c.l.b16 %v1983
    %v1992 = vunpack.c.h.b16 %v1983
    %v1993 = vunpack.c.l.b16 %v1984
    %v1994 = vunpack.c.h.b16 %v1984
    %v1995 = vunpack.c.l.b16 %v1985
    %v1996 = vunpack.c.h.b16 %v1985
    %v1997 = vunpack.c.l.b16 %v1986
    %v1998 = vunpack.c.h.b16 %v1986
    %v1999 = vunpack.c.l.b16 %v1987
    %v2000 = vunpack.c.h.b16 %v1987
    %v2001 = vunpack.c.l.b16 %v1988
    %v2002 = vunpack.c.h.b16 %v1988
    %v2003 = vunpack.c.l.b16 %v1989
    %v2004 = vunpack.c.h.b16 %v1989
    %v2005 = vunpack.c.l.b16 %v1990
    %v2006 = vunpack.c.h.b16 %v1990
    %v2007 = vpack.c.b16 %v1991, %v1991
    %v2008 = vpack.c.b16 %v1992, %v1992
    %v2009 = vpack.c.b16 %v1993, %v1993
    %v2010 = vpack.c.b16 %v1994, %v1994
    %v2011 = vpack.c.b16 %v1995, %v1995
    %v2012 = vpack.c.b16 %v1996, %v1996
    %v2013 = vpack.c.b16 %v1997, %v1997
    %v2014 = vpack.c.b16 %v1998, %v1998
    %v2015 = vpack.c.b16 %v1999, %v1999
    %v2016 = vpack.c.b16 %v2000, %v2000
    %v2017 = vpack.c.b16 %v2001, %v2001
    %v2018 = vpack.c.b16 %v2002, %v2002
    %v2019 = vpack.c.b16 %v2003, %v2003
    %v2020 = vpack.c.b16 %v2004, %v2004
    %v2021 = vpack.c.b16 %v2005, %v2005
    %v2022 = vpack.c.b16 %v2006, %v2006
    %vm2023 = vcmp.ne.s16.totalorder %v2007, 0
    %vm2024 = vcmp.ne.s16.totalorder %v2008, 0
    %vm2025 = vcmp.ne.s16.totalorder %v2009, 0
    %vm2026 = vcmp.ne.s16.totalorder %v2010, 0
    %vm2027 = vcmp.ne.s16.totalorder %v2011, 0
    %vm2028 = vcmp.ne.s16.totalorder %v2012, 0
    %vm2029 = vcmp.ne.s16.totalorder %v2013, 0
    %vm2030 = vcmp.ne.s16.totalorder %v2014, 0
    %vm2031 = vcmp.ne.s16.totalorder %v2015, 0
    %vm2032 = vcmp.ne.s16.totalorder %v2016, 0
    %vm2033 = vcmp.ne.s16.totalorder %v2017, 0
    %vm2034 = vcmp.ne.s16.totalorder %v2018, 0
    %vm2035 = vcmp.ne.s16.totalorder %v2019, 0
    %vm2036 = vcmp.ne.s16.totalorder %v2020, 0
    %vm2037 = vcmp.ne.s16.totalorder %v2021, 0
    %vm2038 = vcmp.ne.s16.totalorder %v2022, 0
    %v2039 = vsel %vm2023, 65537, 0
    %v2040 = vsel %vm2024, 65537, 0
    %v2041 = vsel %vm2025, 65537, 0
    %v2042 = vsel %vm2026, 65537, 0
    %v2043 = vsel %vm2027, 65537, 0
    %v2044 = vsel %vm2028, 65537, 0
    %v2045 = vsel %vm2029, 65537, 0
    %v2046 = vsel %vm2030, 65537, 0
    %v2047 = vsel %vm2031, 65537, 0
    %v2048 = vsel %vm2032, 65537, 0
    %v2049 = vsel %vm2033, 65537, 0
    %v2050 = vsel %vm2034, 65537, 0
    %v2051 = vsel %vm2035, 65537, 0
    %v2052 = vsel %vm2036, 65537, 0
    %v2053 = vsel %vm2037, 65537, 0
    %v2054 = vsel %vm2038, 65537, 0
    %v2055 = vunpack.c.l.b16 %v2039
    %v2056 = vunpack.c.l.b16 %v2040
    %v2057 = vunpack.c.l.b16 %v2041
    %v2058 = vunpack.c.l.b16 %v2042
    %v2059 = vunpack.c.l.b16 %v2043
    %v2060 = vunpack.c.l.b16 %v2044
    %v2061 = vunpack.c.l.b16 %v2045
    %v2062 = vunpack.c.l.b16 %v2046
    %v2063 = vunpack.c.l.b16 %v2047
    %v2064 = vunpack.c.l.b16 %v2048
    %v2065 = vunpack.c.l.b16 %v2049
    %v2066 = vunpack.c.l.b16 %v2050
    %v2067 = vunpack.c.l.b16 %v2051
    %v2068 = vunpack.c.l.b16 %v2052
    %v2069 = vunpack.c.l.b16 %v2053
    %v2070 = vunpack.c.l.b16 %v2054
    %vm2071 = vcmp.ne.s32.totalorder %v2055, 0
    %vm2072 = vcmp.ne.s32.totalorder %v2056, 0
    %vm2073 = vcmp.ne.s32.totalorder %v2057, 0
    %vm2074 = vcmp.ne.s32.totalorder %v2058, 0
    %vm2075 = vcmp.ne.s32.totalorder %v2059, 0
    %vm2076 = vcmp.ne.s32.totalorder %v2060, 0
    %vm2077 = vcmp.ne.s32.totalorder %v2061, 0
    %vm2078 = vcmp.ne.s32.totalorder %v2062, 0
    %vm2079 = vcmp.ne.s32.totalorder %v2063, 0
    %vm2080 = vcmp.ne.s32.totalorder %v2064, 0
    %vm2081 = vcmp.ne.s32.totalorder %v2065, 0
    %vm2082 = vcmp.ne.s32.totalorder %v2066, 0
    %vm2083 = vcmp.ne.s32.totalorder %v2067, 0
    %vm2084 = vcmp.ne.s32.totalorder %v2068, 0
    %vm2085 = vcmp.ne.s32.totalorder %v2069, 0
    %vm2086 = vcmp.ne.s32.totalorder %v2070, 0
    %v2087 = vsel %vm2071, %v1951, -1e+30
    %v2088 = vsel %vm2072, %v1952, -1e+30
    %v2089 = vsel %vm2073, %v1953, -1e+30
    %v2090 = vsel %vm2074, %v1954, -1e+30
    %v2091 = vsel %vm2075, %v1955, -1e+30
    %v2092 = vsel %vm2076, %v1956, -1e+30
    %v2093 = vsel %vm2077, %v1957, -1e+30
    %v2094 = vsel %vm2078, %v1958, -1e+30
    %v2095 = vsel %vm2079, %v1959, -1e+30
    %v2096 = vsel %vm2080, %v1960, -1e+30
    %v2097 = vsel %vm2081, %v1961, -1e+30
    %v2098 = vsel %vm2082, %v1962, -1e+30
    %v2099 = vsel %vm2083, %v1963, -1e+30
    %v2100 = vsel %vm2084, %v1964, -1e+30
    %v2101 = vsel %vm2085, %v1965, -1e+30
    %v2102 = vsel %vm2086, %v1966, -1e+30
    %2103 = vmax.xlane.f32.xlu0 %v2087
    %v2104 = vpop.xlane.xlu0 %2103
    %2105 = vmax.xlane.f32.xlu0 %v2088
    %v2106 = vpop.xlane.xlu0 %2105
    %2107 = vmax.xlane.f32.xlu0 %v2089
    %v2108 = vpop.xlane.xlu0 %2107
    %2109 = vmax.xlane.f32.xlu0 %v2090
    %v2110 = vpop.xlane.xlu0 %2109
    %2111 = vmax.xlane.f32.xlu0 %v2091
    %v2112 = vpop.xlane.xlu0 %2111
    %2113 = vmax.xlane.f32.xlu0 %v2092
    %v2114 = vpop.xlane.xlu0 %2113
    %2115 = vmax.xlane.f32.xlu0 %v2093
    %v2116 = vpop.xlane.xlu0 %2115
    %2117 = vmax.xlane.f32.xlu0 %v2094
    %v2118 = vpop.xlane.xlu0 %2117
    %2119 = vmax.xlane.f32.xlu0 %v2095
    %v2120 = vpop.xlane.xlu0 %2119
    %2121 = vmax.xlane.f32.xlu0 %v2096
    %v2122 = vpop.xlane.xlu0 %2121
    %2123 = vmax.xlane.f32.xlu0 %v2097
    %v2124 = vpop.xlane.xlu0 %2123
    %2125 = vmax.xlane.f32.xlu0 %v2098
    %v2126 = vpop.xlane.xlu0 %2125
    %2127 = vmax.xlane.f32.xlu0 %v2099
    %v2128 = vpop.xlane.xlu0 %2127
    %2129 = vmax.xlane.f32.xlu0 %v2100
    %v2130 = vpop.xlane.xlu0 %2129
    %2131 = vmax.xlane.f32.xlu0 %v2101
    %v2132 = vpop.xlane.xlu0 %2131
    %2133 = vmax.xlane.f32.xlu0 %v2102
    %v2134 = vpop.xlane.xlu0 %2133
    %v2135 = vsub.f32 %v2087, %v2104
    %v2136 = vsub.f32 %v2088, %v2106
    %v2137 = vsub.f32 %v2089, %v2108
    %v2138 = vsub.f32 %v2090, %v2110
    %v2139 = vsub.f32 %v2091, %v2112
    %v2140 = vsub.f32 %v2092, %v2114
    %v2141 = vsub.f32 %v2093, %v2116
    %v2142 = vsub.f32 %v2094, %v2118
    %v2143 = vsub.f32 %v2095, %v2120
    %v2144 = vsub.f32 %v2096, %v2122
    %v2145 = vsub.f32 %v2097, %v2124
    %v2146 = vsub.f32 %v2098, %v2126
    %v2147 = vsub.f32 %v2099, %v2128
    %v2148 = vsub.f32 %v2100, %v2130
    %v2149 = vsub.f32 %v2101, %v2132
    %v2150 = vsub.f32 %v2102, %v2134
    %v2151 = vmul.f32 %v2135, 1.442695
    %v2152 = vpow.pop %v2151
    %v2153 = vmul.f32 %v2136, 1.442695
    %v2154 = vpow.pop %v2153
    %v2155 = vmul.f32 %v2137, 1.442695
    %v2156 = vpow.pop %v2155
    %v2157 = vmul.f32 %v2138, 1.442695
    %v2158 = vpow.pop %v2157
    %v2159 = vmul.f32 %v2139, 1.442695
    %v2160 = vpow.pop %v2159
    %v2161 = vmul.f32 %v2140, 1.442695
    %v2162 = vpow.pop %v2161
    %v2163 = vmul.f32 %v2141, 1.442695
    %v2164 = vpow.pop %v2163
    %v2165 = vmul.f32 %v2142, 1.442695
    %v2166 = vpow.pop %v2165
    %v2167 = vmul.f32 %v2143, 1.442695
    %v2168 = vpow.pop %v2167
    %v2169 = vmul.f32 %v2144, 1.442695
    %v2170 = vpow.pop %v2169
    %v2171 = vmul.f32 %v2145, 1.442695
    %v2172 = vpow.pop %v2171
    %v2173 = vmul.f32 %v2146, 1.442695
    %v2174 = vpow.pop %v2173
    %v2175 = vmul.f32 %v2147, 1.442695
    %v2176 = vpow.pop %v2175
    %v2177 = vmul.f32 %v2148, 1.442695
    %v2178 = vpow.pop %v2177
    %v2179 = vmul.f32 %v2149, 1.442695
    %v2180 = vpow.pop %v2179
    %v2181 = vmul.f32 %v2150, 1.442695
    %v2182 = vpow.pop %v2181
    %2183 = vadd.xlane.f32.xlu0 %v2152
    %v2184 = vpop.xlane.xlu0 %2183
    %2185 = vadd.xlane.f32.xlu0 %v2154
    %v2186 = vpop.xlane.xlu0 %2185
    %2187 = vadd.xlane.f32.xlu0 %v2156
    %v2188 = vpop.xlane.xlu0 %2187
    %2189 = vadd.xlane.f32.xlu0 %v2158
    %v2190 = vpop.xlane.xlu0 %2189
    %2191 = vadd.xlane.f32.xlu0 %v2160
    %v2192 = vpop.xlane.xlu0 %2191
    %2193 = vadd.xlane.f32.xlu0 %v2162
    %v2194 = vpop.xlane.xlu0 %2193
    %2195 = vadd.xlane.f32.xlu0 %v2164
    %v2196 = vpop.xlane.xlu0 %2195
    %2197 = vadd.xlane.f32.xlu0 %v2166
    %v2198 = vpop.xlane.xlu0 %2197
    %2199 = vadd.xlane.f32.xlu0 %v2168
    %v2200 = vpop.xlane.xlu0 %2199
    %2201 = vadd.xlane.f32.xlu0 %v2170
    %v2202 = vpop.xlane.xlu0 %2201
    %2203 = vadd.xlane.f32.xlu0 %v2172
    %v2204 = vpop.xlane.xlu0 %2203
    %2205 = vadd.xlane.f32.xlu0 %v2174
    %v2206 = vpop.xlane.xlu0 %2205
    %2207 = vadd.xlane.f32.xlu0 %v2176
    %v2208 = vpop.xlane.xlu0 %2207
    %2209 = vadd.xlane.f32.xlu0 %v2178
    %v2210 = vpop.xlane.xlu0 %2209
    %2211 = vadd.xlane.f32.xlu0 %v2180
    %v2212 = vpop.xlane.xlu0 %2211
    %2213 = vadd.xlane.f32.xlu0 %v2182
    %v2214 = vpop.xlane.xlu0 %2213
    %v2215 = vrcp.pop %v2184
    %v2216 = vrcp.pop %v2186
    %v2217 = vrcp.pop %v2188
    %v2218 = vrcp.pop %v2190
    %v2219 = vrcp.pop %v2192
    %v2220 = vrcp.pop %v2194
    %v2221 = vrcp.pop %v2196
    %v2222 = vrcp.pop %v2198
    %v2223 = vrcp.pop %v2200
    %v2224 = vrcp.pop %v2202
    %v2225 = vrcp.pop %v2204
    %v2226 = vrcp.pop %v2206
    %v2227 = vrcp.pop %v2208
    %v2228 = vrcp.pop %v2210
    %v2229 = vrcp.pop %v2212
    %v2230 = vrcp.pop %v2214
    %v2231 = vmul.f32 %v2152, %v2215
    %v2232 = vmul.f32 %v2154, %v2216
    %v2233 = vmul.f32 %v2156, %v2217
    %v2234 = vmul.f32 %v2158, %v2218
    %v2235 = vmul.f32 %v2160, %v2219
    %v2236 = vmul.f32 %v2162, %v2220
    %v2237 = vmul.f32 %v2164, %v2221
    %v2238 = vmul.f32 %v2166, %v2222
    %v2239 = vmul.f32 %v2168, %v2223
    %v2240 = vmul.f32 %v2170, %v2224
    %v2241 = vmul.f32 %v2172, %v2225
    %v2242 = vmul.f32 %v2174, %v2226
    %v2243 = vmul.f32 %v2176, %v2227
    %v2244 = vmul.f32 %v2178, %v2228
    %v2245 = vmul.f32 %v2180, %v2229
    %v2246 = vmul.f32 %v2182, %v2230
    %v2247 = vpack.c.bf16 %v2232, %v2231
    %v2248 = vpack.c.bf16 %v2234, %v2233
    %v2249 = vpack.c.bf16 %v2236, %v2235
    %v2250 = vpack.c.bf16 %v2238, %v2237
    %v2251 = vpack.c.bf16 %v2240, %v2239
    %v2252 = vpack.c.bf16 %v2242, %v2241
    %v2253 = vpack.c.bf16 %v2244, %v2243
    %v2254 = vpack.c.bf16 %v2246, %v2245
    %v2255 = vld [vmem:[#allocation2] sm:$0xff]
    %v2256 = vld [vmem:[#allocation2 + $0x8] sm:$0xff]
    %v2257 = vld [vmem:[#allocation2 + $0x10] sm:$0xff]
    %v2258 = vld [vmem:[#allocation2 + $0x18] sm:$0xff]
    %v2259 = vld [vmem:[#allocation2 + $0x20] sm:$0xff]
    %v2260 = vld [vmem:[#allocation2 + $0x28] sm:$0xff]
    %v2261 = vld [vmem:[#allocation2 + $0x30] sm:$0xff]
    %v2262 = vld [vmem:[#allocation2 + $0x38] sm:$0xff]
    %v2264 = vlaneseq
    %v2265 = vshrl.u32 %v2264, 7
    %v2266 = vsub.s32 0, %v2265
    %v2267 = vrot.slane %v1800, %v2266
    %2269 = vmatprep.subr.bf16.mxu0 0
    %2270 = vmatpush1.bf16.msra.mxu0 %v2255
    %2271 = vmatprep.subr.bf16.mxu0 0
    %2272 = vmatpush1.bf16.msra.mxu0 %v2256
    %2273 = vmatprep.subr.bf16.mxu0 0
    %2274 = vmatpush1.bf16.msra.mxu0 %v2257
    %2275 = vmatprep.subr.bf16.mxu0 0
    %2276 = vmatpush1.bf16.msra.mxu0 %v2258
    %2277 = vmatprep.subr.bf16.mxu0 0
    %2278 = vmatpush1.bf16.msra.mxu0 %v2259
    %2279 = vmatprep.subr.bf16.mxu0 0
    %2280 = vmatpush1.bf16.msra.mxu0 %v2260
    %2281 = vmatprep.subr.bf16.mxu0 0
    %2282 = vmatpush1.bf16.msra.mxu0 %v2261
    %2283 = vmatprep.subr.bf16.mxu0 0
    %2284 = vmatpush1.bf16.msra.mxu0 %v2262
    %2285 = vmatprep.subr.bf16.mxu0 0
    %2286 = vmatpush1.bf16.msra.mxu0 0
    %2287 = vmatprep.subr.bf16.mxu0 0
    %2288 = vmatpush1.bf16.msra.mxu0 0
    %2289 = vmatprep.subr.bf16.mxu0 0
    %2290 = vmatpush1.bf16.msra.mxu0 0
    %2291 = vmatprep.subr.bf16.mxu0 0
    %2292 = vmatpush1.bf16.msra.mxu0 0
    %2293 = vmatprep.subr.bf16.mxu0 0
    %2294 = vmatpush1.bf16.msra.mxu0 0
    %2295 = vmatprep.subr.bf16.mxu0 0
    %2296 = vmatpush1.bf16.msra.mxu0 0
    %2297 = vmatprep.subr.bf16.mxu0 0
    %2298 = vmatpush1.bf16.msra.mxu0 0
    %2299 = vmatprep.subr.bf16.mxu0 0
    %2300 = vmatpush1.bf16.msra.mxu0 0
    %2301 = vmatprep.mubr.bf16.mxu0 0
    %2302 = vmatmul.mubr.bf16.gmra.mrb[0].mxu0 %v2247
    %v2303 = vpop.f32.mrb[0].mxu0
    %v2304 = vadd.f32 %v2267, %v2303
    %v2305 = vpop.f32.mrb[0].mxu0
    %v2306 = vpop.f32.mrb[0].mxu0
    %v2307 = vadd.f32 %v2267, %v2306
    %v2308 = vpop.f32.mrb[0].mxu0
    %2309 = vmatprep.mubr.bf16.mxu0 0
    %2310 = vmatmul.mubr.bf16.gmra.mrb[0].mxu0 %v2248
    %v2311 = vpop.f32.mrb[0].mxu0
    %v2312 = vadd.f32 %v2267, %v2311
    %v2313 = vpop.f32.mrb[0].mxu0
    %v2314 = vpop.f32.mrb[0].mxu0
    %v2315 = vadd.f32 %v2267, %v2314
    %v2316 = vpop.f32.mrb[0].mxu0
    %2317 = vmatprep.mubr.bf16.mxu0 0
    %2318 = vmatmul.mubr.bf16.gmra.mrb[0].mxu0 %v2249
    %v2319 = vpop.f32.mrb[0].mxu0
    %v2320 = vadd.f32 %v2267, %v2319
    %v2321 = vpop.f32.mrb[0].mxu0
    %v2322 = vpop.f32.mrb[0].mxu0
    %v2323 = vadd.f32 %v2267, %v2322
    %v2324 = vpop.f32.mrb[0].mxu0
    %2325 = vmatprep.mubr.bf16.mxu0 0
    %2326 = vmatmul.mubr.bf16.gmra.mrb[0].mxu0 %v2250
    %v2327 = vpop.f32.mrb[0].mxu0
    %v2328 = vadd.f32 %v2267, %v2327
    %v2329 = vpop.f32.mrb[0].mxu0
    %v2330 = vpop.f32.mrb[0].mxu0
    %v2331 = vadd.f32 %v2267, %v2330
    %v2332 = vpop.f32.mrb[0].mxu0
    %2333 = vmatprep.mubr.bf16.mxu0 0
    %2334 = vmatmul.mubr.bf16.gmra.mrb[0].mxu0 %v2251
    %v2335 = vpop.f32.mrb[0].mxu0
    %v2336 = vadd.f32 %v2267, %v2335
    %v2337 = vpop.f32.mrb[0].mxu0
    %v2338 = vpop.f32.mrb[0].mxu0
    %v2339 = vadd.f32 %v2267, %v2338
    %v2340 = vpop.f32.mrb[0].mxu0
    %2341 = vmatprep.mubr.bf16.mxu0 0
    %2342 = vmatmul.mubr.bf16.gmra.mrb[0].mxu0 %v2252
    %v2343 = vpop.f32.mrb[0].mxu0
    %v2344 = vadd.f32 %v2267, %v2343
    %v2345 = vpop.f32.mrb[0].mxu0
    %v2346 = vpop.f32.mrb[0].mxu0
    %v2347 = vadd.f32 %v2267, %v2346
    %v2348 = vpop.f32.mrb[0].mxu0
    %2349 = vmatprep.mubr.bf16.mxu0 0
    %2350 = vmatmul.mubr.bf16.gmra.mrb[0].mxu0 %v2253
    %v2351 = vpop.f32.mrb[0].mxu0
    %v2352 = vadd.f32 %v2267, %v2351
    %v2353 = vpop.f32.mrb[0].mxu0
    %v2354 = vpop.f32.mrb[0].mxu0
    %v2355 = vadd.f32 %v2267, %v2354
    %v2356 = vpop.f32.mrb[0].mxu0
    %2357 = vmatprep.mubr.bf16.mxu0 0
    %2358 = vmatmul.mubr.bf16.gmra.mrb[0].mxu0 %v2254
    %v2359 = vpop.f32.mrb[0].mxu0
    %v2360 = vadd.f32 %v2267, %v2359
    %v2361 = vpop.f32.mrb[0].mxu0
    %v2362 = vpop.f32.mrb[0].mxu0
    %v2363 = vadd.f32 %v2267, %v2362
    %v2364 = vpop.f32.mrb[0].mxu0
    %2365 = vdwg.mxu0
    %v2366 = vmul.f32 %v2304, 0.5
    %v2367 = vmul.f32 %v2307, 0.5
    %v2368 = vmul.f32 %v2312, 0.5
    %v2369 = vmul.f32 %v2315, 0.5
    %v2370 = vmul.f32 %v2320, 0.5
    %v2371 = vmul.f32 %v2323, 0.5
    %v2372 = vmul.f32 %v2328, 0.5
    %v2373 = vmul.f32 %v2331, 0.5
    %v2374 = vmul.f32 %v2336, 0.5
    %v2375 = vmul.f32 %v2339, 0.5
    %v2376 = vmul.f32 %v2344, 0.5
    %v2377 = vmul.f32 %v2347, 0.5
    %v2378 = vmul.f32 %v2352, 0.5
    %v2379 = vmul.f32 %v2355, 0.5
    %v2380 = vmul.f32 %v2360, 0.5
    %v2381 = vmul.f32 %v2363, 0.5
    %v2382 = vmul.f32 %v2304, 0.70710677
    %v2383 = vmul.f32 %v2307, 0.70710677
    %v2384 = vmul.f32 %v2312, 0.70710677
    %v2385 = vmul.f32 %v2315, 0.70710677
    %v2386 = vmul.f32 %v2320, 0.70710677
    %v2387 = vmul.f32 %v2323, 0.70710677
    %v2388 = vmul.f32 %v2328, 0.70710677
    %v2389 = vmul.f32 %v2331, 0.70710677
    %v2390 = vmul.f32 %v2336, 0.70710677
    %v2391 = vmul.f32 %v2339, 0.70710677
    %v2392 = vmul.f32 %v2344, 0.70710677
    %v2393 = vmul.f32 %v2347, 0.70710677
    %v2394 = vmul.f32 %v2352, 0.70710677
    %v2395 = vmul.f32 %v2355, 0.70710677
    %v2396 = vmul.f32 %v2360, 0.70710677
    %v2397 = vmul.f32 %v2363, 0.70710677
    %vm2398 = vcmp.ge.f32.partialorder %v2382, 0.0
    %vm2399 = vcmp.ge.f32.partialorder %v2383, 0.0
    %vm2400 = vcmp.ge.f32.partialorder %v2384, 0.0
    %vm2401 = vcmp.ge.f32.partialorder %v2385, 0.0
    %vm2402 = vcmp.ge.f32.partialorder %v2386, 0.0
    %vm2403 = vcmp.ge.f32.partialorder %v2387, 0.0
    %vm2404 = vcmp.ge.f32.partialorder %v2388, 0.0
    %vm2405 = vcmp.ge.f32.partialorder %v2389, 0.0
    %vm2406 = vcmp.ge.f32.partialorder %v2390, 0.0
    %vm2407 = vcmp.ge.f32.partialorder %v2391, 0.0
    %vm2408 = vcmp.ge.f32.partialorder %v2392, 0.0
    %vm2409 = vcmp.ge.f32.partialorder %v2393, 0.0
    %vm2410 = vcmp.ge.f32.partialorder %v2394, 0.0
    %vm2411 = vcmp.ge.f32.partialorder %v2395, 0.0
    %vm2412 = vcmp.ge.f32.partialorder %v2396, 0.0
    %vm2413 = vcmp.ge.f32.partialorder %v2397, 0.0
    %v2414 = vsel %vm2398, 1.0, -1.0
    %v2415 = vsel %vm2399, 1.0, -1.0
    %v2416 = vsel %vm2400, 1.0, -1.0
    %v2417 = vsel %vm2401, 1.0, -1.0
    %v2418 = vsel %vm2402, 1.0, -1.0
    %v2419 = vsel %vm2403, 1.0, -1.0
    %v2420 = vsel %vm2404, 1.0, -1.0
    %v2421 = vsel %vm2405, 1.0, -1.0
    %v2422 = vsel %vm2406, 1.0, -1.0
    %v2423 = vsel %vm2407, 1.0, -1.0
    %v2424 = vsel %vm2408, 1.0, -1.0
    %v2425 = vsel %vm2409, 1.0, -1.0
    %v2426 = vsel %vm2410, 1.0, -1.0
    %v2427 = vsel %vm2411, 1.0, -1.0
    %v2428 = vsel %vm2412, 1.0, -1.0
    %v2429 = vsel %vm2413, 1.0, -1.0
    %v2430 = vand.u32 2147483647, %v2382
    %v2431 = vand.u32 2147483647, %v2383
    %v2432 = vand.u32 2147483647, %v2384
    %v2433 = vand.u32 2147483647, %v2385
    %v2434 = vand.u32 2147483647, %v2386
    %v2435 = vand.u32 2147483647, %v2387
    %v2436 = vand.u32 2147483647, %v2388
    %v2437 = vand.u32 2147483647, %v2389
    %v2438 = vand.u32 2147483647, %v2390
    %v2439 = vand.u32 2147483647, %v2391
    %v2440 = vand.u32 2147483647, %v2392
    %v2441 = vand.u32 2147483647, %v2393
    %v2442 = vand.u32 2147483647, %v2394
    %v2443 = vand.u32 2147483647, %v2395
    %v2444 = vand.u32 2147483647, %v2396
    %v2445 = vand.u32 2147483647, %v2397
    %v2446 = vmul.f32 %v2430, 0.3275911
    %v2447 = vmul.f32 %v2431, 0.3275911
    %v2448 = vmul.f32 %v2432, 0.3275911
    %v2449 = vmul.f32 %v2433, 0.3275911
    %v2450 = vmul.f32 %v2434, 0.3275911
    %v2451 = vmul.f32 %v2435, 0.3275911
    %v2452 = vmul.f32 %v2436, 0.3275911
    %v2453 = vmul.f32 %v2437, 0.3275911
    %v2454 = vmul.f32 %v2438, 0.3275911
    %v2455 = vmul.f32 %v2439, 0.3275911
    %v2456 = vmul.f32 %v2440, 0.3275911
    %v2457 = vmul.f32 %v2441, 0.3275911
    %v2458 = vmul.f32 %v2442, 0.3275911
    %v2459 = vmul.f32 %v2443, 0.3275911
    %v2460 = vmul.f32 %v2444, 0.3275911
    %v2461 = vmul.f32 %v2445, 0.3275911
    %v2462 = vadd.f32 %v2446, 1.0
    %v2463 = vadd.f32 %v2447, 1.0
    %v2464 = vadd.f32 %v2448, 1.0
    %v2465 = vadd.f32 %v2449, 1.0
    %v2466 = vadd.f32 %v2450, 1.0
    %v2467 = vadd.f32 %v2451, 1.0
    %v2468 = vadd.f32 %v2452, 1.0
    %v2469 = vadd.f32 %v2453, 1.0
    %v2470 = vadd.f32 %v2454, 1.0
    %v2471 = vadd.f32 %v2455, 1.0
    %v2472 = vadd.f32 %v2456, 1.0
    %v2473 = vadd.f32 %v2457, 1.0
    %v2474 = vadd.f32 %v2458, 1.0
    %v2475 = vadd.f32 %v2459, 1.0
    %v2476 = vadd.f32 %v2460, 1.0
    %v2477 = vadd.f32 %v2461, 1.0
    %v2478 = vrcp.pop %v2462
    %v2479 = vmul.f32 1.0, %v2478
    %v2480 = vrcp.pop %v2463
    %v2481 = vmul.f32 1.0, %v2480
    %v2482 = vrcp.pop %v2464
    %v2483 = vmul.f32 1.0, %v2482
    %v2484 = vrcp.pop %v2465
    %v2485 = vmul.f32 1.0, %v2484
    %v2486 = vrcp.pop %v2466
    %v2487 = vmul.f32 1.0, %v2486
    %v2488 = vrcp.pop %v2467
    %v2489 = vmul.f32 1.0, %v2488
    %v2490 = vrcp.pop %v2468
    %v2491 = vmul.f32 1.0, %v2490
    %v2492 = vrcp.pop %v2469
    %v2493 = vmul.f32 1.0, %v2492
    %v2494 = vrcp.pop %v2470
    %v2495 = vmul.f32 1.0, %v2494
    %v2496 = vrcp.pop %v2471
    %v2497 = vmul.f32 1.0, %v2496
    %v2498 = vrcp.pop %v2472
    %v2499 = vmul.f32 1.0, %v2498
    %v2500 = vrcp.pop %v2473
    %v2501 = vmul.f32 1.0, %v2500
    %v2502 = vrcp.pop %v2474
    %v2503 = vmul.f32 1.0, %v2502
    %v2504 = vrcp.pop %v2475
    %v2505 = vmul.f32 1.0, %v2504
    %v2506 = vrcp.pop %v2476
    %v2507 = vmul.f32 1.0, %v2506
    %v2508 = vrcp.pop %v2477
    %v2509 = vmul.f32 1.0, %v2508
    %v2510 = vmul.f32 %v2479, 1.0614054
    %v2511 = vmul.f32 %v2481, 1.0614054
    %v2512 = vmul.f32 %v2483, 1.0614054
    %v2513 = vmul.f32 %v2485, 1.0614054
    %v2514 = vmul.f32 %v2487, 1.0614054
    %v2515 = vmul.f32 %v2489, 1.0614054
    %v2516 = vmul.f32 %v2491, 1.0614054
    %v2517 = vmul.f32 %v2493, 1.0614054
    %v2518 = vmul.f32 %v2495, 1.0614054
    %v2519 = vmul.f32 %v2497, 1.0614054
    %v2520 = vmul.f32 %v2499, 1.0614054
    %v2521 = vmul.f32 %v2501, 1.0614054
    %v2522 = vmul.f32 %v2503, 1.0614054
    %v2523 = vmul.f32 %v2505, 1.0614054
    %v2524 = vmul.f32 %v2507, 1.0614054
    %v2525 = vmul.f32 %v2509, 1.0614054
    %v2526 = vadd.f32 %v2510, -1.4531521
    %v2527 = vadd.f32 %v2511, -1.4531521
    %v2528 = vadd.f32 %v2512, -1.4531521
    %v2529 = vadd.f32 %v2513, -1.4531521
    %v2530 = vadd.f32 %v2514, -1.4531521
    %v2531 = vadd.f32 %v2515, -1.4531521
    %v2532 = vadd.f32 %v2516, -1.4531521
    %v2533 = vadd.f32 %v2517, -1.4531521
    %v2534 = vadd.f32 %v2518, -1.4531521
    %v2535 = vadd.f32 %v2519, -1.4531521
    %v2536 = vadd.f32 %v2520, -1.4531521
    %v2537 = vadd.f32 %v2521, -1.4531521
    %v2538 = vadd.f32 %v2522, -1.4531521
    %v2539 = vadd.f32 %v2523, -1.4531521
    %v2540 = vadd.f32 %v2524, -1.4531521
    %v2541 = vadd.f32 %v2525, -1.4531521
    %v2542 = vmul.f32 %v2479, %v2526
    %v2543 = vmul.f32 %v2481, %v2527
    %v2544 = vmul.f32 %v2483, %v2528
    %v2545 = vmul.f32 %v2485, %v2529
    %v2546 = vmul.f32 %v2487, %v2530
    %v2547 = vmul.f32 %v2489, %v2531
    %v2548 = vmul.f32 %v2491, %v2532
    %v2549 = vmul.f32 %v2493, %v2533
    %v2550 = vmul.f32 %v2495, %v2534
    %v2551 = vmul.f32 %v2497, %v2535
    %v2552 = vmul.f32 %v2499, %v2536
    %v2553 = vmul.f32 %v2501, %v2537
    %v2554 = vmul.f32 %v2503, %v2538
    %v2555 = vmul.f32 %v2505, %v2539
    %v2556 = vmul.f32 %v2507, %v2540
    %v2557 = vmul.f32 %v2509, %v2541
    %v2558 = vadd.f32 %v2542, 1.4214138
    %v2559 = vadd.f32 %v2543, 1.4214138
    %v2560 = vadd.f32 %v2544, 1.4214138
    %v2561 = vadd.f32 %v2545, 1.4214138
    %v2562 = vadd.f32 %v2546, 1.4214138
    %v2563 = vadd.f32 %v2547, 1.4214138
    %v2564 = vadd.f32 %v2548, 1.4214138
    %v2565 = vadd.f32 %v2549, 1.4214138
    %v2566 = vadd.f32 %v2550, 1.4214138
    %v2567 = vadd.f32 %v2551, 1.4214138
    %v2568 = vadd.f32 %v2552, 1.4214138
    %v2569 = vadd.f32 %v2553, 1.4214138
    %v2570 = vadd.f32 %v2554, 1.4214138
    %v2571 = vadd.f32 %v2555, 1.4214138
    %v2572 = vadd.f32 %v2556, 1.4214138
    %v2573 = vadd.f32 %v2557, 1.4214138
    %v2574 = vmul.f32 %v2479, %v2558
    %v2575 = vmul.f32 %v2481, %v2559
    %v2576 = vmul.f32 %v2483, %v2560
    %v2577 = vmul.f32 %v2485, %v2561
    %v2578 = vmul.f32 %v2487, %v2562
    %v2579 = vmul.f32 %v2489, %v2563
    %v2580 = vmul.f32 %v2491, %v2564
    %v2581 = vmul.f32 %v2493, %v2565
    %v2582 = vmul.f32 %v2495, %v2566
    %v2583 = vmul.f32 %v2497, %v2567
    %v2584 = vmul.f32 %v2499, %v2568
    %v2585 = vmul.f32 %v2501, %v2569
    %v2586 = vmul.f32 %v2503, %v2570
    %v2587 = vmul.f32 %v2505, %v2571
    %v2588 = vmul.f32 %v2507, %v2572
    %v2589 = vmul.f32 %v2509, %v2573
    %v2590 = vadd.f32 %v2574, -0.28449672
    %v2591 = vadd.f32 %v2575, -0.28449672
    %v2592 = vadd.f32 %v2576, -0.28449672
    %v2593 = vadd.f32 %v2577, -0.28449672
    %v2594 = vadd.f32 %v2578, -0.28449672
    %v2595 = vadd.f32 %v2579, -0.28449672
    %v2596 = vadd.f32 %v2580, -0.28449672
    %v2597 = vadd.f32 %v2581, -0.28449672
    %v2598 = vadd.f32 %v2582, -0.28449672
    %v2599 = vadd.f32 %v2583, -0.28449672
    %v2600 = vadd.f32 %v2584, -0.28449672
    %v2601 = vadd.f32 %v2585, -0.28449672
    %v2602 = vadd.f32 %v2586, -0.28449672
    %v2603 = vadd.f32 %v2587, -0.28449672
    %v2604 = vadd.f32 %v2588, -0.28449672
    %v2605 = vadd.f32 %v2589, -0.28449672
    %v2606 = vmul.f32 %v2479, %v2590
    %v2607 = vmul.f32 %v2481, %v2591
    %v2608 = vmul.f32 %v2483, %v2592
    %v2609 = vmul.f32 %v2485, %v2593
    %v2610 = vmul.f32 %v2487, %v2594
    %v2611 = vmul.f32 %v2489, %v2595
    %v2612 = vmul.f32 %v2491, %v2596
    %v2613 = vmul.f32 %v2493, %v2597
    %v2614 = vmul.f32 %v2495, %v2598
    %v2615 = vmul.f32 %v2497, %v2599
    %v2616 = vmul.f32 %v2499, %v2600
    %v2617 = vmul.f32 %v2501, %v2601
    %v2618 = vmul.f32 %v2503, %v2602
    %v2619 = vmul.f32 %v2505, %v2603
    %v2620 = vmul.f32 %v2507, %v2604
    %v2621 = vmul.f32 %v2509, %v2605
    %v2622 = vadd.f32 %v2606, 0.2548296
    %v2623 = vadd.f32 %v2607, 0.2548296
    %v2624 = vadd.f32 %v2608, 0.2548296
    %v2625 = vadd.f32 %v2609, 0.2548296
    %v2626 = vadd.f32 %v2610, 0.2548296
    %v2627 = vadd.f32 %v2611, 0.2548296
    %v2628 = vadd.f32 %v2612, 0.2548296
    %v2629 = vadd.f32 %v2613, 0.2548296
    %v2630 = vadd.f32 %v2614, 0.2548296
    %v2631 = vadd.f32 %v2615, 0.2548296
    %v2632 = vadd.f32 %v2616, 0.2548296
    %v2633 = vadd.f32 %v2617, 0.2548296
    %v2634 = vadd.f32 %v2618, 0.2548296
    %v2635 = vadd.f32 %v2619, 0.2548296
    %v2636 = vadd.f32 %v2620, 0.2548296
    %v2637 = vadd.f32 %v2621, 0.2548296
    %v2638 = vmul.f32 %v2479, %v2622
    %v2639 = vmul.f32 %v2481, %v2623
    %v2640 = vmul.f32 %v2483, %v2624
    %v2641 = vmul.f32 %v2485, %v2625
    %v2642 = vmul.f32 %v2487, %v2626
    %v2643 = vmul.f32 %v2489, %v2627
    %v2644 = vmul.f32 %v2491, %v2628
    %v2645 = vmul.f32 %v2493, %v2629
    %v2646 = vmul.f32 %v2495, %v2630
    %v2647 = vmul.f32 %v2497, %v2631
    %v2648 = vmul.f32 %v2499, %v2632
    %v2649 = vmul.f32 %v2501, %v2633
    %v2650 = vmul.f32 %v2503, %v2634
    %v2651 = vmul.f32 %v2505, %v2635
    %v2652 = vmul.f32 %v2507, %v2636
    %v2653 = vmul.f32 %v2509, %v2637
    %v2654 = vsub.f32 0.0, %v2430
    %v2655 = vsub.f32 0.0, %v2431
    %v2656 = vsub.f32 0.0, %v2432
    %v2657 = vsub.f32 0.0, %v2433
    %v2658 = vsub.f32 0.0, %v2434
    %v2659 = vsub.f32 0.0, %v2435
    %v2660 = vsub.f32 0.0, %v2436
    %v2661 = vsub.f32 0.0, %v2437
    %v2662 = vsub.f32 0.0, %v2438
    %v2663 = vsub.f32 0.0, %v2439
    %v2664 = vsub.f32 0.0, %v2440
    %v2665 = vsub.f32 0.0, %v2441
    %v2666 = vsub.f32 0.0, %v2442
    %v2667 = vsub.f32 0.0, %v2443
    %v2668 = vsub.f32 0.0, %v2444
    %v2669 = vsub.f32 0.0, %v2445
    %v2670 = vmul.f32 %v2654, %v2430
    %v2671 = vmul.f32 %v2655, %v2431
    %v2672 = vmul.f32 %v2656, %v2432
    %v2673 = vmul.f32 %v2657, %v2433
    %v2674 = vmul.f32 %v2658, %v2434
    %v2675 = vmul.f32 %v2659, %v2435
    %v2676 = vmul.f32 %v2660, %v2436
    %v2677 = vmul.f32 %v2661, %v2437
    %v2678 = vmul.f32 %v2662, %v2438
    %v2679 = vmul.f32 %v2663, %v2439
    %v2680 = vmul.f32 %v2664, %v2440
    %v2681 = vmul.f32 %v2665, %v2441
    %v2682 = vmul.f32 %v2666, %v2442
    %v2683 = vmul.f32 %v2667, %v2443
    %v2684 = vmul.f32 %v2668, %v2444
    %v2685 = vmul.f32 %v2669, %v2445
    %v2686 = vmul.f32 %v2670, 1.442695
    %v2687 = vpow.pop %v2686
    %v2688 = vmul.f32 %v2671, 1.442695
    %v2689 = vpow.pop %v2688
    %v2690 = vmul.f32 %v2672, 1.442695
    %v2691 = vpow.pop %v2690
    %v2692 = vmul.f32 %v2673, 1.442695
    %v2693 = vpow.pop %v2692
    %v2694 = vmul.f32 %v2674, 1.442695
    %v2695 = vpow.pop %v2694
    %v2696 = vmul.f32 %v2675, 1.442695
    %v2697 = vpow.pop %v2696
    %v2698 = vmul.f32 %v2676, 1.442695
    %v2699 = vpow.pop %v2698
    %v2700 = vmul.f32 %v2677, 1.442695
    %v2701 = vpow.pop %v2700
    %v2702 = vmul.f32 %v2678, 1.442695
    %v2703 = vpow.pop %v2702
    %v2704 = vmul.f32 %v2679, 1.442695
    %v2705 = vpow.pop %v2704
    %v2706 = vmul.f32 %v2680, 1.442695
    %v2707 = vpow.pop %v2706
    %v2708 = vmul.f32 %v2681, 1.442695
    %v2709 = vpow.pop %v2708
    %v2710 = vmul.f32 %v2682, 1.442695
    %v2711 = vpow.pop %v2710
    %v2712 = vmul.f32 %v2683, 1.442695
    %v2713 = vpow.pop %v2712
    %v2714 = vmul.f32 %v2684, 1.442695
    %v2715 = vpow.pop %v2714
    %v2716 = vmul.f32 %v2685, 1.442695
    %v2717 = vpow.pop %v2716
    %v2718 = vmul.f32 %v2638, %v2687
    %v2719 = vmul.f32 %v2639, %v2689
    %v2720 = vmul.f32 %v2640, %v2691
    %v2721 = vmul.f32 %v2641, %v2693
    %v2722 = vmul.f32 %v2642, %v2695
    %v2723 = vmul.f32 %v2643, %v2697
    %v2724 = vmul.f32 %v2644, %v2699
    %v2725 = vmul.f32 %v2645, %v2701
    %v2726 = vmul.f32 %v2646, %v2703
    %v2727 = vmul.f32 %v2647, %v2705
    %v2728 = vmul.f32 %v2648, %v2707
    %v2729 = vmul.f32 %v2649, %v2709
    %v2730 = vmul.f32 %v2650, %v2711
    %v2731 = vmul.f32 %v2651, %v2713
    %v2732 = vmul.f32 %v2652, %v2715
    %v2733 = vmul.f32 %v2653, %v2717
    %v2734 = vsub.f32 1.0, %v2718
    %v2735 = vsub.f32 1.0, %v2719
    %v2736 = vsub.f32 1.0, %v2720
    %v2737 = vsub.f32 1.0, %v2721
    %v2738 = vsub.f32 1.0, %v2722
    %v2739 = vsub.f32 1.0, %v2723
    %v2740 = vsub.f32 1.0, %v2724
    %v2741 = vsub.f32 1.0, %v2725
    %v2742 = vsub.f32 1.0, %v2726
    %v2743 = vsub.f32 1.0, %v2727
    %v2744 = vsub.f32 1.0, %v2728
    %v2745 = vsub.f32 1.0, %v2729
    %v2746 = vsub.f32 1.0, %v2730
    %v2747 = vsub.f32 1.0, %v2731
    %v2748 = vsub.f32 1.0, %v2732
    %v2749 = vsub.f32 1.0, %v2733
    %v2750 = vmul.f32 %v2414, %v2734
    %v2751 = vmul.f32 %v2415, %v2735
    %v2752 = vmul.f32 %v2416, %v2736
    %v2753 = vmul.f32 %v2417, %v2737
    %v2754 = vmul.f32 %v2418, %v2738
    %v2755 = vmul.f32 %v2419, %v2739
    %v2756 = vmul.f32 %v2420, %v2740
    %v2757 = vmul.f32 %v2421, %v2741
    %v2758 = vmul.f32 %v2422, %v2742
    %v2759 = vmul.f32 %v2423, %v2743
    %v2760 = vmul.f32 %v2424, %v2744
    %v2761 = vmul.f32 %v2425, %v2745
    %v2762 = vmul.f32 %v2426, %v2746
    %v2763 = vmul.f32 %v2427, %v2747
    %v2764 = vmul.f32 %v2428, %v2748
    %v2765 = vmul.f32 %v2429, %v2749
    %v2766 = vadd.f32 %v2750, 1.0
    %v2767 = vadd.f32 %v2751, 1.0
    %v2768 = vadd.f32 %v2752, 1.0
    %v2769 = vadd.f32 %v2753, 1.0
    %v2770 = vadd.f32 %v2754, 1.0
    %v2771 = vadd.f32 %v2755, 1.0
    %v2772 = vadd.f32 %v2756, 1.0
    %v2773 = vadd.f32 %v2757, 1.0
    %v2774 = vadd.f32 %v2758, 1.0
    %v2775 = vadd.f32 %v2759, 1.0
    %v2776 = vadd.f32 %v2760, 1.0
    %v2777 = vadd.f32 %v2761, 1.0
    %v2778 = vadd.f32 %v2762, 1.0
    %v2779 = vadd.f32 %v2763, 1.0
    %v2780 = vadd.f32 %v2764, 1.0
    %v2781 = vadd.f32 %v2765, 1.0
    %v2782 = vmul.f32 %v2366, %v2766
    %v2783 = vmul.f32 %v2367, %v2767
    %v2784 = vmul.f32 %v2368, %v2768
    %v2785 = vmul.f32 %v2369, %v2769
    %v2786 = vmul.f32 %v2370, %v2770
    %v2787 = vmul.f32 %v2371, %v2771
    %v2788 = vmul.f32 %v2372, %v2772
    %v2789 = vmul.f32 %v2373, %v2773
    %v2790 = vmul.f32 %v2374, %v2774
    %v2791 = vmul.f32 %v2375, %v2775
    %v2792 = vmul.f32 %v2376, %v2776
    %v2793 = vmul.f32 %v2377, %v2777
    %v2794 = vmul.f32 %v2378, %v2778
    %v2795 = vmul.f32 %v2379, %v2779
    %v2796 = vmul.f32 %v2380, %v2780
    %v2797 = vmul.f32 %v2381, %v2781
    %2798 = vst [vmem:[#allocation5] sm:$0xff] %v2782
    %2799 = vst [vmem:[#allocation5 + $0x8] sm:$0xff] %v2783
    %2800 = vst [vmem:[#allocation5 + $0x10] sm:$0xff] %v2784
    %2801 = vst [vmem:[#allocation5 + $0x18] sm:$0xff] %v2785
    %2802 = vst [vmem:[#allocation5 + $0x20] sm:$0xff] %v2786
    %2803 = vst [vmem:[#allocation5 + $0x28] sm:$0xff] %v2787
    %2804 = vst [vmem:[#allocation5 + $0x30] sm:$0xff] %v2788
    %2805 = vst [vmem:[#allocation5 + $0x38] sm:$0xff] %v2789
    %2806 = vst [vmem:[#allocation5 + $0x40] sm:$0xff] %v2790
    %2807 = vst [vmem:[#allocation5 + $0x48] sm:$0xff] %v2791
    %2808 = vst [vmem:[#allocation5 + $0x50] sm:$0xff] %v2792
    %2809 = vst [vmem:[#allocation5 + $0x58] sm:$0xff] %v2793
    %2810 = vst [vmem:[#allocation5 + $0x60] sm:$0xff] %v2794
    %2811 = vst [vmem:[#allocation5 + $0x68] sm:$0xff] %v2795
    %2812 = vst [vmem:[#allocation5 + $0x70] sm:$0xff] %v2796
    %2813 = vst [vmem:[#allocation5 + $0x78] sm:$0xff] %v2797
    // Predicated region
    $region82: #{tpu_custom_call.1} parent=1 // pred_check
      _
    $region83: #{tpu_custom_call.1} parent=1 // pred_check_branch
      %2815 = sbr.rel target = $region85
    $region84: #{tpu_custom_call.1} parent=1 // pred_region
      %2816 = sst [smem:[#allocation20]] [#allocation25]
      %2817 = sst [smem:[#allocation21]] [#allocation24]
    $region85: #{tpu_custom_call.1} parent=1 // pred_fallthru
      _
    %2819 = shalt.err (0)
    %s2821 = sshll.u32 [#allocation6], 4
    %s2822 = int_to_ptr.vmem [resolvable:$true] %s2821
    %2824 = dma.hbm_to_vmem [thread:$0]  %s1, 1024, %s2822, [#allocation7]
    %v2825 = vld [vmem:[#allocation5] sm:$0xff]
    %v2826 = vld [vmem:[#allocation5 + $0x8] sm:$0xff]
    %v2827 = vld [vmem:[#allocation5 + $0x10] sm:$0xff]
    %v2828 = vld [vmem:[#allocation5 + $0x18] sm:$0xff]
    %v2829 = vld [vmem:[#allocation5 + $0x20] sm:$0xff]
    %v2830 = vld [vmem:[#allocation5 + $0x28] sm:$0xff]
    %v2831 = vld [vmem:[#allocation5 + $0x30] sm:$0xff]
    %v2832 = vld [vmem:[#allocation5 + $0x38] sm:$0xff]
    %v2833 = vld [vmem:[#allocation5 + $0x40] sm:$0xff]
    %v2834 = vld [vmem:[#allocation5 + $0x48] sm:$0xff]
    %v2835 = vld [vmem:[#allocation5 + $0x50] sm:$0xff]
    %v2836 = vld [vmem:[#allocation5 + $0x58] sm:$0xff]
    %v2837 = vld [vmem:[#allocation5 + $0x60] sm:$0xff]
    %v2838 = vld [vmem:[#allocation5 + $0x68] sm:$0xff]
    %v2839 = vld [vmem:[#allocation5 + $0x70] sm:$0xff]
    %v2840 = vld [vmem:[#allocation5 + $0x78] sm:$0xff]
    %v2841 = vpack.c.bf16 %v2826, %v2825
    %v2842 = vpack.c.bf16 %v2828, %v2827
    %v2843 = vpack.c.bf16 %v2830, %v2829
    %v2844 = vpack.c.bf16 %v2832, %v2831
    %v2845 = vpack.c.bf16 %v2834, %v2833
    %v2846 = vpack.c.bf16 %v2836, %v2835
    %v2847 = vpack.c.bf16 %v2838, %v2837
    %v2848 = vpack.c.bf16 %v2840, %v2839
    %v2849 = vld [vmem:[#allocation14] sm:$0xf]
    %v2850 = vld [vmem:[#allocation14 + $0x4] sm:$0xf]
    %v2851 = vld [vmem:[#allocation14 + $0x8] sm:$0xf]
    %v2852 = vld [vmem:[#allocation14 + $0xc] sm:$0xf]
    %v2853 = vld [vmem:[#allocation14 + $0x10] sm:$0xf]
    %v2854 = vld [vmem:[#allocation14 + $0x14] sm:$0xf]
    %v2855 = vld [vmem:[#allocation14 + $0x18] sm:$0xf]
    %v2856 = vld [vmem:[#allocation14 + $0x1c] sm:$0xf]
    %v2857 = vld [vmem:[#allocation14 + $0x20] sm:$0xf]
    %v2858 = vld [vmem:[#allocation14 + $0x24] sm:$0xf]
    %v2859 = vld [vmem:[#allocation14 + $0x28] sm:$0xf]
    %v2860 = vld [vmem:[#allocation14 + $0x2c] sm:$0xf]
    %v2861 = vld [vmem:[#allocation14 + $0x30] sm:$0xf]
    %v2862 = vld [vmem:[#allocation14 + $0x34] sm:$0xf]
    %v2863 = vld [vmem:[#allocation14 + $0x38] sm:$0xf]
    %v2864 = vld [vmem:[#allocation14 + $0x3c] sm:$0xf]
    %v2881 = vunpack.c.l.b16 %v2849
    %v2882 = vunpack.c.l.b16 %v2850
    %v2883 = vunpack.c.l.b16 %v2851
    %v2884 = vunpack.c.l.b16 %v2852
    %v2885 = vunpack.c.l.b16 %v2853
    %v2886 = vunpack.c.l.b16 %v2854
    %v2887 = vunpack.c.l.b16 %v2855
    %v2888 = vunpack.c.l.b16 %v2856
    %v2889 = vunpack.c.l.b16 %v2857
    %v2890 = vunpack.c.l.b16 %v2858
    %v2891 = vunpack.c.l.b16 %v2859
    %v2892 = vunpack.c.l.b16 %v2860
    %v2893 = vunpack.c.l.b16 %v2861
    %v2894 = vunpack.c.l.b16 %v2862
    %v2895 = vunpack.c.l.b16 %v2863
    %v2896 = vunpack.c.l.b16 %v2864
    %v2897 = vpack.c.b16 %v2882, %v2881
    %v2898 = vpack.c.b16 %v2884, %v2883
    %v2899 = vpack.c.b16 %v2886, %v2885
    %v2900 = vpack.c.b16 %v2888, %v2887
    %v2901 = vpack.c.b16 %v2890, %v2889
    %v2902 = vpack.c.b16 %v2892, %v2891
    %v2903 = vpack.c.b16 %v2894, %v2893
    %v2904 = vpack.c.b16 %v2896, %v2895
    %2913 = vmatprep.subr.bf16.mxu0 0
    %2914 = vmatpush1.bf16.msra.mxu0 %v2897
    %2915 = vmatprep.subr.bf16.mxu0 0
    %2916 = vmatpush1.bf16.msra.mxu0 %v2898
    %2917 = vmatprep.subr.bf16.mxu0 0
    %2918 = vmatpush1.bf16.msra.mxu0 %v2899
    %2919 = vmatprep.subr.bf16.mxu0 0
    %2920 = vmatpush1.bf16.msra.mxu0 %v2900
    %2921 = vmatprep.subr.bf16.mxu0 0
    %2922 = vmatpush1.bf16.msra.mxu0 %v2901
    %2923 = vmatprep.subr.bf16.mxu0 0
    %2924 = vmatpush1.bf16.msra.mxu0 %v2902
    %2925 = vmatprep.subr.bf16.mxu0 0
    %2926 = vmatpush1.bf16.msra.mxu0 %v2903
    %2927 = vmatprep.subr.bf16.mxu0 0
    %2928 = vmatpush1.bf16.msra.mxu0 %v2904
    %2929 = vmatprep.subr.bf16.mxu0 0
    %2930 = vmatpush1.bf16.msra.mxu0 0
    %2931 = vmatprep.subr.bf16.mxu0 0
    %2932 = vmatpush1.bf16.msra.mxu0 0
    %2933 = vmatprep.subr.bf16.mxu0 0
    %2934 = vmatpush1.bf16.msra.mxu0 0
    %2935 = vmatprep.subr.bf16.mxu0 0
    %2936 = vmatpush1.bf16.msra.mxu0 0
    %2937 = vmatprep.subr.bf16.mxu0 0
    %2938 = vmatpush1.bf16.msra.mxu0 0
    %2939 = vmatprep.subr.bf16.mxu0 0
    %2940 = vmatpush1.bf16.msra.mxu0 0
    %2941 = vmatprep.subr.bf16.mxu0 0
    %2942 = vmatpush1.bf16.msra.mxu0 0
    %2943 = vmatprep.subr.bf16.mxu0 0
    %2944 = vmatpush1.bf16.msra.mxu0 0
    %2945 = vmatprep.mubr.bf16.mxu0 0
    %2946 = vmatmul.mubr.bf16.gmra.mrb[0].mxu0 %v2841
    %v2947 = vpop.f32.mrb[0].mxu0
    %v2948 = vadd.f32 0.0, %v2947
    %v2949 = vpop.f32.mrb[0].mxu0
    %v2950 = vpop.f32.mrb[0].mxu0
    %v2951 = vadd.f32 0.0, %v2950
    %v2952 = vpop.f32.mrb[0].mxu0
    %2953 = vmatprep.mubr.bf16.mxu0 0
    %2954 = vmatmul.mubr.bf16.gmra.mrb[0].mxu0 %v2842
    %v2955 = vpop.f32.mrb[0].mxu0
    %v2956 = vadd.f32 0.0, %v2955
    %v2957 = vpop.f32.mrb[0].mxu0
    %v2958 = vpop.f32.mrb[0].mxu0
    %v2959 = vadd.f32 0.0, %v2958
    %v2960 = vpop.f32.mrb[0].mxu0
    %2961 = vmatprep.mubr.bf16.mxu0 0
    %2962 = vmatmul.mubr.bf16.gmra.mrb[0].mxu0 %v2843
    %v2963 = vpop.f32.mrb[0].mxu0
    %v2964 = vadd.f32 0.0, %v2963
    %v2965 = vpop.f32.mrb[0].mxu0
    %v2966 = vpop.f32.mrb[0].mxu0
    %v2967 = vadd.f32 0.0, %v2966
    %v2968 = vpop.f32.mrb[0].mxu0
    %2969 = vmatprep.mubr.bf16.mxu0 0
    %2970 = vmatmul.mubr.bf16.gmra.mrb[0].mxu0 %v2844
    %v2971 = vpop.f32.mrb[0].mxu0
    %v2972 = vadd.f32 0.0, %v2971
    %v2973 = vpop.f32.mrb[0].mxu0
    %v2974 = vpop.f32.mrb[0].mxu0
    %v2975 = vadd.f32 0.0, %v2974
    %v2976 = vpop.f32.mrb[0].mxu0
    %2977 = vmatprep.mubr.bf16.mxu0 0
    %2978 = vmatmul.mubr.bf16.gmra.mrb[0].mxu0 %v2845
    %v2979 = vpop.f32.mrb[0].mxu0
    %v2980 = vadd.f32 0.0, %v2979
    %v2981 = vpop.f32.mrb[0].mxu0
    %v2982 = vpop.f32.mrb[0].mxu0
    %v2983 = vadd.f32 0.0, %v2982
    %v2984 = vpop.f32.mrb[0].mxu0
    %2985 = vmatprep.mubr.bf16.mxu0 0
    %2986 = vmatmul.mubr.bf16.gmra.mrb[0].mxu0 %v2846
    %v2987 = vpop.f32.mrb[0].mxu0
    %v2988 = vadd.f32 0.0, %v2987
    %v2989 = vpop.f32.mrb[0].mxu0
    %v2990 = vpop.f32.mrb[0].mxu0
    %v2991 = vadd.f32 0.0, %v2990
    %v2992 = vpop.f32.mrb[0].mxu0
    %2993 = vmatprep.mubr.bf16.mxu0 0
    %2994 = vmatmul.mubr.bf16.gmra.mrb[0].mxu0 %v2847
    %v2995 = vpop.f32.mrb[0].mxu0
    %v2996 = vadd.f32 0.0, %v2995
    %v2997 = vpop.f32.mrb[0].mxu0
    %v2998 = vpop.f32.mrb[0].mxu0
    %v2999 = vadd.f32 0.0, %v2998
    %v3000 = vpop.f32.mrb[0].mxu0
    %3001 = vmatprep.mubr.bf16.mxu0 0
    %3002 = vmatmul.mubr.bf16.gmra.mrb[0].mxu0 %v2848
    %v3003 = vpop.f32.mrb[0].mxu0
    %v3004 = vadd.f32 0.0, %v3003
    %v3005 = vpop.f32.mrb[0].mxu0
    %v3006 = vpop.f32.mrb[0].mxu0
    %v3007 = vadd.f32 0.0, %v3006
    %v3008 = vpop.f32.mrb[0].mxu0
    %3009 = vdwg.mxu0
    %v3010 = vpack.c.bf16 %v2951, %v2948
    %v3011 = vpack.c.bf16 %v2959, %v2956
    %v3012 = vpack.c.bf16 %v2967, %v2964
    %v3013 = vpack.c.bf16 %v2975, %v2972
    %v3014 = vpack.c.bf16 %v2983, %v2980
    %v3015 = vpack.c.bf16 %v2991, %v2988
    %v3016 = vpack.c.bf16 %v2999, %v2996
    %v3017 = vpack.c.bf16 %v3007, %v3004
    %3018 = vst [vmem:[#allocation2] sm:$0xff] %v3010
    %3019 = vst [vmem:[#allocation2 + $0x8] sm:$0xff] %v3011
    %3020 = vst [vmem:[#allocation2 + $0x10] sm:$0xff] %v3012
    %3021 = vst [vmem:[#allocation2 + $0x18] sm:$0xff] %v3013
    %3022 = vst [vmem:[#allocation2 + $0x20] sm:$0xff] %v3014
    %3023 = vst [vmem:[#allocation2 + $0x28] sm:$0xff] %v3015
    %3024 = vst [vmem:[#allocation2 + $0x30] sm:$0xff] %v3016
    %3025 = vst [vmem:[#allocation2 + $0x38] sm:$0xff] %v3017
    %3042 = vrot.lane.b32.xlu0 %v2948, 96
    %v3043 = vpop.permute.xlu0 %3042
    %3044 = vrot.lane.b32.xlu0 %v2951, 96
    %v3045 = vpop.permute.xlu0 %3044
    %3046 = vrot.lane.b32.xlu0 %v2956, 96
    %v3047 = vpop.permute.xlu0 %3046
    %3048 = vrot.lane.b32.xlu0 %v2959, 96
    %v3049 = vpop.permute.xlu0 %3048
    %3050 = vrot.lane.b32.xlu0 %v2964, 96
    %v3051 = vpop.permute.xlu0 %3050
    %3052 = vrot.lane.b32.xlu0 %v2967, 96
    %v3053 = vpop.permute.xlu0 %3052
    %3054 = vrot.lane.b32.xlu0 %v2972, 96
    %v3055 = vpop.permute.xlu0 %3054
    %3056 = vrot.lane.b32.xlu0 %v2975, 96
    %v3057 = vpop.permute.xlu0 %3056
    %3058 = vrot.lane.b32.xlu0 %v2980, 96
    %v3059 = vpop.permute.xlu0 %3058
    %3060 = vrot.lane.b32.xlu0 %v2983, 96
    %v3061 = vpop.permute.xlu0 %3060
    %3062 = vrot.lane.b32.xlu0 %v2988, 96
    %v3063 = vpop.permute.xlu0 %3062
    %3064 = vrot.lane.b32.xlu0 %v2991, 96
    %v3065 = vpop.permute.xlu0 %3064
    %3066 = vrot.lane.b32.xlu0 %v2996, 96
    %v3067 = vpop.permute.xlu0 %3066
    %3068 = vrot.lane.b32.xlu0 %v2999, 96
    %v3069 = vpop.permute.xlu0 %3068
    %3070 = vrot.lane.b32.xlu0 %v3004, 96
    %v3071 = vpop.permute.xlu0 %3070
    %3072 = vrot.lane.b32.xlu0 %v3007, 96
    %v3073 = vpop.permute.xlu0 %3072
    %3090 = vst.msk [vmem:[#allocation3] sm:$0xff] %vm393, %v3043
    %3091 = vst.msk [vmem:[#allocation3 + $0x8] sm:$0xff] %vm393, %v3045
    %3092 = vst.msk [vmem:[#allocation3 + $0x10] sm:$0xff] %vm393, %v3047
    %3093 = vst.msk [vmem:[#allocation3 + $0x18] sm:$0xff] %vm393, %v3049
    %3094 = vst.msk [vmem:[#allocation3 + $0x20] sm:$0xff] %vm393, %v3051
    %3095 = vst.msk [vmem:[#allocation3 + $0x28] sm:$0xff] %vm393, %v3053
    %3096 = vst.msk [vmem:[#allocation3 + $0x30] sm:$0xff] %vm393, %v3055
    %3097 = vst.msk [vmem:[#allocation3 + $0x38] sm:$0xff] %vm393, %v3057
    %3098 = vst.msk [vmem:[#allocation3 + $0x40] sm:$0xff] %vm393, %v3059
    %3099 = vst.msk [vmem:[#allocation3 + $0x48] sm:$0xff] %vm393, %v3061
    %3100 = vst.msk [vmem:[#allocation3 + $0x50] sm:$0xff] %vm393, %v3063
    %3101 = vst.msk [vmem:[#allocation3 + $0x58] sm:$0xff] %vm393, %v3065
    %3102 = vst.msk [vmem:[#allocation3 + $0x60] sm:$0xff] %vm393, %v3067
    %3103 = vst.msk [vmem:[#allocation3 + $0x68] sm:$0xff] %vm393, %v3069
    %3104 = vst.msk [vmem:[#allocation3 + $0x70] sm:$0xff] %vm393, %v3071
    %3105 = vst.msk [vmem:[#allocation3 + $0x78] sm:$0xff] %vm393, %v3073
    %v3106 = vld [vmem:[%s10] sm:$0x1]
    %3107 = vmatprep.subr.bf16.mxu0 0
    %3108 = vmatpush1.bf16.xpose.msra.mxu0 %v3010
    %3109 = vmatprep.subr.bf16.mxu0 0
    %3110 = vmatpush1.bf16.xpose.msra.mxu0 %v3011
    %3111 = vmatprep.subr.bf16.mxu0 0
    %3112 = vmatpush1.bf16.xpose.msra.mxu0 %v3012
    %3113 = vmatprep.subr.bf16.mxu0 0
    %3114 = vmatpush1.bf16.xpose.msra.mxu0 %v3013
    %3115 = vmatprep.subr.bf16.mxu0 0
    %3116 = vmatpush1.bf16.xpose.msra.mxu0 %v3014
    %3117 = vmatprep.subr.bf16.mxu0 0
    %3118 = vmatpush1.bf16.xpose.msra.mxu0 %v3015
    %3119 = vmatprep.subr.bf16.mxu0 0
    %3120 = vmatpush1.bf16.xpose.msra.mxu0 %v3016
    %3121 = vmatprep.subr.bf16.mxu0 0
    %3122 = vmatpush1.bf16.xpose.msra.mxu0 %v3017
    %3123 = vmatprep.subr.bf16.mxu0 0
    %3124 = vmatpush1.bf16.xpose.msra.mxu0 0
    %3125 = vmatprep.subr.bf16.mxu0 0
    %3126 = vmatpush1.bf16.xpose.msra.mxu0 0
    %3127 = vmatprep.subr.bf16.mxu0 0
    %3128 = vmatpush1.bf16.xpose.msra.mxu0 0
    %3129 = vmatprep.subr.bf16.mxu0 0
    %3130 = vmatpush1.bf16.xpose.msra.mxu0 0
    %3131 = vmatprep.subr.bf16.mxu0 0
    %3132 = vmatpush1.bf16.xpose.msra.mxu0 0
    %3133 = vmatprep.subr.bf16.mxu0 0
    %3134 = vmatpush1.bf16.xpose.msra.mxu0 0
    %3135 = vmatprep.subr.bf16.mxu0 0
    %3136 = vmatpush1.bf16.xpose.msra.mxu0 0
    %3137 = vmatprep.subr.bf16.mxu0 0
    %3138 = vmatpush1.bf16.xpose.msra.mxu0 0
    %3139 = vmatprep.mubr.bf16.mxu0 0
    %3140 = vmatmul.mubr.bf16.gmra.mrb[0].mxu0 %v3106
    %v3141 = vpop.f32.mrb[0].mxu0
    %v3142 = vadd.f32 0.0, %v3141
    %v3143 = vpop.f32.mrb[0].mxu0
    %v3144 = vpop.f32.mrb[0].mxu0
    %v3145 = vpop.f32.mrb[0].mxu0
    %3146 = vdwg.mxu0
    %v3147 = vld [vmem:[%s11] sm:$0x1]
    %s3148 = sshll.u32 %s453, 4
    %3149 = dma.done [#allocation7], %s3148
    %v3150 = vld [vmem:[#allocation3] sm:$0xff]
    %v3151 = vld [vmem:[#allocation3 + $0x8] sm:$0xff]
    %v3152 = vld [vmem:[#allocation3 + $0x10] sm:$0xff]
    %v3153 = vld [vmem:[#allocation3 + $0x18] sm:$0xff]
    %v3154 = vld [vmem:[#allocation3 + $0x20] sm:$0xff]
    %v3155 = vld [vmem:[#allocation3 + $0x28] sm:$0xff]
    %v3156 = vld [vmem:[#allocation3 + $0x30] sm:$0xff]
    %v3157 = vld [vmem:[#allocation3 + $0x38] sm:$0xff]
    %v3158 = vld [vmem:[#allocation3 + $0x40] sm:$0xff]
    %v3159 = vld [vmem:[#allocation3 + $0x48] sm:$0xff]
    %v3160 = vld [vmem:[#allocation3 + $0x50] sm:$0xff]
    %v3161 = vld [vmem:[#allocation3 + $0x58] sm:$0xff]
    %v3162 = vld [vmem:[#allocation3 + $0x60] sm:$0xff]
    %v3163 = vld [vmem:[#allocation3 + $0x68] sm:$0xff]
    %v3164 = vld [vmem:[#allocation3 + $0x70] sm:$0xff]
    %v3165 = vld [vmem:[#allocation3 + $0x78] sm:$0xff]
    %3167 = vset.pattern.permute.xlu0 0
    %3168 = vperm.xlu0 %3167, %v3150
    %v3169 = vpop.permute.xlu0 %3168
    %3172 = vset.pattern.permute.xlu0 0
    %3173 = vperm.xlu0 %3172, %v3151
    %v3174 = vpop.permute.xlu0 %3173
    %3177 = vset.pattern.permute.xlu0 0
    %3178 = vperm.xlu0 %3177, %v3152
    %v3179 = vpop.permute.xlu0 %3178
    %3182 = vset.pattern.permute.xlu0 0
    %3183 = vperm.xlu0 %3182, %v3153
    %v3184 = vpop.permute.xlu0 %3183
    %3187 = vset.pattern.permute.xlu0 0
    %3188 = vperm.xlu0 %3187, %v3154
    %v3189 = vpop.permute.xlu0 %3188
    %3192 = vset.pattern.permute.xlu0 0
    %3193 = vperm.xlu0 %3192, %v3155
    %v3194 = vpop.permute.xlu0 %3193
    %3197 = vset.pattern.permute.xlu0 0
    %3198 = vperm.xlu0 %3197, %v3156
    %v3199 = vpop.permute.xlu0 %3198
    %3202 = vset.pattern.permute.xlu0 0
    %3203 = vperm.xlu0 %3202, %v3157
    %v3204 = vpop.permute.xlu0 %3203
    %3207 = vset.pattern.permute.xlu0 0
    %3208 = vperm.xlu0 %3207, %v3158
    %v3209 = vpop.permute.xlu0 %3208
    %3212 = vset.pattern.permute.xlu0 0
    %3213 = vperm.xlu0 %3212, %v3159
    %v3214 = vpop.permute.xlu0 %3213
    %3217 = vset.pattern.permute.xlu0 0
    %3218 = vperm.xlu0 %3217, %v3160
    %v3219 = vpop.permute.xlu0 %3218
    %3222 = vset.pattern.permute.xlu0 0
    %3223 = vperm.xlu0 %3222, %v3161
    %v3224 = vpop.permute.xlu0 %3223
    %3227 = vset.pattern.permute.xlu0 0
    %3228 = vperm.xlu0 %3227, %v3162
    %v3229 = vpop.permute.xlu0 %3228
    %3232 = vset.pattern.permute.xlu0 0
    %3233 = vperm.xlu0 %3232, %v3163
    %v3234 = vpop.permute.xlu0 %3233
    %3237 = vset.pattern.permute.xlu0 0
    %3238 = vperm.xlu0 %3237, %v3164
    %v3239 = vpop.permute.xlu0 %3238
    %3242 = vset.pattern.permute.xlu0 0
    %3243 = vperm.xlu0 %3242, %v3165
    %v3244 = vpop.permute.xlu0 %3243
    %v3246 = vlaneseq
    %v3247 = vshrl.u32 %v3246, 7
    %v3248 = vsub.s32 0, %v3247
    %v3249 = vrot.slane %v3142, %v3248
    %v3250 = vadd.f32 %v3169, %v3249
    %v3251 = vadd.f32 %v3174, %v3249
    %v3252 = vadd.f32 %v3179, %v3249
    %v3253 = vadd.f32 %v3184, %v3249
    %v3254 = vadd.f32 %v3189, %v3249
    %v3255 = vadd.f32 %v3194, %v3249
    %v3256 = vadd.f32 %v3199, %v3249
    %v3257 = vadd.f32 %v3204, %v3249
    %v3258 = vadd.f32 %v3209, %v3249
    %v3259 = vadd.f32 %v3214, %v3249
    %v3260 = vadd.f32 %v3219, %v3249
    %v3261 = vadd.f32 %v3224, %v3249
    %v3262 = vadd.f32 %v3229, %v3249
    %v3263 = vadd.f32 %v3234, %v3249
    %v3264 = vadd.f32 %v3239, %v3249
    %v3265 = vadd.f32 %v3244, %v3249
    %vm3266 = vcmp.gt.f32.partialorder %v3250, 0.0
    %vm3267 = vcmp.gt.f32.partialorder %v3251, 0.0
    %vm3268 = vcmp.gt.f32.partialorder %v3252, 0.0
    %vm3269 = vcmp.gt.f32.partialorder %v3253, 0.0
    %vm3270 = vcmp.gt.f32.partialorder %v3254, 0.0
    %vm3271 = vcmp.gt.f32.partialorder %v3255, 0.0
    %vm3272 = vcmp.gt.f32.partialorder %v3256, 0.0
    %vm3273 = vcmp.gt.f32.partialorder %v3257, 0.0
    %vm3274 = vcmp.gt.f32.partialorder %v3258, 0.0
    %vm3275 = vcmp.gt.f32.partialorder %v3259, 0.0
    %vm3276 = vcmp.gt.f32.partialorder %v3260, 0.0
    %vm3277 = vcmp.gt.f32.partialorder %v3261, 0.0
    %vm3278 = vcmp.gt.f32.partialorder %v3262, 0.0
    %vm3279 = vcmp.gt.f32.partialorder %v3263, 0.0
    %vm3280 = vcmp.gt.f32.partialorder %v3264, 0.0
    %vm3281 = vcmp.gt.f32.partialorder %v3265, 0.0
    %v3282 = vmul.f32 %v3250, 0.2
    %v3283 = vmul.f32 %v3251, 0.2
    %v3284 = vmul.f32 %v3252, 0.2
    %v3285 = vmul.f32 %v3253, 0.2
    %v3286 = vmul.f32 %v3254, 0.2
    %v3287 = vmul.f32 %v3255, 0.2
    %v3288 = vmul.f32 %v3256, 0.2
    %v3289 = vmul.f32 %v3257, 0.2
    %v3290 = vmul.f32 %v3258, 0.2
    %v3291 = vmul.f32 %v3259, 0.2
    %v3292 = vmul.f32 %v3260, 0.2
    %v3293 = vmul.f32 %v3261, 0.2
    %v3294 = vmul.f32 %v3262, 0.2
    %v3295 = vmul.f32 %v3263, 0.2
    %v3296 = vmul.f32 %v3264, 0.2
    %v3297 = vmul.f32 %v3265, 0.2
    %v3298 = vsel %vm3266, %v3250, %v3282
    %v3299 = vsel %vm3267, %v3251, %v3283
    %v3300 = vsel %vm3268, %v3252, %v3284
    %v3301 = vsel %vm3269, %v3253, %v3285
    %v3302 = vsel %vm3270, %v3254, %v3286
    %v3303 = vsel %vm3271, %v3255, %v3287
    %v3304 = vsel %vm3272, %v3256, %v3288
    %v3305 = vsel %vm3273, %v3257, %v3289
    %v3306 = vsel %vm3274, %v3258, %v3290
    %v3307 = vsel %vm3275, %v3259, %v3291
    %v3308 = vsel %vm3276, %v3260, %v3292
    %v3309 = vsel %vm3277, %v3261, %v3293
    %v3310 = vsel %vm3278, %v3262, %v3294
    %v3311 = vsel %vm3279, %v3263, %v3295
    %v3312 = vsel %vm3280, %v3264, %v3296
    %v3313 = vsel %vm3281, %v3265, %v3297
    %v3314 = vld [vmem:[#allocation6] sm:$0xff]
    %v3315 = vld [vmem:[#allocation6 + $0x8] sm:$0xff]
    %v3316 = vld [vmem:[#allocation6 + $0x10] sm:$0xff]
    %v3317 = vld [vmem:[#allocation6 + $0x18] sm:$0xff]
    %v3318 = vld [vmem:[#allocation6 + $0x20] sm:$0xff]
    %v3319 = vld [vmem:[#allocation6 + $0x28] sm:$0xff]
    %v3320 = vld [vmem:[#allocation6 + $0x30] sm:$0xff]
    %v3321 = vld [vmem:[#allocation6 + $0x38] sm:$0xff]
    %vm3322 = vcmp.gt.bf16.partialorder %v3314, 0
    %vm3323 = vcmp.gt.bf16.partialorder %v3315, 0
    %vm3324 = vcmp.gt.bf16.partialorder %v3316, 0
    %vm3325 = vcmp.gt.bf16.partialorder %v3317, 0
    %vm3326 = vcmp.gt.bf16.partialorder %v3318, 0
    %vm3327 = vcmp.gt.bf16.partialorder %v3319, 0
    %vm3328 = vcmp.gt.bf16.partialorder %v3320, 0
    %vm3329 = vcmp.gt.bf16.partialorder %v3321, 0
    %v3330 = vsel %vm3322, 65537, 0
    %v3331 = vsel %vm3323, 65537, 0
    %v3332 = vsel %vm3324, 65537, 0
    %v3333 = vsel %vm3325, 65537, 0
    %v3334 = vsel %vm3326, 65537, 0
    %v3335 = vsel %vm3327, 65537, 0
    %v3336 = vsel %vm3328, 65537, 0
    %v3337 = vsel %vm3329, 65537, 0
    %v3338 = vunpack.c.l.b16 %v3330
    %v3339 = vunpack.c.h.b16 %v3330
    %v3340 = vunpack.c.l.b16 %v3331
    %v3341 = vunpack.c.h.b16 %v3331
    %v3342 = vunpack.c.l.b16 %v3332
    %v3343 = vunpack.c.h.b16 %v3332
    %v3344 = vunpack.c.l.b16 %v3333
    %v3345 = vunpack.c.h.b16 %v3333
    %v3346 = vunpack.c.l.b16 %v3334
    %v3347 = vunpack.c.h.b16 %v3334
    %v3348 = vunpack.c.l.b16 %v3335
    %v3349 = vunpack.c.h.b16 %v3335
    %v3350 = vunpack.c.l.b16 %v3336
    %v3351 = vunpack.c.h.b16 %v3336
    %v3352 = vunpack.c.l.b16 %v3337
    %v3353 = vunpack.c.h.b16 %v3337
    %v3354 = vpack.c.b16 %v3338, %v3338
    %v3355 = vpack.c.b16 %v3339, %v3339
    %v3356 = vpack.c.b16 %v3340, %v3340
    %v3357 = vpack.c.b16 %v3341, %v3341
    %v3358 = vpack.c.b16 %v3342, %v3342
    %v3359 = vpack.c.b16 %v3343, %v3343
    %v3360 = vpack.c.b16 %v3344, %v3344
    %v3361 = vpack.c.b16 %v3345, %v3345
    %v3362 = vpack.c.b16 %v3346, %v3346
    %v3363 = vpack.c.b16 %v3347, %v3347
    %v3364 = vpack.c.b16 %v3348, %v3348
    %v3365 = vpack.c.b16 %v3349, %v3349
    %v3366 = vpack.c.b16 %v3350, %v3350
    %v3367 = vpack.c.b16 %v3351, %v3351
    %v3368 = vpack.c.b16 %v3352, %v3352
    %v3369 = vpack.c.b16 %v3353, %v3353
    %vm3370 = vcmp.ne.s16.totalorder %v3354, 0
    %vm3371 = vcmp.ne.s16.totalorder %v3355, 0
    %vm3372 = vcmp.ne.s16.totalorder %v3356, 0
    %vm3373 = vcmp.ne.s16.totalorder %v3357, 0
    %vm3374 = vcmp.ne.s16.totalorder %v3358, 0
    %vm3375 = vcmp.ne.s16.totalorder %v3359, 0
    %vm3376 = vcmp.ne.s16.totalorder %v3360, 0
    %vm3377 = vcmp.ne.s16.totalorder %v3361, 0
    %vm3378 = vcmp.ne.s16.totalorder %v3362, 0
    %vm3379 = vcmp.ne.s16.totalorder %v3363, 0
    %vm3380 = vcmp.ne.s16.totalorder %v3364, 0
    %vm3381 = vcmp.ne.s16.totalorder %v3365, 0
    %vm3382 = vcmp.ne.s16.totalorder %v3366, 0
    %vm3383 = vcmp.ne.s16.totalorder %v3367, 0
    %vm3384 = vcmp.ne.s16.totalorder %v3368, 0
    %vm3385 = vcmp.ne.s16.totalorder %v3369, 0
    %v3386 = vsel %vm3370, 65537, 0
    %v3387 = vsel %vm3371, 65537, 0
    %v3388 = vsel %vm3372, 65537, 0
    %v3389 = vsel %vm3373, 65537, 0
    %v3390 = vsel %vm3374, 65537, 0
    %v3391 = vsel %vm3375, 65537, 0
    %v3392 = vsel %vm3376, 65537, 0
    %v3393 = vsel %vm3377, 65537, 0
    %v3394 = vsel %vm3378, 65537, 0
    %v3395 = vsel %vm3379, 65537, 0
    %v3396 = vsel %vm3380, 65537, 0
    %v3397 = vsel %vm3381, 65537, 0
    %v3398 = vsel %vm3382, 65537, 0
    %v3399 = vsel %vm3383, 65537, 0
    %v3400 = vsel %vm3384, 65537, 0
    %v3401 = vsel %vm3385, 65537, 0
    %v3402 = vunpack.c.l.b16 %v3386
    %v3403 = vunpack.c.l.b16 %v3387
    %v3404 = vunpack.c.l.b16 %v3388
    %v3405 = vunpack.c.l.b16 %v3389
    %v3406 = vunpack.c.l.b16 %v3390
    %v3407 = vunpack.c.l.b16 %v3391
    %v3408 = vunpack.c.l.b16 %v3392
    %v3409 = vunpack.c.l.b16 %v3393
    %v3410 = vunpack.c.l.b16 %v3394
    %v3411 = vunpack.c.l.b16 %v3395
    %v3412 = vunpack.c.l.b16 %v3396
    %v3413 = vunpack.c.l.b16 %v3397
    %v3414 = vunpack.c.l.b16 %v3398
    %v3415 = vunpack.c.l.b16 %v3399
    %v3416 = vunpack.c.l.b16 %v3400
    %v3417 = vunpack.c.l.b16 %v3401
    %vm3418 = vcmp.ne.s32.totalorder %v3402, 0
    %vm3419 = vcmp.ne.s32.totalorder %v3403, 0
    %vm3420 = vcmp.ne.s32.totalorder %v3404, 0
    %vm3421 = vcmp.ne.s32.totalorder %v3405, 0
    %vm3422 = vcmp.ne.s32.totalorder %v3406, 0
    %vm3423 = vcmp.ne.s32.totalorder %v3407, 0
    %vm3424 = vcmp.ne.s32.totalorder %v3408, 0
    %vm3425 = vcmp.ne.s32.totalorder %v3409, 0
    %vm3426 = vcmp.ne.s32.totalorder %v3410, 0
    %vm3427 = vcmp.ne.s32.totalorder %v3411, 0
    %vm3428 = vcmp.ne.s32.totalorder %v3412, 0
    %vm3429 = vcmp.ne.s32.totalorder %v3413, 0
    %vm3430 = vcmp.ne.s32.totalorder %v3414, 0
    %vm3431 = vcmp.ne.s32.totalorder %v3415, 0
    %vm3432 = vcmp.ne.s32.totalorder %v3416, 0
    %vm3433 = vcmp.ne.s32.totalorder %v3417, 0
    %v3434 = vsel %vm3418, %v3298, -1e+30
    %v3435 = vsel %vm3419, %v3299, -1e+30
    %v3436 = vsel %vm3420, %v3300, -1e+30
    %v3437 = vsel %vm3421, %v3301, -1e+30
    %v3438 = vsel %vm3422, %v3302, -1e+30
    %v3439 = vsel %vm3423, %v3303, -1e+30
    %v3440 = vsel %vm3424, %v3304, -1e+30
    %v3441 = vsel %vm3425, %v3305, -1e+30
    %v3442 = vsel %vm3426, %v3306, -1e+30
    %v3443 = vsel %vm3427, %v3307, -1e+30
    %v3444 = vsel %vm3428, %v3308, -1e+30
    %v3445 = vsel %vm3429, %v3309, -1e+30
    %v3446 = vsel %vm3430, %v3310, -1e+30
    %v3447 = vsel %vm3431, %v3311, -1e+30
    %v3448 = vsel %vm3432, %v3312, -1e+30
    %v3449 = vsel %vm3433, %v3313, -1e+30
    %3450 = vmax.xlane.f32.xlu0 %v3434
    %v3451 = vpop.xlane.xlu0 %3450
    %3452 = vmax.xlane.f32.xlu0 %v3435
    %v3453 = vpop.xlane.xlu0 %3452
    %3454 = vmax.xlane.f32.xlu0 %v3436
    %v3455 = vpop.xlane.xlu0 %3454
    %3456 = vmax.xlane.f32.xlu0 %v3437
    %v3457 = vpop.xlane.xlu0 %3456
    %3458 = vmax.xlane.f32.xlu0 %v3438
    %v3459 = vpop.xlane.xlu0 %3458
    %3460 = vmax.xlane.f32.xlu0 %v3439
    %v3461 = vpop.xlane.xlu0 %3460
    %3462 = vmax.xlane.f32.xlu0 %v3440
    %v3463 = vpop.xlane.xlu0 %3462
    %3464 = vmax.xlane.f32.xlu0 %v3441
    %v3465 = vpop.xlane.xlu0 %3464
    %3466 = vmax.xlane.f32.xlu0 %v3442
    %v3467 = vpop.xlane.xlu0 %3466
    %3468 = vmax.xlane.f32.xlu0 %v3443
    %v3469 = vpop.xlane.xlu0 %3468
    %3470 = vmax.xlane.f32.xlu0 %v3444
    %v3471 = vpop.xlane.xlu0 %3470
    %3472 = vmax.xlane.f32.xlu0 %v3445
    %v3473 = vpop.xlane.xlu0 %3472
    %3474 = vmax.xlane.f32.xlu0 %v3446
    %v3475 = vpop.xlane.xlu0 %3474
    %3476 = vmax.xlane.f32.xlu0 %v3447
    %v3477 = vpop.xlane.xlu0 %3476
    %3478 = vmax.xlane.f32.xlu0 %v3448
    %v3479 = vpop.xlane.xlu0 %3478
    %3480 = vmax.xlane.f32.xlu0 %v3449
    %v3481 = vpop.xlane.xlu0 %3480
    %v3482 = vsub.f32 %v3434, %v3451
    %v3483 = vsub.f32 %v3435, %v3453
    %v3484 = vsub.f32 %v3436, %v3455
    %v3485 = vsub.f32 %v3437, %v3457
    %v3486 = vsub.f32 %v3438, %v3459
    %v3487 = vsub.f32 %v3439, %v3461
    %v3488 = vsub.f32 %v3440, %v3463
    %v3489 = vsub.f32 %v3441, %v3465
    %v3490 = vsub.f32 %v3442, %v3467
    %v3491 = vsub.f32 %v3443, %v3469
    %v3492 = vsub.f32 %v3444, %v3471
    %v3493 = vsub.f32 %v3445, %v3473
    %v3494 = vsub.f32 %v3446, %v3475
    %v3495 = vsub.f32 %v3447, %v3477
    %v3496 = vsub.f32 %v3448, %v3479
    %v3497 = vsub.f32 %v3449, %v3481
    %v3498 = vmul.f32 %v3482, 1.442695
    %v3499 = vpow.pop %v3498
    %v3500 = vmul.f32 %v3483, 1.442695
    %v3501 = vpow.pop %v3500
    %v3502 = vmul.f32 %v3484, 1.442695
    %v3503 = vpow.pop %v3502
    %v3504 = vmul.f32 %v3485, 1.442695
    %v3505 = vpow.pop %v3504
    %v3506 = vmul.f32 %v3486, 1.442695
    %v3507 = vpow.pop %v3506
    %v3508 = vmul.f32 %v3487, 1.442695
    %v3509 = vpow.pop %v3508
    %v3510 = vmul.f32 %v3488, 1.442695
    %v3511 = vpow.pop %v3510
    %v3512 = vmul.f32 %v3489, 1.442695
    %v3513 = vpow.pop %v3512
    %v3514 = vmul.f32 %v3490, 1.442695
    %v3515 = vpow.pop %v3514
    %v3516 = vmul.f32 %v3491, 1.442695
    %v3517 = vpow.pop %v3516
    %v3518 = vmul.f32 %v3492, 1.442695
    %v3519 = vpow.pop %v3518
    %v3520 = vmul.f32 %v3493, 1.442695
    %v3521 = vpow.pop %v3520
    %v3522 = vmul.f32 %v3494, 1.442695
    %v3523 = vpow.pop %v3522
    %v3524 = vmul.f32 %v3495, 1.442695
    %v3525 = vpow.pop %v3524
    %v3526 = vmul.f32 %v3496, 1.442695
    %v3527 = vpow.pop %v3526
    %v3528 = vmul.f32 %v3497, 1.442695
    %v3529 = vpow.pop %v3528
    %3530 = vadd.xlane.f32.xlu0 %v3499
    %v3531 = vpop.xlane.xlu0 %3530
    %3532 = vadd.xlane.f32.xlu0 %v3501
    %v3533 = vpop.xlane.xlu0 %3532
    %3534 = vadd.xlane.f32.xlu0 %v3503
    %v3535 = vpop.xlane.xlu0 %3534
    %3536 = vadd.xlane.f32.xlu0 %v3505
    %v3537 = vpop.xlane.xlu0 %3536
    %3538 = vadd.xlane.f32.xlu0 %v3507
    %v3539 = vpop.xlane.xlu0 %3538
    %3540 = vadd.xlane.f32.xlu0 %v3509
    %v3541 = vpop.xlane.xlu0 %3540
    %3542 = vadd.xlane.f32.xlu0 %v3511
    %v3543 = vpop.xlane.xlu0 %3542
    %3544 = vadd.xlane.f32.xlu0 %v3513
    %v3545 = vpop.xlane.xlu0 %3544
    %3546 = vadd.xlane.f32.xlu0 %v3515
    %v3547 = vpop.xlane.xlu0 %3546
    %3548 = vadd.xlane.f32.xlu0 %v3517
    %v3549 = vpop.xlane.xlu0 %3548
    %3550 = vadd.xlane.f32.xlu0 %v3519
    %v3551 = vpop.xlane.xlu0 %3550
    %3552 = vadd.xlane.f32.xlu0 %v3521
    %v3553 = vpop.xlane.xlu0 %3552
    %3554 = vadd.xlane.f32.xlu0 %v3523
    %v3555 = vpop.xlane.xlu0 %3554
    %3556 = vadd.xlane.f32.xlu0 %v3525
    %v3557 = vpop.xlane.xlu0 %3556
    %3558 = vadd.xlane.f32.xlu0 %v3527
    %v3559 = vpop.xlane.xlu0 %3558
    %3560 = vadd.xlane.f32.xlu0 %v3529
    %v3561 = vpop.xlane.xlu0 %3560
    %v3562 = vrcp.pop %v3531
    %v3563 = vrcp.pop %v3533
    %v3564 = vrcp.pop %v3535
    %v3565 = vrcp.pop %v3537
    %v3566 = vrcp.pop %v3539
    %v3567 = vrcp.pop %v3541
    %v3568 = vrcp.pop %v3543
    %v3569 = vrcp.pop %v3545
    %v3570 = vrcp.pop %v3547
    %v3571 = vrcp.pop %v3549
    %v3572 = vrcp.pop %v3551
    %v3573 = vrcp.pop %v3553
    %v3574 = vrcp.pop %v3555
    %v3575 = vrcp.pop %v3557
    %v3576 = vrcp.pop %v3559
    %v3577 = vrcp.pop %v3561
    %v3578 = vmul.f32 %v3499, %v3562
    %v3579 = vmul.f32 %v3501, %v3563
    %v3580 = vmul.f32 %v3503, %v3564
    %v3581 = vmul.f32 %v3505, %v3565
    %v3582 = vmul.f32 %v3507, %v3566
    %v3583 = vmul.f32 %v3509, %v3567
    %v3584 = vmul.f32 %v3511, %v3568
    %v3585 = vmul.f32 %v3513, %v3569
    %v3586 = vmul.f32 %v3515, %v3570
    %v3587 = vmul.f32 %v3517, %v3571
    %v3588 = vmul.f32 %v3519, %v3572
    %v3589 = vmul.f32 %v3521, %v3573
    %v3590 = vmul.f32 %v3523, %v3574
    %v3591 = vmul.f32 %v3525, %v3575
    %v3592 = vmul.f32 %v3527, %v3576
    %v3593 = vmul.f32 %v3529, %v3577
    %v3594 = vpack.c.bf16 %v3579, %v3578
    %v3595 = vpack.c.bf16 %v3581, %v3580
    %v3596 = vpack.c.bf16 %v3583, %v3582
    %v3597 = vpack.c.bf16 %v3585, %v3584
    %v3598 = vpack.c.bf16 %v3587, %v3586
    %v3599 = vpack.c.bf16 %v3589, %v3588
    %v3600 = vpack.c.bf16 %v3591, %v3590
    %v3601 = vpack.c.bf16 %v3593, %v3592
    %v3602 = vld [vmem:[#allocation2] sm:$0xff]
    %v3603 = vld [vmem:[#allocation2 + $0x8] sm:$0xff]
    %v3604 = vld [vmem:[#allocation2 + $0x10] sm:$0xff]
    %v3605 = vld [vmem:[#allocation2 + $0x18] sm:$0xff]
    %v3606 = vld [vmem:[#allocation2 + $0x20] sm:$0xff]
    %v3607 = vld [vmem:[#allocation2 + $0x28] sm:$0xff]
    %v3608 = vld [vmem:[#allocation2 + $0x30] sm:$0xff]
    %v3609 = vld [vmem:[#allocation2 + $0x38] sm:$0xff]
    %v3611 = vlaneseq
    %v3612 = vshrl.u32 %v3611, 7
    %v3613 = vsub.s32 0, %v3612
    %v3614 = vrot.slane %v3147, %v3613
    %3616 = vmatprep.subr.bf16.mxu0 0
    %3617 = vmatpush1.bf16.msra.mxu0 %v3602
    %3618 = vmatprep.subr.bf16.mxu0 0
    %3619 = vmatpush1.bf16.msra.mxu0 %v3603
    %3620 = vmatprep.subr.bf16.mxu0 0
    %3621 = vmatpush1.bf16.msra.mxu0 %v3604
    %3622 = vmatprep.subr.bf16.mxu0 0
    %3623 = vmatpush1.bf16.msra.mxu0 %v3605
    %3624 = vmatprep.subr.bf16.mxu0 0
    %3625 = vmatpush1.bf16.msra.mxu0 %v3606
    %3626 = vmatprep.subr.bf16.mxu0 0
    %3627 = vmatpush1.bf16.msra.mxu0 %v3607
    %3628 = vmatprep.subr.bf16.mxu0 0
    %3629 = vmatpush1.bf16.msra.mxu0 %v3608
    %3630 = vmatprep.subr.bf16.mxu0 0
    %3631 = vmatpush1.bf16.msra.mxu0 %v3609
    %3632 = vmatprep.subr.bf16.mxu0 0
    %3633 = vmatpush1.bf16.msra.mxu0 0
    %3634 = vmatprep.subr.bf16.mxu0 0
    %3635 = vmatpush1.bf16.msra.mxu0 0
    %3636 = vmatprep.subr.bf16.mxu0 0
    %3637 = vmatpush1.bf16.msra.mxu0 0
    %3638 = vmatprep.subr.bf16.mxu0 0
    %3639 = vmatpush1.bf16.msra.mxu0 0
    %3640 = vmatprep.subr.bf16.mxu0 0
    %3641 = vmatpush1.bf16.msra.mxu0 0
    %3642 = vmatprep.subr.bf16.mxu0 0
    %3643 = vmatpush1.bf16.msra.mxu0 0
    %3644 = vmatprep.subr.bf16.mxu0 0
    %3645 = vmatpush1.bf16.msra.mxu0 0
    %3646 = vmatprep.subr.bf16.mxu0 0
    %3647 = vmatpush1.bf16.msra.mxu0 0
    %3648 = vmatprep.mubr.bf16.mxu0 0
    %3649 = vmatmul.mubr.bf16.gmra.mrb[0].mxu0 %v3594
    %v3650 = vpop.f32.mrb[0].mxu0
    %v3651 = vadd.f32 %v3614, %v3650
    %v3652 = vpop.f32.mrb[0].mxu0
    %v3653 = vpop.f32.mrb[0].mxu0
    %v3654 = vadd.f32 %v3614, %v3653
    %v3655 = vpop.f32.mrb[0].mxu0
    %3656 = vmatprep.mubr.bf16.mxu0 0
    %3657 = vmatmul.mubr.bf16.gmra.mrb[0].mxu0 %v3595
    %v3658 = vpop.f32.mrb[0].mxu0
    %v3659 = vadd.f32 %v3614, %v3658
    %v3660 = vpop.f32.mrb[0].mxu0
    %v3661 = vpop.f32.mrb[0].mxu0
    %v3662 = vadd.f32 %v3614, %v3661
    %v3663 = vpop.f32.mrb[0].mxu0
    %3664 = vmatprep.mubr.bf16.mxu0 0
    %3665 = vmatmul.mubr.bf16.gmra.mrb[0].mxu0 %v3596
    %v3666 = vpop.f32.mrb[0].mxu0
    %v3667 = vadd.f32 %v3614, %v3666
    %v3668 = vpop.f32.mrb[0].mxu0
    %v3669 = vpop.f32.mrb[0].mxu0
    %v3670 = vadd.f32 %v3614, %v3669
    %v3671 = vpop.f32.mrb[0].mxu0
    %3672 = vmatprep.mubr.bf16.mxu0 0
    %3673 = vmatmul.mubr.bf16.gmra.mrb[0].mxu0 %v3597
    %v3674 = vpop.f32.mrb[0].mxu0
    %v3675 = vadd.f32 %v3614, %v3674
    %v3676 = vpop.f32.mrb[0].mxu0
    %v3677 = vpop.f32.mrb[0].mxu0
    %v3678 = vadd.f32 %v3614, %v3677
    %v3679 = vpop.f32.mrb[0].mxu0
    %3680 = vmatprep.mubr.bf16.mxu0 0
    %3681 = vmatmul.mubr.bf16.gmra.mrb[0].mxu0 %v3598
    %v3682 = vpop.f32.mrb[0].mxu0
    %v3683 = vadd.f32 %v3614, %v3682
    %v3684 = vpop.f32.mrb[0].mxu0
    %v3685 = vpop.f32.mrb[0].mxu0
    %v3686 = vadd.f32 %v3614, %v3685
    %v3687 = vpop.f32.mrb[0].mxu0
    %3688 = vmatprep.mubr.bf16.mxu0 0
    %3689 = vmatmul.mubr.bf16.gmra.mrb[0].mxu0 %v3599
    %v3690 = vpop.f32.mrb[0].mxu0
    %v3691 = vadd.f32 %v3614, %v3690
    %v3692 = vpop.f32.mrb[0].mxu0
    %v3693 = vpop.f32.mrb[0].mxu0
    %v3694 = vadd.f32 %v3614, %v3693
    %v3695 = vpop.f32.mrb[0].mxu0
    %3696 = vmatprep.mubr.bf16.mxu0 0
    %3697 = vmatmul.mubr.bf16.gmra.mrb[0].mxu0 %v3600
    %v3698 = vpop.f32.mrb[0].mxu0
    %v3699 = vadd.f32 %v3614, %v3698
    %v3700 = vpop.f32.mrb[0].mxu0
    %v3701 = vpop.f32.mrb[0].mxu0
    %v3702 = vadd.f32 %v3614, %v3701
    %v3703 = vpop.f32.mrb[0].mxu0
    %3704 = vmatprep.mubr.bf16.mxu0 0
    %3705 = vmatmul.mubr.bf16.gmra.mrb[0].mxu0 %v3601
    %v3706 = vpop.f32.mrb[0].mxu0
    %v3707 = vadd.f32 %v3614, %v3706
    %v3708 = vpop.f32.mrb[0].mxu0
    %v3709 = vpop.f32.mrb[0].mxu0
    %v3710 = vadd.f32 %v3614, %v3709
    %v3711 = vpop.f32.mrb[0].mxu0
    %3712 = vdwg.mxu0
    %v3713 = vmul.f32 %v3651, 0.5
    %v3714 = vmul.f32 %v3654, 0.5
    %v3715 = vmul.f32 %v3659, 0.5
    %v3716 = vmul.f32 %v3662, 0.5
    %v3717 = vmul.f32 %v3667, 0.5
    %v3718 = vmul.f32 %v3670, 0.5
    %v3719 = vmul.f32 %v3675, 0.5
    %v3720 = vmul.f32 %v3678, 0.5
    %v3721 = vmul.f32 %v3683, 0.5
    %v3722 = vmul.f32 %v3686, 0.5
    %v3723 = vmul.f32 %v3691, 0.5
    %v3724 = vmul.f32 %v3694, 0.5
    %v3725 = vmul.f32 %v3699, 0.5
    %v3726 = vmul.f32 %v3702, 0.5
    %v3727 = vmul.f32 %v3707, 0.5
    %v3728 = vmul.f32 %v3710, 0.5
    %v3729 = vmul.f32 %v3651, 0.70710677
    %v3730 = vmul.f32 %v3654, 0.70710677
    %v3731 = vmul.f32 %v3659, 0.70710677
    %v3732 = vmul.f32 %v3662, 0.70710677
    %v3733 = vmul.f32 %v3667, 0.70710677
    %v3734 = vmul.f32 %v3670, 0.70710677
    %v3735 = vmul.f32 %v3675, 0.70710677
    %v3736 = vmul.f32 %v3678, 0.70710677
    %v3737 = vmul.f32 %v3683, 0.70710677
    %v3738 = vmul.f32 %v3686, 0.70710677
    %v3739 = vmul.f32 %v3691, 0.70710677
    %v3740 = vmul.f32 %v3694, 0.70710677
    %v3741 = vmul.f32 %v3699, 0.70710677
    %v3742 = vmul.f32 %v3702, 0.70710677
    %v3743 = vmul.f32 %v3707, 0.70710677
    %v3744 = vmul.f32 %v3710, 0.70710677
    %vm3745 = vcmp.ge.f32.partialorder %v3729, 0.0
    %vm3746 = vcmp.ge.f32.partialorder %v3730, 0.0
    %vm3747 = vcmp.ge.f32.partialorder %v3731, 0.0
    %vm3748 = vcmp.ge.f32.partialorder %v3732, 0.0
    %vm3749 = vcmp.ge.f32.partialorder %v3733, 0.0
    %vm3750 = vcmp.ge.f32.partialorder %v3734, 0.0
    %vm3751 = vcmp.ge.f32.partialorder %v3735, 0.0
    %vm3752 = vcmp.ge.f32.partialorder %v3736, 0.0
    %vm3753 = vcmp.ge.f32.partialorder %v3737, 0.0
    %vm3754 = vcmp.ge.f32.partialorder %v3738, 0.0
    %vm3755 = vcmp.ge.f32.partialorder %v3739, 0.0
    %vm3756 = vcmp.ge.f32.partialorder %v3740, 0.0
    %vm3757 = vcmp.ge.f32.partialorder %v3741, 0.0
    %vm3758 = vcmp.ge.f32.partialorder %v3742, 0.0
    %vm3759 = vcmp.ge.f32.partialorder %v3743, 0.0
    %vm3760 = vcmp.ge.f32.partialorder %v3744, 0.0
    %v3761 = vsel %vm3745, 1.0, -1.0
    %v3762 = vsel %vm3746, 1.0, -1.0
    %v3763 = vsel %vm3747, 1.0, -1.0
    %v3764 = vsel %vm3748, 1.0, -1.0
    %v3765 = vsel %vm3749, 1.0, -1.0
    %v3766 = vsel %vm3750, 1.0, -1.0
    %v3767 = vsel %vm3751, 1.0, -1.0
    %v3768 = vsel %vm3752, 1.0, -1.0
    %v3769 = vsel %vm3753, 1.0, -1.0
    %v3770 = vsel %vm3754, 1.0, -1.0
    %v3771 = vsel %vm3755, 1.0, -1.0
    %v3772 = vsel %vm3756, 1.0, -1.0
    %v3773 = vsel %vm3757, 1.0, -1.0
    %v3774 = vsel %vm3758, 1.0, -1.0
    %v3775 = vsel %vm3759, 1.0, -1.0
    %v3776 = vsel %vm3760, 1.0, -1.0
    %v3777 = vand.u32 2147483647, %v3729
    %v3778 = vand.u32 2147483647, %v3730
    %v3779 = vand.u32 2147483647, %v3731
    %v3780 = vand.u32 2147483647, %v3732
    %v3781 = vand.u32 2147483647, %v3733
    %v3782 = vand.u32 2147483647, %v3734
    %v3783 = vand.u32 2147483647, %v3735
    %v3784 = vand.u32 2147483647, %v3736
    %v3785 = vand.u32 2147483647, %v3737
    %v3786 = vand.u32 2147483647, %v3738
    %v3787 = vand.u32 2147483647, %v3739
    %v3788 = vand.u32 2147483647, %v3740
    %v3789 = vand.u32 2147483647, %v3741
    %v3790 = vand.u32 2147483647, %v3742
    %v3791 = vand.u32 2147483647, %v3743
    %v3792 = vand.u32 2147483647, %v3744
    %v3793 = vmul.f32 %v3777, 0.3275911
    %v3794 = vmul.f32 %v3778, 0.3275911
    %v3795 = vmul.f32 %v3779, 0.3275911
    %v3796 = vmul.f32 %v3780, 0.3275911
    %v3797 = vmul.f32 %v3781, 0.3275911
    %v3798 = vmul.f32 %v3782, 0.3275911
    %v3799 = vmul.f32 %v3783, 0.3275911
    %v3800 = vmul.f32 %v3784, 0.3275911
    %v3801 = vmul.f32 %v3785, 0.3275911
    %v3802 = vmul.f32 %v3786, 0.3275911
    %v3803 = vmul.f32 %v3787, 0.3275911
    %v3804 = vmul.f32 %v3788, 0.3275911
    %v3805 = vmul.f32 %v3789, 0.3275911
    %v3806 = vmul.f32 %v3790, 0.3275911
    %v3807 = vmul.f32 %v3791, 0.3275911
    %v3808 = vmul.f32 %v3792, 0.3275911
    %v3809 = vadd.f32 %v3793, 1.0
    %v3810 = vadd.f32 %v3794, 1.0
    %v3811 = vadd.f32 %v3795, 1.0
    %v3812 = vadd.f32 %v3796, 1.0
    %v3813 = vadd.f32 %v3797, 1.0
    %v3814 = vadd.f32 %v3798, 1.0
    %v3815 = vadd.f32 %v3799, 1.0
    %v3816 = vadd.f32 %v3800, 1.0
    %v3817 = vadd.f32 %v3801, 1.0
    %v3818 = vadd.f32 %v3802, 1.0
    %v3819 = vadd.f32 %v3803, 1.0
    %v3820 = vadd.f32 %v3804, 1.0
    %v3821 = vadd.f32 %v3805, 1.0
    %v3822 = vadd.f32 %v3806, 1.0
    %v3823 = vadd.f32 %v3807, 1.0
    %v3824 = vadd.f32 %v3808, 1.0
    %v3825 = vrcp.pop %v3809
    %v3826 = vmul.f32 1.0, %v3825
    %v3827 = vrcp.pop %v3810
    %v3828 = vmul.f32 1.0, %v3827
    %v3829 = vrcp.pop %v3811
    %v3830 = vmul.f32 1.0, %v3829
    %v3831 = vrcp.pop %v3812
    %v3832 = vmul.f32 1.0, %v3831
    %v3833 = vrcp.pop %v3813
    %v3834 = vmul.f32 1.0, %v3833
    %v3835 = vrcp.pop %v3814
    %v3836 = vmul.f32 1.0, %v3835
    %v3837 = vrcp.pop %v3815
    %v3838 = vmul.f32 1.0, %v3837
    %v3839 = vrcp.pop %v3816
    %v3840 = vmul.f32 1.0, %v3839
    %v3841 = vrcp.pop %v3817
    %v3842 = vmul.f32 1.0, %v3841
    %v3843 = vrcp.pop %v3818
    %v3844 = vmul.f32 1.0, %v3843
    %v3845 = vrcp.pop %v3819
    %v3846 = vmul.f32 1.0, %v3845
    %v3847 = vrcp.pop %v3820
    %v3848 = vmul.f32 1.0, %v3847
    %v3849 = vrcp.pop %v3821
    %v3850 = vmul.f32 1.0, %v3849
    %v3851 = vrcp.pop %v3822
    %v3852 = vmul.f32 1.0, %v3851
    %v3853 = vrcp.pop %v3823
    %v3854 = vmul.f32 1.0, %v3853
    %v3855 = vrcp.pop %v3824
    %v3856 = vmul.f32 1.0, %v3855
    %v3857 = vmul.f32 %v3826, 1.0614054
    %v3858 = vmul.f32 %v3828, 1.0614054
    %v3859 = vmul.f32 %v3830, 1.0614054
    %v3860 = vmul.f32 %v3832, 1.0614054
    %v3861 = vmul.f32 %v3834, 1.0614054
    %v3862 = vmul.f32 %v3836, 1.0614054
    %v3863 = vmul.f32 %v3838, 1.0614054
    %v3864 = vmul.f32 %v3840, 1.0614054
    %v3865 = vmul.f32 %v3842, 1.0614054
    %v3866 = vmul.f32 %v3844, 1.0614054
    %v3867 = vmul.f32 %v3846, 1.0614054
    %v3868 = vmul.f32 %v3848, 1.0614054
    %v3869 = vmul.f32 %v3850, 1.0614054
    %v3870 = vmul.f32 %v3852, 1.0614054
    %v3871 = vmul.f32 %v3854, 1.0614054
    %v3872 = vmul.f32 %v3856, 1.0614054
    %v3873 = vadd.f32 %v3857, -1.4531521
    %v3874 = vadd.f32 %v3858, -1.4531521
    %v3875 = vadd.f32 %v3859, -1.4531521
    %v3876 = vadd.f32 %v3860, -1.4531521
    %v3877 = vadd.f32 %v3861, -1.4531521
    %v3878 = vadd.f32 %v3862, -1.4531521
    %v3879 = vadd.f32 %v3863, -1.4531521
    %v3880 = vadd.f32 %v3864, -1.4531521
    %v3881 = vadd.f32 %v3865, -1.4531521
    %v3882 = vadd.f32 %v3866, -1.4531521
    %v3883 = vadd.f32 %v3867, -1.4531521
    %v3884 = vadd.f32 %v3868, -1.4531521
    %v3885 = vadd.f32 %v3869, -1.4531521
    %v3886 = vadd.f32 %v3870, -1.4531521
    %v3887 = vadd.f32 %v3871, -1.4531521
    %v3888 = vadd.f32 %v3872, -1.4531521
    %v3889 = vmul.f32 %v3826, %v3873
    %v3890 = vmul.f32 %v3828, %v3874
    %v3891 = vmul.f32 %v3830, %v3875
    %v3892 = vmul.f32 %v3832, %v3876
    %v3893 = vmul.f32 %v3834, %v3877
    %v3894 = vmul.f32 %v3836, %v3878
    %v3895 = vmul.f32 %v3838, %v3879
    %v3896 = vmul.f32 %v3840, %v3880
    %v3897 = vmul.f32 %v3842, %v3881
    %v3898 = vmul.f32 %v3844, %v3882
    %v3899 = vmul.f32 %v3846, %v3883
    %v3900 = vmul.f32 %v3848, %v3884
    %v3901 = vmul.f32 %v3850, %v3885
    %v3902 = vmul.f32 %v3852, %v3886
    %v3903 = vmul.f32 %v3854, %v3887
    %v3904 = vmul.f32 %v3856, %v3888
    %v3905 = vadd.f32 %v3889, 1.4214138
    %v3906 = vadd.f32 %v3890, 1.4214138
    %v3907 = vadd.f32 %v3891, 1.4214138
    %v3908 = vadd.f32 %v3892, 1.4214138
    %v3909 = vadd.f32 %v3893, 1.4214138
    %v3910 = vadd.f32 %v3894, 1.4214138
    %v3911 = vadd.f32 %v3895, 1.4214138
    %v3912 = vadd.f32 %v3896, 1.4214138
    %v3913 = vadd.f32 %v3897, 1.4214138
    %v3914 = vadd.f32 %v3898, 1.4214138
    %v3915 = vadd.f32 %v3899, 1.4214138
    %v3916 = vadd.f32 %v3900, 1.4214138
    %v3917 = vadd.f32 %v3901, 1.4214138
    %v3918 = vadd.f32 %v3902, 1.4214138
    %v3919 = vadd.f32 %v3903, 1.4214138
    %v3920 = vadd.f32 %v3904, 1.4214138
    %v3921 = vmul.f32 %v3826, %v3905
    %v3922 = vmul.f32 %v3828, %v3906
    %v3923 = vmul.f32 %v3830, %v3907
    %v3924 = vmul.f32 %v3832, %v3908
    %v3925 = vmul.f32 %v3834, %v3909
    %v3926 = vmul.f32 %v3836, %v3910
    %v3927 = vmul.f32 %v3838, %v3911
    %v3928 = vmul.f32 %v3840, %v3912
    %v3929 = vmul.f32 %v3842, %v3913
    %v3930 = vmul.f32 %v3844, %v3914
    %v3931 = vmul.f32 %v3846, %v3915
    %v3932 = vmul.f32 %v3848, %v3916
    %v3933 = vmul.f32 %v3850, %v3917
    %v3934 = vmul.f32 %v3852, %v3918
    %v3935 = vmul.f32 %v3854, %v3919
    %v3936 = vmul.f32 %v3856, %v3920
    %v3937 = vadd.f32 %v3921, -0.28449672
    %v3938 = vadd.f32 %v3922, -0.28449672
    %v3939 = vadd.f32 %v3923, -0.28449672
    %v3940 = vadd.f32 %v3924, -0.28449672
    %v3941 = vadd.f32 %v3925, -0.28449672
    %v3942 = vadd.f32 %v3926, -0.28449672
    %v3943 = vadd.f32 %v3927, -0.28449672
    %v3944 = vadd.f32 %v3928, -0.28449672
    %v3945 = vadd.f32 %v3929, -0.28449672
    %v3946 = vadd.f32 %v3930, -0.28449672
    %v3947 = vadd.f32 %v3931, -0.28449672
    %v3948 = vadd.f32 %v3932, -0.28449672
    %v3949 = vadd.f32 %v3933, -0.28449672
    %v3950 = vadd.f32 %v3934, -0.28449672
    %v3951 = vadd.f32 %v3935, -0.28449672
    %v3952 = vadd.f32 %v3936, -0.28449672
    %v3953 = vmul.f32 %v3826, %v3937
    %v3954 = vmul.f32 %v3828, %v3938
    %v3955 = vmul.f32 %v3830, %v3939
    %v3956 = vmul.f32 %v3832, %v3940
    %v3957 = vmul.f32 %v3834, %v3941
    %v3958 = vmul.f32 %v3836, %v3942
    %v3959 = vmul.f32 %v3838, %v3943
    %v3960 = vmul.f32 %v3840, %v3944
    %v3961 = vmul.f32 %v3842, %v3945
    %v3962 = vmul.f32 %v3844, %v3946
    %v3963 = vmul.f32 %v3846, %v3947
    %v3964 = vmul.f32 %v3848, %v3948
    %v3965 = vmul.f32 %v3850, %v3949
    %v3966 = vmul.f32 %v3852, %v3950
    %v3967 = vmul.f32 %v3854, %v3951
    %v3968 = vmul.f32 %v3856, %v3952
    %v3969 = vadd.f32 %v3953, 0.2548296
    %v3970 = vadd.f32 %v3954, 0.2548296
    %v3971 = vadd.f32 %v3955, 0.2548296
    %v3972 = vadd.f32 %v3956, 0.2548296
    %v3973 = vadd.f32 %v3957, 0.2548296
    %v3974 = vadd.f32 %v3958, 0.2548296
    %v3975 = vadd.f32 %v3959, 0.2548296
    %v3976 = vadd.f32 %v3960, 0.2548296
    %v3977 = vadd.f32 %v3961, 0.2548296
    %v3978 = vadd.f32 %v3962, 0.2548296
    %v3979 = vadd.f32 %v3963, 0.2548296
    %v3980 = vadd.f32 %v3964, 0.2548296
    %v3981 = vadd.f32 %v3965, 0.2548296
    %v3982 = vadd.f32 %v3966, 0.2548296
    %v3983 = vadd.f32 %v3967, 0.2548296
    %v3984 = vadd.f32 %v3968, 0.2548296
    %v3985 = vmul.f32 %v3826, %v3969
    %v3986 = vmul.f32 %v3828, %v3970
    %v3987 = vmul.f32 %v3830, %v3971
    %v3988 = vmul.f32 %v3832, %v3972
    %v3989 = vmul.f32 %v3834, %v3973
    %v3990 = vmul.f32 %v3836, %v3974
    %v3991 = vmul.f32 %v3838, %v3975
    %v3992 = vmul.f32 %v3840, %v3976
    %v3993 = vmul.f32 %v3842, %v3977
    %v3994 = vmul.f32 %v3844, %v3978
    %v3995 = vmul.f32 %v3846, %v3979
    %v3996 = vmul.f32 %v3848, %v3980
    %v3997 = vmul.f32 %v3850, %v3981
    %v3998 = vmul.f32 %v3852, %v3982
    %v3999 = vmul.f32 %v3854, %v3983
    %v4000 = vmul.f32 %v3856, %v3984
    %v4001 = vsub.f32 0.0, %v3777
    %v4002 = vsub.f32 0.0, %v3778
    %v4003 = vsub.f32 0.0, %v3779
    %v4004 = vsub.f32 0.0, %v3780
    %v4005 = vsub.f32 0.0, %v3781
    %v4006 = vsub.f32 0.0, %v3782
    %v4007 = vsub.f32 0.0, %v3783
    %v4008 = vsub.f32 0.0, %v3784
    %v4009 = vsub.f32 0.0, %v3785
    %v4010 = vsub.f32 0.0, %v3786
    %v4011 = vsub.f32 0.0, %v3787
    %v4012 = vsub.f32 0.0, %v3788
    %v4013 = vsub.f32 0.0, %v3789
    %v4014 = vsub.f32 0.0, %v3790
    %v4015 = vsub.f32 0.0, %v3791
    %v4016 = vsub.f32 0.0, %v3792
    %v4017 = vmul.f32 %v4001, %v3777
    %v4018 = vmul.f32 %v4002, %v3778
    %v4019 = vmul.f32 %v4003, %v3779
    %v4020 = vmul.f32 %v4004, %v3780
    %v4021 = vmul.f32 %v4005, %v3781
    %v4022 = vmul.f32 %v4006, %v3782
    %v4023 = vmul.f32 %v4007, %v3783
    %v4024 = vmul.f32 %v4008, %v3784
    %v4025 = vmul.f32 %v4009, %v3785
    %v4026 = vmul.f32 %v4010, %v3786
    %v4027 = vmul.f32 %v4011, %v3787
    %v4028 = vmul.f32 %v4012, %v3788
    %v4029 = vmul.f32 %v4013, %v3789
    %v4030 = vmul.f32 %v4014, %v3790
    %v4031 = vmul.f32 %v4015, %v3791
    %v4032 = vmul.f32 %v4016, %v3792
    %v4033 = vmul.f32 %v4017, 1.442695
    %v4034 = vpow.pop %v4033
    %v4035 = vmul.f32 %v4018, 1.442695
    %v4036 = vpow.pop %v4035
    %v4037 = vmul.f32 %v4019, 1.442695
    %v4038 = vpow.pop %v4037
    %v4039 = vmul.f32 %v4020, 1.442695
    %v4040 = vpow.pop %v4039
    %v4041 = vmul.f32 %v4021, 1.442695
    %v4042 = vpow.pop %v4041
    %v4043 = vmul.f32 %v4022, 1.442695
    %v4044 = vpow.pop %v4043
    %v4045 = vmul.f32 %v4023, 1.442695
    %v4046 = vpow.pop %v4045
    %v4047 = vmul.f32 %v4024, 1.442695
    %v4048 = vpow.pop %v4047
    %v4049 = vmul.f32 %v4025, 1.442695
    %v4050 = vpow.pop %v4049
    %v4051 = vmul.f32 %v4026, 1.442695
    %v4052 = vpow.pop %v4051
    %v4053 = vmul.f32 %v4027, 1.442695
    %v4054 = vpow.pop %v4053
    %v4055 = vmul.f32 %v4028, 1.442695
    %v4056 = vpow.pop %v4055
    %v4057 = vmul.f32 %v4029, 1.442695
    %v4058 = vpow.pop %v4057
    %v4059 = vmul.f32 %v4030, 1.442695
    %v4060 = vpow.pop %v4059
    %v4061 = vmul.f32 %v4031, 1.442695
    %v4062 = vpow.pop %v4061
    %v4063 = vmul.f32 %v4032, 1.442695
    %v4064 = vpow.pop %v4063
    %v4065 = vmul.f32 %v3985, %v4034
    %v4066 = vmul.f32 %v3986, %v4036
    %v4067 = vmul.f32 %v3987, %v4038
    %v4068 = vmul.f32 %v3988, %v4040
    %v4069 = vmul.f32 %v3989, %v4042
    %v4070 = vmul.f32 %v3990, %v4044
    %v4071 = vmul.f32 %v3991, %v4046
    %v4072 = vmul.f32 %v3992, %v4048
    %v4073 = vmul.f32 %v3993, %v4050
    %v4074 = vmul.f32 %v3994, %v4052
    %v4075 = vmul.f32 %v3995, %v4054
    %v4076 = vmul.f32 %v3996, %v4056
    %v4077 = vmul.f32 %v3997, %v4058
    %v4078 = vmul.f32 %v3998, %v4060
    %v4079 = vmul.f32 %v3999, %v4062
    %v4080 = vmul.f32 %v4000, %v4064
    %v4081 = vsub.f32 1.0, %v4065
    %v4082 = vsub.f32 1.0, %v4066
    %v4083 = vsub.f32 1.0, %v4067
    %v4084 = vsub.f32 1.0, %v4068
    %v4085 = vsub.f32 1.0, %v4069
    %v4086 = vsub.f32 1.0, %v4070
    %v4087 = vsub.f32 1.0, %v4071
    %v4088 = vsub.f32 1.0, %v4072
    %v4089 = vsub.f32 1.0, %v4073
    %v4090 = vsub.f32 1.0, %v4074
    %v4091 = vsub.f32 1.0, %v4075
    %v4092 = vsub.f32 1.0, %v4076
    %v4093 = vsub.f32 1.0, %v4077
    %v4094 = vsub.f32 1.0, %v4078
    %v4095 = vsub.f32 1.0, %v4079
    %v4096 = vsub.f32 1.0, %v4080
    %v4097 = vmul.f32 %v3761, %v4081
    %v4098 = vmul.f32 %v3762, %v4082
    %v4099 = vmul.f32 %v3763, %v4083
    %v4100 = vmul.f32 %v3764, %v4084
    %v4101 = vmul.f32 %v3765, %v4085
    %v4102 = vmul.f32 %v3766, %v4086
    %v4103 = vmul.f32 %v3767, %v4087
    %v4104 = vmul.f32 %v3768, %v4088
    %v4105 = vmul.f32 %v3769, %v4089
    %v4106 = vmul.f32 %v3770, %v4090
    %v4107 = vmul.f32 %v3771, %v4091
    %v4108 = vmul.f32 %v3772, %v4092
    %v4109 = vmul.f32 %v3773, %v4093
    %v4110 = vmul.f32 %v3774, %v4094
    %v4111 = vmul.f32 %v3775, %v4095
    %v4112 = vmul.f32 %v3776, %v4096
    %v4113 = vadd.f32 %v4097, 1.0
    %v4114 = vadd.f32 %v4098, 1.0
    %v4115 = vadd.f32 %v4099, 1.0
    %v4116 = vadd.f32 %v4100, 1.0
    %v4117 = vadd.f32 %v4101, 1.0
    %v4118 = vadd.f32 %v4102, 1.0
    %v4119 = vadd.f32 %v4103, 1.0
    %v4120 = vadd.f32 %v4104, 1.0
    %v4121 = vadd.f32 %v4105, 1.0
    %v4122 = vadd.f32 %v4106, 1.0
    %v4123 = vadd.f32 %v4107, 1.0
    %v4124 = vadd.f32 %v4108, 1.0
    %v4125 = vadd.f32 %v4109, 1.0
    %v4126 = vadd.f32 %v4110, 1.0
    %v4127 = vadd.f32 %v4111, 1.0
    %v4128 = vadd.f32 %v4112, 1.0
    %v4129 = vmul.f32 %v3713, %v4113
    %v4130 = vmul.f32 %v3714, %v4114
    %v4131 = vmul.f32 %v3715, %v4115
    %v4132 = vmul.f32 %v3716, %v4116
    %v4133 = vmul.f32 %v3717, %v4117
    %v4134 = vmul.f32 %v3718, %v4118
    %v4135 = vmul.f32 %v3719, %v4119
    %v4136 = vmul.f32 %v3720, %v4120
    %v4137 = vmul.f32 %v3721, %v4121
    %v4138 = vmul.f32 %v3722, %v4122
    %v4139 = vmul.f32 %v3723, %v4123
    %v4140 = vmul.f32 %v3724, %v4124
    %v4141 = vmul.f32 %v3725, %v4125
    %v4142 = vmul.f32 %v3726, %v4126
    %v4143 = vmul.f32 %v3727, %v4127
    %v4144 = vmul.f32 %v3728, %v4128
    %4145 = vst [vmem:[#allocation4] sm:$0xff] %v4129
    %4146 = vst [vmem:[#allocation4 + $0x8] sm:$0xff] %v4130
    %4147 = vst [vmem:[#allocation4 + $0x10] sm:$0xff] %v4131
    %4148 = vst [vmem:[#allocation4 + $0x18] sm:$0xff] %v4132
    %4149 = vst [vmem:[#allocation4 + $0x20] sm:$0xff] %v4133
    %4150 = vst [vmem:[#allocation4 + $0x28] sm:$0xff] %v4134
    %4151 = vst [vmem:[#allocation4 + $0x30] sm:$0xff] %v4135
    %4152 = vst [vmem:[#allocation4 + $0x38] sm:$0xff] %v4136
    %4153 = vst [vmem:[#allocation4 + $0x40] sm:$0xff] %v4137
    %4154 = vst [vmem:[#allocation4 + $0x48] sm:$0xff] %v4138
    %4155 = vst [vmem:[#allocation4 + $0x50] sm:$0xff] %v4139
    %4156 = vst [vmem:[#allocation4 + $0x58] sm:$0xff] %v4140
    %4157 = vst [vmem:[#allocation4 + $0x60] sm:$0xff] %v4141
    %4158 = vst [vmem:[#allocation4 + $0x68] sm:$0xff] %v4142
    %4159 = vst [vmem:[#allocation4 + $0x70] sm:$0xff] %v4143
    %4160 = vst [vmem:[#allocation4 + $0x78] sm:$0xff] %v4144
    %v4161 = vld [vmem:[%s2] sm:$0xf]
    %v4162 = vld [vmem:[#allocation4] sm:$0xff]
    %v4163 = vld [vmem:[#allocation4 + $0x8] sm:$0xff]
    %v4164 = vld [vmem:[#allocation4 + $0x10] sm:$0xff]
    %v4165 = vld [vmem:[#allocation4 + $0x18] sm:$0xff]
    %v4166 = vld [vmem:[#allocation4 + $0x20] sm:$0xff]
    %v4167 = vld [vmem:[#allocation4 + $0x28] sm:$0xff]
    %v4168 = vld [vmem:[#allocation4 + $0x30] sm:$0xff]
    %v4169 = vld [vmem:[#allocation4 + $0x38] sm:$0xff]
    %v4170 = vld [vmem:[#allocation4 + $0x40] sm:$0xff]
    %v4171 = vld [vmem:[#allocation4 + $0x48] sm:$0xff]
    %v4172 = vld [vmem:[#allocation4 + $0x50] sm:$0xff]
    %v4173 = vld [vmem:[#allocation4 + $0x58] sm:$0xff]
    %v4174 = vld [vmem:[#allocation4 + $0x60] sm:$0xff]
    %v4175 = vld [vmem:[#allocation4 + $0x68] sm:$0xff]
    %v4176 = vld [vmem:[#allocation4 + $0x70] sm:$0xff]
    %v4177 = vld [vmem:[#allocation4 + $0x78] sm:$0xff]
    %v4178 = vpack.c.bf16 %v4163, %v4162
    %v4179 = vpack.c.bf16 %v4165, %v4164
    %v4180 = vpack.c.bf16 %v4167, %v4166
    %v4181 = vpack.c.bf16 %v4169, %v4168
    %v4182 = vpack.c.bf16 %v4171, %v4170
    %v4183 = vpack.c.bf16 %v4173, %v4172
    %v4184 = vpack.c.bf16 %v4175, %v4174
    %v4185 = vpack.c.bf16 %v4177, %v4176
    %4186 = vmatprep.subr.bf16.mxu0 0
    %4187 = vmatpush1.bf16.msra.mxu0 %v4178
    %4188 = vmatprep.subr.bf16.mxu0 0
    %4189 = vmatpush1.bf16.msra.mxu0 %v4179
    %4190 = vmatprep.subr.bf16.mxu0 0
    %4191 = vmatpush1.bf16.msra.mxu0 %v4180
    %4192 = vmatprep.subr.bf16.mxu0 0
    %4193 = vmatpush1.bf16.msra.mxu0 %v4181
    %4194 = vmatprep.subr.bf16.mxu0 0
    %4195 = vmatpush1.bf16.msra.mxu0 %v4182
    %4196 = vmatprep.subr.bf16.mxu0 0
    %4197 = vmatpush1.bf16.msra.mxu0 %v4183
    %4198 = vmatprep.subr.bf16.mxu0 0
    %4199 = vmatpush1.bf16.msra.mxu0 %v4184
    %4200 = vmatprep.subr.bf16.mxu0 0
    %4201 = vmatpush1.bf16.msra.mxu0 %v4185
    %4202 = vmatprep.subr.bf16.mxu0 0
    %4203 = vmatpush1.bf16.msra.mxu0 0
    %4204 = vmatprep.subr.bf16.mxu0 0
    %4205 = vmatpush1.bf16.msra.mxu0 0
    %4206 = vmatprep.subr.bf16.mxu0 0
    %4207 = vmatpush1.bf16.msra.mxu0 0
    %4208 = vmatprep.subr.bf16.mxu0 0
    %4209 = vmatpush1.bf16.msra.mxu0 0
    %4210 = vmatprep.subr.bf16.mxu0 0
    %4211 = vmatpush1.bf16.msra.mxu0 0
    %4212 = vmatprep.subr.bf16.mxu0 0
    %4213 = vmatpush1.bf16.msra.mxu0 0
    %4214 = vmatprep.subr.bf16.mxu0 0
    %4215 = vmatpush1.bf16.msra.mxu0 0
    %4216 = vmatprep.subr.bf16.mxu0 0
    %4217 = vmatpush1.bf16.msra.mxu0 0
    %4218 = vmatprep.mubr.bf16.mxu0 0
    %4219 = vmatmul.mubr.bf16.gmra.mrb[0].mxu0 %v4161
    %v4220 = vpop.f32.mrb[0].mxu0
    %v4221 = vadd.f32 0.0, %v4220
    %v4222 = vpop.f32.mrb[0].mxu0
    %v4223 = vpop.f32.mrb[0].mxu0
    %v4224 = vpop.f32.mrb[0].mxu0
    %4225 = vdwg.mxu0
    %v4226 = vpack.c.bf16 %v4221, %v4221
    %v4227 = vld [vmem:[#allocation16] sm:$0xf]
    %v4228 = vld [vmem:[#allocation16 + $0x4] sm:$0xf]
    %v4229 = vld [vmem:[#allocation16 + $0x8] sm:$0xf]
    %v4230 = vld [vmem:[#allocation16 + $0xc] sm:$0xf]
    %v4231 = vld [vmem:[#allocation16 + $0x10] sm:$0xf]
    %v4232 = vld [vmem:[#allocation16 + $0x14] sm:$0xf]
    %v4233 = vld [vmem:[#allocation16 + $0x18] sm:$0xf]
    %v4234 = vld [vmem:[#allocation16 + $0x1c] sm:$0xf]
    %v4235 = vld [vmem:[#allocation16 + $0x20] sm:$0xf]
    %v4236 = vld [vmem:[#allocation16 + $0x24] sm:$0xf]
    %v4237 = vld [vmem:[#allocation16 + $0x28] sm:$0xf]
    %v4238 = vld [vmem:[#allocation16 + $0x2c] sm:$0xf]
    %v4239 = vld [vmem:[#allocation16 + $0x30] sm:$0xf]
    %v4240 = vld [vmem:[#allocation16 + $0x34] sm:$0xf]
    %v4241 = vld [vmem:[#allocation16 + $0x38] sm:$0xf]
    %v4242 = vld [vmem:[#allocation16 + $0x3c] sm:$0xf]
    %v4243 = vld [vmem:[%s13] sm:$0x1]
    %v4245 = vlaneseq
    %v4246 = vshrl.u32 %v4245, 7
    %v4247 = vsub.s32 0, %v4246
    %v4248 = vrot.slane %v4243, %v4247
    %v4266 = vunpack.c.l.b16 %v4227
    %v4267 = vunpack.c.l.b16 %v4228
    %v4268 = vunpack.c.l.b16 %v4229
    %v4269 = vunpack.c.l.b16 %v4230
    %v4270 = vunpack.c.l.b16 %v4231
    %v4271 = vunpack.c.l.b16 %v4232
    %v4272 = vunpack.c.l.b16 %v4233
    %v4273 = vunpack.c.l.b16 %v4234
    %v4274 = vunpack.c.l.b16 %v4235
    %v4275 = vunpack.c.l.b16 %v4236
    %v4276 = vunpack.c.l.b16 %v4237
    %v4277 = vunpack.c.l.b16 %v4238
    %v4278 = vunpack.c.l.b16 %v4239
    %v4279 = vunpack.c.l.b16 %v4240
    %v4280 = vunpack.c.l.b16 %v4241
    %v4281 = vunpack.c.l.b16 %v4242
    %v4282 = vpack.c.b16 %v4267, %v4266
    %v4283 = vpack.c.b16 %v4269, %v4268
    %v4284 = vpack.c.b16 %v4271, %v4270
    %v4285 = vpack.c.b16 %v4273, %v4272
    %v4286 = vpack.c.b16 %v4275, %v4274
    %v4287 = vpack.c.b16 %v4277, %v4276
    %v4288 = vpack.c.b16 %v4279, %v4278
    %v4289 = vpack.c.b16 %v4281, %v4280
    %4298 = vmatprep.subr.bf16.mxu0 0
    %4299 = vmatpush1.bf16.msra.mxu0 %v4282
    %4300 = vmatprep.subr.bf16.mxu0 0
    %4301 = vmatpush1.bf16.msra.mxu0 %v4283
    %4302 = vmatprep.subr.bf16.mxu0 0
    %4303 = vmatpush1.bf16.msra.mxu0 %v4284
    %4304 = vmatprep.subr.bf16.mxu0 0
    %4305 = vmatpush1.bf16.msra.mxu0 %v4285
    %4306 = vmatprep.subr.bf16.mxu0 0
    %4307 = vmatpush1.bf16.msra.mxu0 %v4286
    %4308 = vmatprep.subr.bf16.mxu0 0
    %4309 = vmatpush1.bf16.msra.mxu0 %v4287
    %4310 = vmatprep.subr.bf16.mxu0 0
    %4311 = vmatpush1.bf16.msra.mxu0 %v4288
    %4312 = vmatprep.subr.bf16.mxu0 0
    %4313 = vmatpush1.bf16.msra.mxu0 %v4289
    %4314 = vmatprep.subr.bf16.mxu0 0
    %4315 = vmatpush1.bf16.msra.mxu0 0
    %4316 = vmatprep.subr.bf16.mxu0 0
    %4317 = vmatpush1.bf16.msra.mxu0 0
    %4318 = vmatprep.subr.bf16.mxu0 0
    %4319 = vmatpush1.bf16.msra.mxu0 0
    %4320 = vmatprep.subr.bf16.mxu0 0
    %4321 = vmatpush1.bf16.msra.mxu0 0
    %4322 = vmatprep.subr.bf16.mxu0 0
    %4323 = vmatpush1.bf16.msra.mxu0 0
    %4324 = vmatprep.subr.bf16.mxu0 0
    %4325 = vmatpush1.bf16.msra.mxu0 0
    %4326 = vmatprep.subr.bf16.mxu0 0
    %4327 = vmatpush1.bf16.msra.mxu0 0
    %4328 = vmatprep.subr.bf16.mxu0 0
    %4329 = vmatpush1.bf16.msra.mxu0 0
    %4330 = vmatprep.mubr.bf16.mxu0 0
    %4331 = vmatmul.mubr.bf16.gmra.mrb[0].mxu0 %v4226
    %v4332 = vpop.f32.mrb[0].mxu0
    %v4333 = vadd.f32 %v4248, %v4332
    %v4334 = vpop.f32.mrb[0].mxu0
    %v4335 = vpop.f32.mrb[0].mxu0
    %v4336 = vpop.f32.mrb[0].mxu0
    %4337 = vdwg.mxu0
    %vm4338 = vcmp.gt.f32.partialorder %v4333, 0.0
    %v4339 = vmul.f32 %v4333, 0.01
    %v4340 = vsel %vm4338, %v4333, %v4339
    %4341 = vst [vmem:[#allocation17] sm:$0xff] %v4340
    // Predicated region
    $region86: #{tpu_custom_call.1} parent=1 // pred_check
      _
    $region87: #{tpu_custom_call.1} parent=1 // pred_check_branch
      %4343 = sbr.rel (0) target = $region89
    $region88: #{tpu_custom_call.1} parent=1 // pred_region
      %s4345 = ssub.s32 128, 128
      %4346 = vsyncadd [#allocation10], %s4345
      %s4348 = sshll.u32 [#allocation17], 4
      %s4349 = int_to_ptr.vmem [resolvable:$true] %s4348
      %4351 = dma.vmem_to_hbm [thread:$0]  %s4349, 128, %s14, [#allocation10]
    $region89: #{tpu_custom_call.1} parent=1 // pred_fallthru
      _
    // Predicated region
    $region90: #{tpu_custom_call.1} parent=1 // pred_check
      _
    $region91: #{tpu_custom_call.1} parent=1 // pred_check_branch
      %4353 = sbr.rel (0) target = $region93
    $region92: #{tpu_custom_call.1} parent=1 // pred_region
      %4354 = dma.done [#allocation10], 128
    $region93: #{tpu_custom_call.1} parent=1 // pred_fallthru
      _
    %4355 = vsyncpa [#allocation9], 1
    %4356 = vsyncpa [#allocation12], 1
    %4357 = vsyncpa [#allocation15], 1
    %4358 = vsyncpa [#allocation10], 1
  %4359 = vsyncmov [#allocation7]
  %s4360 = vpop.sfrf %4359
  %p4361 = scmp.eq.s32.totalorder %s4360, 0
  %p4362 = pneg %p4361
  %4364 = shalt.err (%p4362)
  %s4365 = scalar_lea.sflag [#allocation7], 1
  %4366 = vsyncmov %s4365
  %s4367 = vpop.sfrf %4366
  %p4368 = scmp.eq.s32.totalorder %s4367, 0
  %p4369 = pneg %p4368
  %4371 = shalt.err (%p4369)

</llo_original>
